<compile_context>
chip_gen: v7x
topology: tpu7x:2x2x1
jax: 0.10.0
libtpu: 0.0.40
codegen_flags: <defaults>
</compile_context>

<pallas_src>
import jax
import jax.numpy as jnp
from jax import lax
from jax.experimental import pallas as pl
from jax.experimental.pallas import tpu as pltpu


def _round_up(v, m):
    return ((v + m - 1) // m) * m


def _cdiv(a, b):
    return -(-a // b)


def _make_kernel(W, HW, L, halo, out1, n_in, cin, slabs, slab_row0,
                 pool_a, pool_rows, pool_row0):
    """Builds the per-block kernel (one block = nb images packed on lanes)."""

    def kernel(widx_ref, ploc_ref, x_ref, win_ref, bin_ref, wf_ref, bf_ref,
               o_ref, pad_ref, cols_ref):
        w_idx = widx_ref[...]          # (1, L) column index inside the image
        p_loc = ploc_ref[...]          # (1, L) flat position inside the image
        x = x_ref[...]                 # (cin, L)

        def border_mask(dy, dx):
            """Lanes whose (dy, dx) tap falls inside its own image."""
            conds = []
            if dx > 0:
                conds.append(w_idx < (W - dx))
            elif dx < 0:
                conds.append(w_idx >= (-dx))
            if dy > 0:
                conds.append(p_loc < (HW - dy * W))
            elif dy < 0:
                conds.append(p_loc >= (-dy) * W)
            if not conds:
                return None
            m = conds[0]
            for c in conds[1:]:
                m = m & c
            return m

        # ---- fused input-side 1x1 convs: branch-1 + 3x3/5x5 reduces --------
        yin = jnp.dot(win_ref[...], x, preferred_element_type=jnp.float32)
        yin = jnp.maximum(yin + bin_ref[...], 0.0)
        o_ref[0:out1, :] = yin[0:out1].astype(o_ref.dtype)

        # single halo scratch, rows = [r3 ; r5 ; x].  Halo lanes are only ever
        # read under a select mask (never fed to arithmetic unmasked).
        pad_ref[0:n_in - out1, halo:halo + L] = yin[out1:n_in]
        pad_ref[n_in - out1:n_in - out1 + cin, halo:halo + L] = x

        # ---- 8-row-aligned slab im2col for the 3x3 and 5x5 taps -------------
        # one masked lane-shifted read of pad_ref + one full-tile store each.
        for s, (a, g, dy, dx) in enumerate(slabs):
            start = halo + dy * W + dx
            v = pad_ref[a:a + g, start:start + L]
            m = border_mask(dy, dx)
            if m is not None:
                v = jnp.where(m, v, 0.0)       # select, NOT multiply-by-mask
            cols_ref[slab_row0[s]:slab_row0[s] + g, :] = v

        # ---- branch 4: 3x3 max pool (stride 1, pad 1) on the x rows ---------
        centre = pad_ref[pool_a:pool_a + pool_rows, halo:halo + L]
        mp = centre
        for dy in (-1, 0, 1):
            for dx in (-1, 0, 1):
                if dy == 0 and dx == 0:
                    continue
                start = halo + dy * W + dx
                v = pad_ref[pool_a:pool_a + pool_rows, start:start + L]
                mp = jnp.maximum(mp, jnp.where(border_mask(dy, dx), v, centre))
        cols_ref[pool_row0:pool_row0 + pool_rows, :] = mp

        # ---- one fused block-diagonal matmul: branches 2, 3, 4 ---------------
        y = jnp.dot(wf_ref[...], cols_ref[...],
                    preferred_element_type=jnp.float32)
        y = jnp.maximum(y + bf_ref[...], 0.0)
        o_ref[out1:out1 + y.shape[0], :] = y.astype(o_ref.dtype)

    return kernel


def inception_forward(x_nchw, params, nb=None):
    (w1, b1, wr3, br3, w3, b3, wr5, br5, w5, b5, wp, bp) = params
    N, cin, H, W = x_nchw.shape
    HW = H * W
    out1, red3, out3 = w1.shape[1], wr3.shape[1], w3.shape[3]
    red5, out5, pool = wr5.shape[1], w5.shape[3], wp.shape[1]
    c_total = out1 + out3 + out5 + pool
    nf = out3 + out5 + pool
    n_in = out1 + red3 + red5
    pad_rows = red3 + red5 + cin
    f32 = jnp.float32

    # ---- static "slab" layout of the fused column matrix --------------------
    g3 = min(_round_up(red3, 8), pad_rows)
    a3 = 0
    a5 = (red3 // 8) * 8
    g5 = min(_round_up(red3 + red5 - a5, 8), pad_rows - a5)
    pool_a = ((red3 + red5) // 8) * 8
    pool_rows = pad_rows - pool_a

    slabs, slab_key = [], {}

    def slab_id(a, g, dy, dx):
        key = (a, g, dy, dx)
        if key not in slab_key:
            slab_key[key] = len(slabs)
            slabs.append(key)
        return slab_key[key]

    taps3 = [(slab_id(a3, g3, ky - 1, kx - 1), ky, kx)
             for ky in range(3) for kx in range(3)]
    taps5 = [(slab_id(a5, g5, ky - 2, kx - 2), ky, kx)
             for ky in range(5) for kx in range(5)]
    slab_row0, r = [], 0
    for (_, g, _, _) in slabs:
        slab_row0.append(r)
        r += g
    pool_row0 = r
    kcols = r + pool_rows

    # ---- host-side weight prep ----------------------------------------------
    win = jnp.concatenate([w1, wr3, wr5], axis=1).T.astype(f32)      # (n_in, cin)
    bin_ = jnp.concatenate([b1, br3, br5]).reshape(-1, 1).astype(f32)
    wf = jnp.zeros((nf, kcols), f32)     # block-diagonal branch-2/3/4 weight
    for s, ky, kx in taps3:
        a = slabs[s][0]
        c0 = slab_row0[s] + (0 - a)
        wf = wf.at[0:out3, c0:c0 + red3].set(w3[ky, kx].T.astype(f32))
    for s, ky, kx in taps5:
        a = slabs[s][0]
        c0 = slab_row0[s] + (red3 - a)
        wf = wf.at[out3:out3 + out5, c0:c0 + red5].set(w5[ky, kx].T.astype(f32))
    c0 = pool_row0 + (red3 + red5 - pool_a)
    wf = wf.at[out3 + out5:, c0:c0 + cin].set(wp.T.astype(f32))
    bf = jnp.concatenate([b3, b5, bp]).reshape(-1, 1).astype(f32)

    # ---- batch packing along the lane axis ----------------------------------
    per_image_bytes = (kcols + 2 * c_total + pad_rows + 2 * cin + 16) * HW * 4
    nb_cap = max(1, min(64, (8 * 1024 * 1024) // per_image_bytes))
    if nb is None:
        steps = _cdiv(N, nb_cap)
        if N >= 2:
            steps = max(steps, 2)        # keep both v7x TensorCores busy
        nb = _cdiv(N, steps)
    n_pad = _cdiv(N, nb) * nb
    L = nb * HW

    xp = x_nchw.astype(f32)
    if n_pad != N:
        xp = jnp.concatenate(
            [xp, jnp.zeros((n_pad - N, cin, H, W), f32)], axis=0)
    # (cin, n_pad*HW): channels on sublanes, images x spatial packed on lanes.
    x = xp.reshape(n_pad, cin, HW).transpose(1, 0, 2).reshape(cin, n_pad * HW)

    # per-image-periodic lane indices; constant block index -> DMA'd once.
    lane = jnp.arange(L, dtype=jnp.int32)
    widx = (lane % W).reshape(1, L)
    ploc = (lane % HW).reshape(1, L)

    halo = _round_up(2 * W + 2, 128)     # covers the largest (5x5) shift

    kernel = _make_kernel(W, HW, L, halo, out1, n_in, cin, slabs, slab_row0,
                          pool_a, pool_rows, pool_row0)

    def const_spec(shape):
        nd = len(shape)
        return pl.BlockSpec(shape, lambda n, _nd=nd: (0,) * _nd)

    in_specs = [
        const_spec(widx.shape), const_spec(ploc.shape),
        pl.BlockSpec((cin, L), lambda n: (0, n)),
        const_spec(win.shape), const_spec(bin_.shape),
        const_spec(wf.shape), const_spec(bf.shape),
    ]

    out = pl.pallas_call(
        kernel,
        out_shape=jax.ShapeDtypeStruct((c_total, n_pad * HW), f32),
        grid_spec=pltpu.PrefetchScalarGridSpec(
            num_scalar_prefetch=0,
            grid=(n_pad // nb,),
            in_specs=in_specs,
            out_specs=pl.BlockSpec((c_total, L), lambda n: (0, n)),
            scratch_shapes=[
                pltpu.VMEM((pad_rows, L + 2 * halo), f32),   # [r3; r5; x] + halo
                pltpu.VMEM((kcols, L), f32),                 # fused column matrix
            ]),
        compiler_params=pltpu.CompilerParams(
            dimension_semantics=("parallel",),
            vmem_limit_bytes=32 * 1024 * 1024),
    )(widx, ploc, x, win, bin_, wf, bf)

    # channels-major, spatial-last output: reshape straight back to NCHW.
    out = out.reshape(c_total, n_pad, H, W).transpose(1, 0, 2, 3)
    return out[:N]


def inception_reference(x_nchw, params):
    """Pure-JAX reference (NHWC convs via lax) for a correctness check."""
    w1, b1, wr3, br3, w3, b3, wr5, br5, w5, b5, wp, bp = params
    x = jnp.transpose(x_nchw, (0, 2, 3, 1)).astype(jnp.float32)
    dn = ('NHWC', 'HWIO', 'NHWC')

    def conv1x1_relu(inp, w, b):
        return jnp.maximum(jnp.einsum('nhwc,co->nhwo', inp, w) + b, 0.0)

    b1o = conv1x1_relu(x, w1, b1)
    r3 = conv1x1_relu(x, wr3, br3)
    b2o = jnp.maximum(lax.conv_general_dilated(r3, w3, (1, 1), 'SAME',
                                               dimension_numbers=dn) + b3, 0.0)
    r5 = conv1x1_relu(x, wr5, br5)
    b3o = jnp.maximum(lax.conv_general_dilated(r5, w5, (1, 1), 'SAME',
                                               dimension_numbers=dn) + b5, 0.0)
    mp = lax.reduce_window(x, -jnp.inf, lax.max, (1, 3, 3, 1), (1, 1, 1, 1),
                           [(0, 0), (1, 1), (1, 1), (0, 0)])
    b4o = conv1x1_relu(mp, wp, bp)
    out = jnp.concatenate([b1o, b2o, b3o, b4o], axis=-1)
    return jnp.transpose(out, (0, 3, 1, 2))


if __name__ == "__main__":
    # InceptionModule(in_channels=4, out_1x1=8, red_3x3=4, out_3x3=8,
    #                 red_5x5=4, out_5x5=8, pool_proj=8), batch 4, 16x16.
    in_ch, out_1x1, red_3x3, out_3x3, red_5x5, out_5x5, pool_proj = 4, 8, 4, 8, 4, 8, 8
    N, H, W = 4, 16, 16

    key = jax.random.PRNGKey(0)
    ks = jax.random.split(key, 13)

    def init(k, shape, fan_in):
        return jax.random.normal(k, shape, jnp.float32) / jnp.sqrt(float(fan_in))

    params = (
        init(ks[0], (in_ch, out_1x1), in_ch),                init(ks[1], (out_1x1,), in_ch),
        init(ks[2], (in_ch, red_3x3), in_ch),                init(ks[3], (red_3x3,), in_ch),
        init(ks[4], (3, 3, red_3x3, out_3x3), 9 * red_3x3),  init(ks[5], (out_3x3,), 9 * red_3x3),
        init(ks[6], (in_ch, red_5x5), in_ch),                init(ks[7], (red_5x5,), in_ch),
        init(ks[8], (5, 5, red_5x5, out_5x5), 25 * red_5x5), init(ks[9], (out_5x5,), 25 * red_5x5),
        init(ks[10], (in_ch, pool_proj), in_ch),             init(ks[11], (pool_proj,), in_ch),
    )

    x = jax.random.normal(ks[12], (N, in_ch, H, W), jnp.float32)   # NCHW like PyTorch

    out = jax.block_until_ready(inception_forward(x, params))
    ref = jax.block_until_ready(inception_reference(x, params))

    assert out.shape == (N, out_1x1 + out_3x3 + out_5x5 + pool_proj, H, W), out.shape
    assert jnp.allclose(out, ref, atol=1e-4, rtol=1e-4), float(jnp.max(jnp.abs(out - ref)))
    print("KERNEL_OK")
</pallas_src>

<mosaic_0001>
module attributes {stable_mosaic.version = 11 : i64} {
  func.func @kernel(%arg0: i32, %arg1: memref<1x512xi32, #tpu.memory_space<vmem>>, %arg2: memref<1x512xi32, #tpu.memory_space<vmem>>, %arg3: memref<4x512xf32, #tpu.memory_space<vmem>>, %arg4: memref<16x4xf32, #tpu.memory_space<vmem>>, %arg5: memref<16x1xf32, #tpu.memory_space<vmem>>, %arg6: memref<24x204xf32, #tpu.memory_space<vmem>>, %arg7: memref<24x1xf32, #tpu.memory_space<vmem>>, %arg8: memref<32x512xf32, #tpu.memory_space<vmem>>, %arg9: memref<12x768xf32, #tpu.memory_space<vmem>>, %arg10: memref<204x512xf32, #tpu.memory_space<vmem>>) attributes {dimension_semantics = [#tpu.dimension_semantics<parallel>], iteration_bounds = array<i64: 2>, scalar_prefetch = 0 : i64, scratch_operands = 2 : i64, tpu.core_type = #tpu.core_type<tc>, window_params = [{pipeline_mode = #tpu.pipeline_mode<synchronous>, transform_indices = @transform_0, window_bounds = array<i64: 1, 512>}, {pipeline_mode = #tpu.pipeline_mode<synchronous>, transform_indices = @transform_1, window_bounds = array<i64: 1, 512>}, {transform_indices = @transform_2, window_bounds = array<i64: 4, 512>}, {pipeline_mode = #tpu.pipeline_mode<synchronous>, transform_indices = @transform_3, window_bounds = array<i64: 16, 4>}, {pipeline_mode = #tpu.pipeline_mode<synchronous>, transform_indices = @transform_4, window_bounds = array<i64: 16, 1>}, {pipeline_mode = #tpu.pipeline_mode<synchronous>, transform_indices = @transform_5, window_bounds = array<i64: 24, 204>}, {pipeline_mode = #tpu.pipeline_mode<synchronous>, transform_indices = @transform_6, window_bounds = array<i64: 24, 1>}, {transform_indices = @transform_7, window_bounds = array<i64: 32, 512>}]} {
    %c0 = arith.constant 0 : index
    %c0_0 = arith.constant 0 : index
    %0 = vector.load %arg1[%c0, %c0_0] : memref<1x512xi32, #tpu.memory_space<vmem>>, vector<1x512xi32>
    %c0_1 = arith.constant 0 : index
    %c0_2 = arith.constant 0 : index
    %1 = vector.load %arg2[%c0_1, %c0_2] : memref<1x512xi32, #tpu.memory_space<vmem>>, vector<1x512xi32>
    %c0_3 = arith.constant 0 : index
    %c0_4 = arith.constant 0 : index
    %2 = vector.load %arg3[%c0_3, %c0_4] : memref<4x512xf32, #tpu.memory_space<vmem>>, vector<4x512xf32>
    %c0_5 = arith.constant 0 : index
    %c0_6 = arith.constant 0 : index
    %3 = vector.load %arg4[%c0_5, %c0_6] : memref<16x4xf32, #tpu.memory_space<vmem>>, vector<16x4xf32>
    %cst = arith.constant dense<0.000000e+00> : vector<16x512xf32>
    %4 = tpu.matmul %3, %2, %cst {dimension_numbers = #tpu.dot_dimension_numbers<[1], [0], [0], [1], [0, 0, 1, 1], [], []>} : vector<16x4xf32>, vector<4x512xf32>, vector<16x512xf32> -> vector<16x512xf32>
    %c0_7 = arith.constant 0 : index
    %c0_8 = arith.constant 0 : index
    %5 = vector.load %arg5[%c0_7, %c0_8] : memref<16x1xf32, #tpu.memory_space<vmem>>, vector<16x1xf32>
    %6 = vector.broadcast %5 : vector<16x1xf32> to vector<16x512xf32>
    %7 = arith.addf %4, %6 : vector<16x512xf32>
    %cst_9 = arith.constant 0.000000e+00 : f32
    %8 = vector.broadcast %cst_9 : f32 to vector<16x512xf32>
    %9 = arith.maximumf %7, %8 : vector<16x512xf32>
    %10 = vector.extract_strided_slice %9 {offsets = [0, 0], sizes = [8, 512], strides = [1, 1]} : vector<16x512xf32> to vector<8x512xf32>
    %c0_10 = arith.constant 0 : index
    %c0_11 = arith.constant 0 : index
    %11 = vector.load %arg8[%c0_10, %c0_11] : memref<32x512xf32, #tpu.memory_space<vmem>>, vector<8x512xf32>
    tpu.vector_store %arg8[%c0_10, %c0_11], %10 {strides = array<i32>} : memref<32x512xf32, #tpu.memory_space<vmem>>, vector<8x512xf32>,
    %12 = vector.extract_strided_slice %9 {offsets = [8, 0], sizes = [8, 512], strides = [1, 1]} : vector<16x512xf32> to vector<8x512xf32>
    %c0_12 = arith.constant 0 : index
    %c128 = arith.constant 128 : index
    %13 = vector.load %arg9[%c0_12, %c128] : memref<12x768xf32, #tpu.memory_space<vmem>>, vector<8x512xf32>
    tpu.vector_store %arg9[%c0_12, %c128], %12 {strides = array<i32>} : memref<12x768xf32, #tpu.memory_space<vmem>>, vector<8x512xf32>,
    %c8 = arith.constant 8 : index
    %c128_13 = arith.constant 128 : index
    %14 = vector.load %arg9[%c8, %c128_13] : memref<12x768xf32, #tpu.memory_space<vmem>>, vector<4x512xf32>
    tpu.vector_store %arg9[%c8, %c128_13], %2 {strides = array<i32>} : memref<12x768xf32, #tpu.memory_space<vmem>>, vector<4x512xf32>,
    %c0_14 = arith.constant 0 : index
    %c111 = arith.constant 111 : index
    %15 = vector.load %arg9[%c0_14, %c111] : memref<12x768xf32, #tpu.memory_space<vmem>>, vector<8x512xf32>
    %c1_i32 = arith.constant 1 : i32
    %16 = vector.broadcast %c1_i32 : i32 to vector<1x512xi32>
    %17 = arith.cmpi sge, %0, %16 : vector<1x512xi32>
    %c16_i32 = arith.constant 16 : i32
    %18 = vector.broadcast %c16_i32 : i32 to vector<1x512xi32>
    %19 = arith.cmpi sge, %1, %18 : vector<1x512xi32>
    %20 = arith.andi %17, %19 : vector<1x512xi1>
    %cst_15 = arith.constant 0.000000e+00 : f32
    %21 = vector.shape_cast %20 : vector<1x512xi1> to vector<1x512xi1>
    %22 = vector.broadcast %21 : vector<1x512xi1> to vector<8x512xi1>
    %23 = vector.broadcast %cst_15 : f32 to vector<8x512xf32>
    %24 = arith.select %22, %15, %23 : vector<8x512xi1>, vector<8x512xf32>
    %c0_16 = arith.constant 0 : index
    %c0_17 = arith.constant 0 : index
    %25 = vector.load %arg10[%c0_16, %c0_17] : memref<204x512xf32, #tpu.memory_space<vmem>>, vector<8x512xf32>
    tpu.vector_store %arg10[%c0_16, %c0_17], %24 {strides = array<i32>} : memref<204x512xf32, #tpu.memory_space<vmem>>, vector<8x512xf32>,
    %c0_18 = arith.constant 0 : index
    %c112 = arith.constant 112 : index
    %26 = vector.load %arg9[%c0_18, %c112] : memref<12x768xf32, #tpu.memory_space<vmem>>, vector<8x512xf32>
    %c16_i32_19 = arith.constant 16 : i32
    %27 = vector.broadcast %c16_i32_19 : i32 to vector<1x512xi32>
    %28 = arith.cmpi sge, %1, %27 : vector<1x512xi32>
    %cst_20 = arith.constant 0.000000e+00 : f32
    %29 = vector.shape_cast %28 : vector<1x512xi1> to vector<1x512xi1>
    %30 = vector.broadcast %29 : vector<1x512xi1> to vector<8x512xi1>
    %31 = vector.broadcast %cst_20 : f32 to vector<8x512xf32>
    %32 = arith.select %30, %26, %31 : vector<8x512xi1>, vector<8x512xf32>
    %c8_21 = arith.constant 8 : index
    %c0_22 = arith.constant 0 : index
    %33 = vector.load %arg10[%c8_21, %c0_22] : memref<204x512xf32, #tpu.memory_space<vmem>>, vector<8x512xf32>
    tpu.vector_store %arg10[%c8_21, %c0_22], %32 {strides = array<i32>} : memref<204x512xf32, #tpu.memory_space<vmem>>, vector<8x512xf32>,
    %c0_23 = arith.constant 0 : index
    %c113 = arith.constant 113 : index
    %34 = vector.load %arg9[%c0_23, %c113] : memref<12x768xf32, #tpu.memory_space<vmem>>, vector<8x512xf32>
    %c15_i32 = arith.constant 15 : i32
    %35 = vector.broadcast %c15_i32 : i32 to vector<1x512xi32>
    %36 = arith.cmpi slt, %0, %35 : vector<1x512xi32>
    %c16_i32_24 = arith.constant 16 : i32
    %37 = vector.broadcast %c16_i32_24 : i32 to vector<1x512xi32>
    %38 = arith.cmpi sge, %1, %37 : vector<1x512xi32>
    %39 = arith.andi %36, %38 : vector<1x512xi1>
    %cst_25 = arith.constant 0.000000e+00 : f32
    %40 = vector.shape_cast %39 : vector<1x512xi1> to vector<1x512xi1>
    %41 = vector.broadcast %40 : vector<1x512xi1> to vector<8x512xi1>
    %42 = vector.broadcast %cst_25 : f32 to vector<8x512xf32>
    %43 = arith.select %41, %34, %42 : vector<8x512xi1>, vector<8x512xf32>
    %c16 = arith.constant 16 : index
    %c0_26 = arith.constant 0 : index
    %44 = vector.load %arg10[%c16, %c0_26] : memref<204x512xf32, #tpu.memory_space<vmem>>, vector<8x512xf32>
    tpu.vector_store %arg10[%c16, %c0_26], %43 {strides = array<i32>} : memref<204x512xf32, #tpu.memory_space<vmem>>, vector<8x512xf32>,
    %c0_27 = arith.constant 0 : index
    %c127 = arith.constant 127 : index
    %45 = vector.load %arg9[%c0_27, %c127] : memref<12x768xf32, #tpu.memory_space<vmem>>, vector<8x512xf32>
    %c1_i32_28 = arith.constant 1 : i32
    %46 = vector.broadcast %c1_i32_28 : i32 to vector<1x512xi32>
    %47 = arith.cmpi sge, %0, %46 : vector<1x512xi32>
    %cst_29 = arith.constant 0.000000e+00 : f32
    %48 = vector.shape_cast %47 : vector<1x512xi1> to vector<1x512xi1>
    %49 = vector.broadcast %48 : vector<1x512xi1> to vector<8x512xi1>
    %50 = vector.broadcast %cst_29 : f32 to vector<8x512xf32>
    %51 = arith.select %49, %45, %50 : vector<8x512xi1>, vector<8x512xf32>
    %c24 = arith.constant 24 : index
    %c0_30 = arith.constant 0 : index
    %52 = vector.load %arg10[%c24, %c0_30] : memref<204x512xf32, #tpu.memory_space<vmem>>, vector<8x512xf32>
    tpu.vector_store %arg10[%c24, %c0_30], %51 {strides = array<i32>} : memref<204x512xf32, #tpu.memory_space<vmem>>, vector<8x512xf32>,
    %c0_31 = arith.constant 0 : index
    %c128_32 = arith.constant 128 : index
    %53 = vector.load %arg9[%c0_31, %c128_32] : memref<12x768xf32, #tpu.memory_space<vmem>>, vector<8x512xf32>
    %c32 = arith.constant 32 : index
    %c0_33 = arith.constant 0 : index
    %54 = vector.load %arg10[%c32, %c0_33] : memref<204x512xf32, #tpu.memory_space<vmem>>, vector<8x512xf32>
    tpu.vector_store %arg10[%c32, %c0_33], %53 {strides = array<i32>} : memref<204x512xf32, #tpu.memory_space<vmem>>, vector<8x512xf32>,
    %c0_34 = arith.constant 0 : index
    %c129 = arith.constant 129 : index
    %55 = vector.load %arg9[%c0_34, %c129] : memref<12x768xf32, #tpu.memory_space<vmem>>, vector<8x512xf32>
    %c15_i32_35 = arith.constant 15 : i32
    %56 = vector.broadcast %c15_i32_35 : i32 to vector<1x512xi32>
    %57 = arith.cmpi slt, %0, %56 : vector<1x512xi32>
    %cst_36 = arith.constant 0.000000e+00 : f32
    %58 = vector.shape_cast %57 : vector<1x512xi1> to vector<1x512xi1>
    %59 = vector.broadcast %58 : vector<1x512xi1> to vector<8x512xi1>
    %60 = vector.broadcast %cst_36 : f32 to vector<8x512xf32>
    %61 = arith.select %59, %55, %60 : vector<8x512xi1>, vector<8x512xf32>
    %c40 = arith.constant 40 : index
    %c0_37 = arith.constant 0 : index
    %62 = vector.load %arg10[%c40, %c0_37] : memref<204x512xf32, #tpu.memory_space<vmem>>, vector<8x512xf32>
    tpu.vector_store %arg10[%c40, %c0_37], %61 {strides = array<i32>} : memref<204x512xf32, #tpu.memory_space<vmem>>, vector<8x512xf32>,
    %c0_38 = arith.constant 0 : index
    %c143 = arith.constant 143 : index
    %63 = vector.load %arg9[%c0_38, %c143] : memref<12x768xf32, #tpu.memory_space<vmem>>, vector<8x512xf32>
    %c1_i32_39 = arith.constant 1 : i32
    %64 = vector.broadcast %c1_i32_39 : i32 to vector<1x512xi32>
    %65 = arith.cmpi sge, %0, %64 : vector<1x512xi32>
    %c240_i32 = arith.constant 240 : i32
    %66 = vector.broadcast %c240_i32 : i32 to vector<1x512xi32>
    %67 = arith.cmpi slt, %1, %66 : vector<1x512xi32>
    %68 = arith.andi %65, %67 : vector<1x512xi1>
    %cst_40 = arith.constant 0.000000e+00 : f32
    %69 = vector.shape_cast %68 : vector<1x512xi1> to vector<1x512xi1>
    %70 = vector.broadcast %69 : vector<1x512xi1> to vector<8x512xi1>
    %71 = vector.broadcast %cst_40 : f32 to vector<8x512xf32>
    %72 = arith.select %70, %63, %71 : vector<8x512xi1>, vector<8x512xf32>
    %c48 = arith.constant 48 : index
    %c0_41 = arith.constant 0 : index
    %73 = vector.load %arg10[%c48, %c0_41] : memref<204x512xf32, #tpu.memory_space<vmem>>, vector<8x512xf32>
    tpu.vector_store %arg10[%c48, %c0_41], %72 {strides = array<i32>} : memref<204x512xf32, #tpu.memory_space<vmem>>, vector<8x512xf32>,
    %c0_42 = arith.constant 0 : index
    %c144 = arith.constant 144 : index
    %74 = vector.load %arg9[%c0_42, %c144] : memref<12x768xf32, #tpu.memory_space<vmem>>, vector<8x512xf32>
    %c240_i32_43 = arith.constant 240 : i32
    %75 = vector.broadcast %c240_i32_43 : i32 to vector<1x512xi32>
    %76 = arith.cmpi slt, %1, %75 : vector<1x512xi32>
    %cst_44 = arith.constant 0.000000e+00 : f32
    %77 = vector.shape_cast %76 : vector<1x512xi1> to vector<1x512xi1>
    %78 = vector.broadcast %77 : vector<1x512xi1> to vector<8x512xi1>
    %79 = vector.broadcast %cst_44 : f32 to vector<8x512xf32>
    %80 = arith.select %78, %74, %79 : vector<8x512xi1>, vector<8x512xf32>
    %c56 = arith.constant 56 : index
    %c0_45 = arith.constant 0 : index
    %81 = vector.load %arg10[%c56, %c0_45] : memref<204x512xf32, #tpu.memory_space<vmem>>, vector<8x512xf32>
    tpu.vector_store %arg10[%c56, %c0_45], %80 {strides = array<i32>} : memref<204x512xf32, #tpu.memory_space<vmem>>, vector<8x512xf32>,
    %c0_46 = arith.constant 0 : index
    %c145 = arith.constant 145 : index
    %82 = vector.load %arg9[%c0_46, %c145] : memref<12x768xf32, #tpu.memory_space<vmem>>, vector<8x512xf32>
    %c15_i32_47 = arith.constant 15 : i32
    %83 = vector.broadcast %c15_i32_47 : i32 to vector<1x512xi32>
    %84 = arith.cmpi slt, %0, %83 : vector<1x512xi32>
    %c240_i32_48 = arith.constant 240 : i32
    %85 = vector.broadcast %c240_i32_48 : i32 to vector<1x512xi32>
    %86 = arith.cmpi slt, %1, %85 : vector<1x512xi32>
    %87 = arith.andi %84, %86 : vector<1x512xi1>
    %cst_49 = arith.constant 0.000000e+00 : f32
    %88 = vector.shape_cast %87 : vector<1x512xi1> to vector<1x512xi1>
    %89 = vector.broadcast %88 : vector<1x512xi1> to vector<8x512xi1>
    %90 = vector.broadcast %cst_49 : f32 to vector<8x512xf32>
    %91 = arith.select %89, %82, %90 : vector<8x512xi1>, vector<8x512xf32>
    %c64 = arith.constant 64 : index
    %c0_50 = arith.constant 0 : index
    %92 = vector.load %arg10[%c64, %c0_50] : memref<204x512xf32, #tpu.memory_space<vmem>>, vector<8x512xf32>
    tpu.vector_store %arg10[%c64, %c0_50], %91 {strides = array<i32>} : memref<204x512xf32, #tpu.memory_space<vmem>>, vector<8x512xf32>,
    %c0_51 = arith.constant 0 : index
    %c94 = arith.constant 94 : index
    %93 = vector.load %arg9[%c0_51, %c94] : memref<12x768xf32, #tpu.memory_space<vmem>>, vector<8x512xf32>
    %c2_i32 = arith.constant 2 : i32
    %94 = vector.broadcast %c2_i32 : i32 to vector<1x512xi32>
    %95 = arith.cmpi sge, %0, %94 : vector<1x512xi32>
    %c32_i32 = arith.constant 32 : i32
    %96 = vector.broadcast %c32_i32 : i32 to vector<1x512xi32>
    %97 = arith.cmpi sge, %1, %96 : vector<1x512xi32>
    %98 = arith.andi %95, %97 : vector<1x512xi1>
    %cst_52 = arith.constant 0.000000e+00 : f32
    %99 = vector.shape_cast %98 : vector<1x512xi1> to vector<1x512xi1>
    %100 = vector.broadcast %99 : vector<1x512xi1> to vector<8x512xi1>
    %101 = vector.broadcast %cst_52 : f32 to vector<8x512xf32>
    %102 = arith.select %100, %93, %101 : vector<8x512xi1>, vector<8x512xf32>
    %c72 = arith.constant 72 : index
    %c0_53 = arith.constant 0 : index
    %103 = vector.load %arg10[%c72, %c0_53] : memref<204x512xf32, #tpu.memory_space<vmem>>, vector<8x512xf32>
    tpu.vector_store %arg10[%c72, %c0_53], %102 {strides = array<i32>} : memref<204x512xf32, #tpu.memory_space<vmem>>, vector<8x512xf32>,
    %c0_54 = arith.constant 0 : index
    %c95 = arith.constant 95 : index
    %104 = vector.load %arg9[%c0_54, %c95] : memref<12x768xf32, #tpu.memory_space<vmem>>, vector<8x512xf32>
    %c1_i32_55 = arith.constant 1 : i32
    %105 = vector.broadcast %c1_i32_55 : i32 to vector<1x512xi32>
    %106 = arith.cmpi sge, %0, %105 : vector<1x512xi32>
    %c32_i32_56 = arith.constant 32 : i32
    %107 = vector.broadcast %c32_i32_56 : i32 to vector<1x512xi32>
    %108 = arith.cmpi sge, %1, %107 : vector<1x512xi32>
    %109 = arith.andi %106, %108 : vector<1x512xi1>
    %cst_57 = arith.constant 0.000000e+00 : f32
    %110 = vector.shape_cast %109 : vector<1x512xi1> to vector<1x512xi1>
    %111 = vector.broadcast %110 : vector<1x512xi1> to vector<8x512xi1>
    %112 = vector.broadcast %cst_57 : f32 to vector<8x512xf32>
    %113 = arith.select %111, %104, %112 : vector<8x512xi1>, vector<8x512xf32>
    %c80 = arith.constant 80 : index
    %c0_58 = arith.constant 0 : index
    %114 = vector.load %arg10[%c80, %c0_58] : memref<204x512xf32, #tpu.memory_space<vmem>>, vector<8x512xf32>
    tpu.vector_store %arg10[%c80, %c0_58], %113 {strides = array<i32>} : memref<204x512xf32, #tpu.memory_space<vmem>>, vector<8x512xf32>,
    %c0_59 = arith.constant 0 : index
    %c96 = arith.constant 96 : index
    %115 = vector.load %arg9[%c0_59, %c96] : memref<12x768xf32, #tpu.memory_space<vmem>>, vector<8x512xf32>
    %c32_i32_60 = arith.constant 32 : i32
    %116 = vector.broadcast %c32_i32_60 : i32 to vector<1x512xi32>
    %117 = arith.cmpi sge, %1, %116 : vector<1x512xi32>
    %cst_61 = arith.constant 0.000000e+00 : f32
    %118 = vector.shape_cast %117 : vector<1x512xi1> to vector<1x512xi1>
    %119 = vector.broadcast %118 : vector<1x512xi1> to vector<8x512xi1>
    %120 = vector.broadcast %cst_61 : f32 to vector<8x512xf32>
    %121 = arith.select %119, %115, %120 : vector<8x512xi1>, vector<8x512xf32>
    %c88 = arith.constant 88 : index
    %c0_62 = arith.constant 0 : index
    %122 = vector.load %arg10[%c88, %c0_62] : memref<204x512xf32, #tpu.memory_space<vmem>>, vector<8x512xf32>
    tpu.vector_store %arg10[%c88, %c0_62], %121 {strides = array<i32>} : memref<204x512xf32, #tpu.memory_space<vmem>>, vector<8x512xf32>,
    %c0_63 = arith.constant 0 : index
    %c97 = arith.constant 97 : index
    %123 = vector.load %arg9[%c0_63, %c97] : memref<12x768xf32, #tpu.memory_space<vmem>>, vector<8x512xf32>
    %c15_i32_64 = arith.constant 15 : i32
    %124 = vector.broadcast %c15_i32_64 : i32 to vector<1x512xi32>
    %125 = arith.cmpi slt, %0, %124 : vector<1x512xi32>
    %c32_i32_65 = arith.constant 32 : i32
    %126 = vector.broadcast %c32_i32_65 : i32 to vector<1x512xi32>
    %127 = arith.cmpi sge, %1, %126 : vector<1x512xi32>
    %128 = arith.andi %125, %127 : vector<1x512xi1>
    %cst_66 = arith.constant 0.000000e+00 : f32
    %129 = vector.shape_cast %128 : vector<1x512xi1> to vector<1x512xi1>
    %130 = vector.broadcast %129 : vector<1x512xi1> to vector<8x512xi1>
    %131 = vector.broadcast %cst_66 : f32 to vector<8x512xf32>
    %132 = arith.select %130, %123, %131 : vector<8x512xi1>, vector<8x512xf32>
    %c96_67 = arith.constant 96 : index
    %c0_68 = arith.constant 0 : index
    %133 = vector.load %arg10[%c96_67, %c0_68] : memref<204x512xf32, #tpu.memory_space<vmem>>, vector<8x512xf32>
    tpu.vector_store %arg10[%c96_67, %c0_68], %132 {strides = array<i32>} : memref<204x512xf32, #tpu.memory_space<vmem>>, vector<8x512xf32>,
    %c0_69 = arith.constant 0 : index
    %c98 = arith.constant 98 : index
    %134 = vector.load %arg9[%c0_69, %c98] : memref<12x768xf32, #tpu.memory_space<vmem>>, vector<8x512xf32>
    %c14_i32 = arith.constant 14 : i32
    %135 = vector.broadcast %c14_i32 : i32 to vector<1x512xi32>
    %136 = arith.cmpi slt, %0, %135 : vector<1x512xi32>
    %c32_i32_70 = arith.constant 32 : i32
    %137 = vector.broadcast %c32_i32_70 : i32 to vector<1x512xi32>
    %138 = arith.cmpi sge, %1, %137 : vector<1x512xi32>
    %139 = arith.andi %136, %138 : vector<1x512xi1>
    %cst_71 = arith.constant 0.000000e+00 : f32
    %140 = vector.shape_cast %139 : vector<1x512xi1> to vector<1x512xi1>
    %141 = vector.broadcast %140 : vector<1x512xi1> to vector<8x512xi1>
    %142 = vector.broadcast %cst_71 : f32 to vector<8x512xf32>
    %143 = arith.select %141, %134, %142 : vector<8x512xi1>, vector<8x512xf32>
    %c104 = arith.constant 104 : index
    %c0_72 = arith.constant 0 : index
    %144 = vector.load %arg10[%c104, %c0_72] : memref<204x512xf32, #tpu.memory_space<vmem>>, vector<8x512xf32>
    tpu.vector_store %arg10[%c104, %c0_72], %143 {strides = array<i32>} : memref<204x512xf32, #tpu.memory_space<vmem>>, vector<8x512xf32>,
    %c0_73 = arith.constant 0 : index
    %c110 = arith.constant 110 : index
    %145 = vector.load %arg9[%c0_73, %c110] : memref<12x768xf32, #tpu.memory_space<vmem>>, vector<8x512xf32>
    %c2_i32_74 = arith.constant 2 : i32
    %146 = vector.broadcast %c2_i32_74 : i32 to vector<1x512xi32>
    %147 = arith.cmpi sge, %0, %146 : vector<1x512xi32>
    %c16_i32_75 = arith.constant 16 : i32
    %148 = vector.broadcast %c16_i32_75 : i32 to vector<1x512xi32>
    %149 = arith.cmpi sge, %1, %148 : vector<1x512xi32>
    %150 = arith.andi %147, %149 : vector<1x512xi1>
    %cst_76 = arith.constant 0.000000e+00 : f32
    %151 = vector.shape_cast %150 : vector<1x512xi1> to vector<1x512xi1>
    %152 = vector.broadcast %151 : vector<1x512xi1> to vector<8x512xi1>
    %153 = vector.broadcast %cst_76 : f32 to vector<8x512xf32>
    %154 = arith.select %152, %145, %153 : vector<8x512xi1>, vector<8x512xf32>
    %c112_77 = arith.constant 112 : index
    %c0_78 = arith.constant 0 : index
    %155 = vector.load %arg10[%c112_77, %c0_78] : memref<204x512xf32, #tpu.memory_space<vmem>>, vector<8x512xf32>
    tpu.vector_store %arg10[%c112_77, %c0_78], %154 {strides = array<i32>} : memref<204x512xf32, #tpu.memory_space<vmem>>, vector<8x512xf32>,
    %c0_79 = arith.constant 0 : index
    %c114 = arith.constant 114 : index
    %156 = vector.load %arg9[%c0_79, %c114] : memref<12x768xf32, #tpu.memory_space<vmem>>, vector<8x512xf32>
    %c14_i32_80 = arith.constant 14 : i32
    %157 = vector.broadcast %c14_i32_80 : i32 to vector<1x512xi32>
    %158 = arith.cmpi slt, %0, %157 : vector<1x512xi32>
    %c16_i32_81 = arith.constant 16 : i32
    %159 = vector.broadcast %c16_i32_81 : i32 to vector<1x512xi32>
    %160 = arith.cmpi sge, %1, %159 : vector<1x512xi32>
    %161 = arith.andi %158, %160 : vector<1x512xi1>
    %cst_82 = arith.constant 0.000000e+00 : f32
    %162 = vector.shape_cast %161 : vector<1x512xi1> to vector<1x512xi1>
    %163 = vector.broadcast %162 : vector<1x512xi1> to vector<8x512xi1>
    %164 = vector.broadcast %cst_82 : f32 to vector<8x512xf32>
    %165 = arith.select %163, %156, %164 : vector<8x512xi1>, vector<8x512xf32>
    %c120 = arith.constant 120 : index
    %c0_83 = arith.constant 0 : index
    %166 = vector.load %arg10[%c120, %c0_83] : memref<204x512xf32, #tpu.memory_space<vmem>>, vector<8x512xf32>
    tpu.vector_store %arg10[%c120, %c0_83], %165 {strides = array<i32>} : memref<204x512xf32, #tpu.memory_space<vmem>>, vector<8x512xf32>,
    %c0_84 = arith.constant 0 : index
    %c126 = arith.constant 126 : index
    %167 = vector.load %arg9[%c0_84, %c126] : memref<12x768xf32, #tpu.memory_space<vmem>>, vector<8x512xf32>
    %c2_i32_85 = arith.constant 2 : i32
    %168 = vector.broadcast %c2_i32_85 : i32 to vector<1x512xi32>
    %169 = arith.cmpi sge, %0, %168 : vector<1x512xi32>
    %cst_86 = arith.constant 0.000000e+00 : f32
    %170 = vector.shape_cast %169 : vector<1x512xi1> to vector<1x512xi1>
    %171 = vector.broadcast %170 : vector<1x512xi1> to vector<8x512xi1>
    %172 = vector.broadcast %cst_86 : f32 to vector<8x512xf32>
    %173 = arith.select %171, %167, %172 : vector<8x512xi1>, vector<8x512xf32>
    %c128_87 = arith.constant 128 : index
    %c0_88 = arith.constant 0 : index
    %174 = vector.load %arg10[%c128_87, %c0_88] : memref<204x512xf32, #tpu.memory_space<vmem>>, vector<8x512xf32>
    tpu.vector_store %arg10[%c128_87, %c0_88], %173 {strides = array<i32>} : memref<204x512xf32, #tpu.memory_space<vmem>>, vector<8x512xf32>,
    %c0_89 = arith.constant 0 : index
    %c130 = arith.constant 130 : index
    %175 = vector.load %arg9[%c0_89, %c130] : memref<12x768xf32, #tpu.memory_space<vmem>>, vector<8x512xf32>
    %c14_i32_90 = arith.constant 14 : i32
    %176 = vector.broadcast %c14_i32_90 : i32 to vector<1x512xi32>
    %177 = arith.cmpi slt, %0, %176 : vector<1x512xi32>
    %cst_91 = arith.constant 0.000000e+00 : f32
    %178 = vector.shape_cast %177 : vector<1x512xi1> to vector<1x512xi1>
    %179 = vector.broadcast %178 : vector<1x512xi1> to vector<8x512xi1>
    %180 = vector.broadcast %cst_91 : f32 to vector<8x512xf32>
    %181 = arith.select %179, %175, %180 : vector<8x512xi1>, vector<8x512xf32>
    %c136 = arith.constant 136 : index
    %c0_92 = arith.constant 0 : index
    %182 = vector.load %arg10[%c136, %c0_92] : memref<204x512xf32, #tpu.memory_space<vmem>>, vector<8x512xf32>
    tpu.vector_store %arg10[%c136, %c0_92], %181 {strides = array<i32>} : memref<204x512xf32, #tpu.memory_space<vmem>>, vector<8x512xf32>,
    %c0_93 = arith.constant 0 : index
    %c142 = arith.constant 142 : index
    %183 = vector.load %arg9[%c0_93, %c142] : memref<12x768xf32, #tpu.memory_space<vmem>>, vector<8x512xf32>
    %c2_i32_94 = arith.constant 2 : i32
    %184 = vector.broadcast %c2_i32_94 : i32 to vector<1x512xi32>
    %185 = arith.cmpi sge, %0, %184 : vector<1x512xi32>
    %c240_i32_95 = arith.constant 240 : i32
    %186 = vector.broadcast %c240_i32_95 : i32 to vector<1x512xi32>
    %187 = arith.cmpi slt, %1, %186 : vector<1x512xi32>
    %188 = arith.andi %185, %187 : vector<1x512xi1>
    %cst_96 = arith.constant 0.000000e+00 : f32
    %189 = vector.shape_cast %188 : vector<1x512xi1> to vector<1x512xi1>
    %190 = vector.broadcast %189 : vector<1x512xi1> to vector<8x512xi1>
    %191 = vector.broadcast %cst_96 : f32 to vector<8x512xf32>
    %192 = arith.select %190, %183, %191 : vector<8x512xi1>, vector<8x512xf32>
    %c144_97 = arith.constant 144 : index
    %c0_98 = arith.constant 0 : index
    %193 = vector.load %arg10[%c144_97, %c0_98] : memref<204x512xf32, #tpu.memory_space<vmem>>, vector<8x512xf32>
    tpu.vector_store %arg10[%c144_97, %c0_98], %192 {strides = array<i32>} : memref<204x512xf32, #tpu.memory_space<vmem>>, vector<8x512xf32>,
    %c0_99 = arith.constant 0 : index
    %c146 = arith.constant 146 : index
    %194 = vector.load %arg9[%c0_99, %c146] : memref<12x768xf32, #tpu.memory_space<vmem>>, vector<8x512xf32>
    %c14_i32_100 = arith.constant 14 : i32
    %195 = vector.broadcast %c14_i32_100 : i32 to vector<1x512xi32>
    %196 = arith.cmpi slt, %0, %195 : vector<1x512xi32>
    %c240_i32_101 = arith.constant 240 : i32
    %197 = vector.broadcast %c240_i32_101 : i32 to vector<1x512xi32>
    %198 = arith.cmpi slt, %1, %197 : vector<1x512xi32>
    %199 = arith.andi %196, %198 : vector<1x512xi1>
    %cst_102 = arith.constant 0.000000e+00 : f32
    %200 = vector.shape_cast %199 : vector<1x512xi1> to vector<1x512xi1>
    %201 = vector.broadcast %200 : vector<1x512xi1> to vector<8x512xi1>
    %202 = vector.broadcast %cst_102 : f32 to vector<8x512xf32>
    %203 = arith.select %201, %194, %202 : vector<8x512xi1>, vector<8x512xf32>
    %c152 = arith.constant 152 : index
    %c0_103 = arith.constant 0 : index
    %204 = vector.load %arg10[%c152, %c0_103] : memref<204x512xf32, #tpu.memory_space<vmem>>, vector<8x512xf32>
    tpu.vector_store %arg10[%c152, %c0_103], %203 {strides = array<i32>} : memref<204x512xf32, #tpu.memory_space<vmem>>, vector<8x512xf32>,
    %c0_104 = arith.constant 0 : index
    %c158 = arith.constant 158 : index
    %205 = vector.load %arg9[%c0_104, %c158] : memref<12x768xf32, #tpu.memory_space<vmem>>, vector<8x512xf32>
    %c2_i32_105 = arith.constant 2 : i32
    %206 = vector.broadcast %c2_i32_105 : i32 to vector<1x512xi32>
    %207 = arith.cmpi sge, %0, %206 : vector<1x512xi32>
    %c224_i32 = arith.constant 224 : i32
    %208 = vector.broadcast %c224_i32 : i32 to vector<1x512xi32>
    %209 = arith.cmpi slt, %1, %208 : vector<1x512xi32>
    %210 = arith.andi %207, %209 : vector<1x512xi1>
    %cst_106 = arith.constant 0.000000e+00 : f32
    %211 = vector.shape_cast %210 : vector<1x512xi1> to vector<1x512xi1>
    %212 = vector.broadcast %211 : vector<1x512xi1> to vector<8x512xi1>
    %213 = vector.broadcast %cst_106 : f32 to vector<8x512xf32>
    %214 = arith.select %212, %205, %213 : vector<8x512xi1>, vector<8x512xf32>
    %c160 = arith.constant 160 : index
    %c0_107 = arith.constant 0 : index
    %215 = vector.load %arg10[%c160, %c0_107] : memref<204x512xf32, #tpu.memory_space<vmem>>, vector<8x512xf32>
    tpu.vector_store %arg10[%c160, %c0_107], %214 {strides = array<i32>} : memref<204x512xf32, #tpu.memory_space<vmem>>, vector<8x512xf32>,
    %c0_108 = arith.constant 0 : index
    %c159 = arith.constant 159 : index
    %216 = vector.load %arg9[%c0_108, %c159] : memref<12x768xf32, #tpu.memory_space<vmem>>, vector<8x512xf32>
    %c1_i32_109 = arith.constant 1 : i32
    %217 = vector.broadcast %c1_i32_109 : i32 to vector<1x512xi32>
    %218 = arith.cmpi sge, %0, %217 : vector<1x512xi32>
    %c224_i32_110 = arith.constant 224 : i32
    %219 = vector.broadcast %c224_i32_110 : i32 to vector<1x512xi32>
    %220 = arith.cmpi slt, %1, %219 : vector<1x512xi32>
    %221 = arith.andi %218, %220 : vector<1x512xi1>
    %cst_111 = arith.constant 0.000000e+00 : f32
    %222 = vector.shape_cast %221 : vector<1x512xi1> to vector<1x512xi1>
    %223 = vector.broadcast %222 : vector<1x512xi1> to vector<8x512xi1>
    %224 = vector.broadcast %cst_111 : f32 to vector<8x512xf32>
    %225 = arith.select %223, %216, %224 : vector<8x512xi1>, vector<8x512xf32>
    %c168 = arith.constant 168 : index
    %c0_112 = arith.constant 0 : index
    %226 = vector.load %arg10[%c168, %c0_112] : memref<204x512xf32, #tpu.memory_space<vmem>>, vector<8x512xf32>
    tpu.vector_store %arg10[%c168, %c0_112], %225 {strides = array<i32>} : memref<204x512xf32, #tpu.memory_space<vmem>>, vector<8x512xf32>,
    %c0_113 = arith.constant 0 : index
    %c160_114 = arith.constant 160 : index
    %227 = vector.load %arg9[%c0_113, %c160_114] : memref<12x768xf32, #tpu.memory_space<vmem>>, vector<8x512xf32>
    %c224_i32_115 = arith.constant 224 : i32
    %228 = vector.broadcast %c224_i32_115 : i32 to vector<1x512xi32>
    %229 = arith.cmpi slt, %1, %228 : vector<1x512xi32>
    %cst_116 = arith.constant 0.000000e+00 : f32
    %230 = vector.shape_cast %229 : vector<1x512xi1> to vector<1x512xi1>
    %231 = vector.broadcast %230 : vector<1x512xi1> to vector<8x512xi1>
    %232 = vector.broadcast %cst_116 : f32 to vector<8x512xf32>
    %233 = arith.select %231, %227, %232 : vector<8x512xi1>, vector<8x512xf32>
    %c176 = arith.constant 176 : index
    %c0_117 = arith.constant 0 : index
    %234 = vector.load %arg10[%c176, %c0_117] : memref<204x512xf32, #tpu.memory_space<vmem>>, vector<8x512xf32>
    tpu.vector_store %arg10[%c176, %c0_117], %233 {strides = array<i32>} : memref<204x512xf32, #tpu.memory_space<vmem>>, vector<8x512xf32>,
    %c0_118 = arith.constant 0 : index
    %c161 = arith.constant 161 : index
    %235 = vector.load %arg9[%c0_118, %c161] : memref<12x768xf32, #tpu.memory_space<vmem>>, vector<8x512xf32>
    %c15_i32_119 = arith.constant 15 : i32
    %236 = vector.broadcast %c15_i32_119 : i32 to vector<1x512xi32>
    %237 = arith.cmpi slt, %0, %236 : vector<1x512xi32>
    %c224_i32_120 = arith.constant 224 : i32
    %238 = vector.broadcast %c224_i32_120 : i32 to vector<1x512xi32>
    %239 = arith.cmpi slt, %1, %238 : vector<1x512xi32>
    %240 = arith.andi %237, %239 : vector<1x512xi1>
    %cst_121 = arith.constant 0.000000e+00 : f32
    %241 = vector.shape_cast %240 : vector<1x512xi1> to vector<1x512xi1>
    %242 = vector.broadcast %241 : vector<1x512xi1> to vector<8x512xi1>
    %243 = vector.broadcast %cst_121 : f32 to vector<8x512xf32>
    %244 = arith.select %242, %235, %243 : vector<8x512xi1>, vector<8x512xf32>
    %c184 = arith.constant 184 : index
    %c0_122 = arith.constant 0 : index
    %245 = vector.load %arg10[%c184, %c0_122] : memref<204x512xf32, #tpu.memory_space<vmem>>, vector<8x512xf32>
    tpu.vector_store %arg10[%c184, %c0_122], %244 {strides = array<i32>} : memref<204x512xf32, #tpu.memory_space<vmem>>, vector<8x512xf32>,
    %c0_123 = arith.constant 0 : index
    %c162 = arith.constant 162 : index
    %246 = vector.load %arg9[%c0_123, %c162] : memref<12x768xf32, #tpu.memory_space<vmem>>, vector<8x512xf32>
    %c14_i32_124 = arith.constant 14 : i32
    %247 = vector.broadcast %c14_i32_124 : i32 to vector<1x512xi32>
    %248 = arith.cmpi slt, %0, %247 : vector<1x512xi32>
    %c224_i32_125 = arith.constant 224 : i32
    %249 = vector.broadcast %c224_i32_125 : i32 to vector<1x512xi32>
    %250 = arith.cmpi slt, %1, %249 : vector<1x512xi32>
    %251 = arith.andi %248, %250 : vector<1x512xi1>
    %cst_126 = arith.constant 0.000000e+00 : f32
    %252 = vector.shape_cast %251 : vector<1x512xi1> to vector<1x512xi1>
    %253 = vector.broadcast %252 : vector<1x512xi1> to vector<8x512xi1>
    %254 = vector.broadcast %cst_126 : f32 to vector<8x512xf32>
    %255 = arith.select %253, %246, %254 : vector<8x512xi1>, vector<8x512xf32>
    %c192 = arith.constant 192 : index
    %c0_127 = arith.constant 0 : index
    %256 = vector.load %arg10[%c192, %c0_127] : memref<204x512xf32, #tpu.memory_space<vmem>>, vector<8x512xf32>
    tpu.vector_store %arg10[%c192, %c0_127], %255 {strides = array<i32>} : memref<204x512xf32, #tpu.memory_space<vmem>>, vector<8x512xf32>,
    %c8_128 = arith.constant 8 : index
    %c128_129 = arith.constant 128 : index
    %257 = vector.load %arg9[%c8_128, %c128_129] : memref<12x768xf32, #tpu.memory_space<vmem>>, vector<4x512xf32>
    %c8_130 = arith.constant 8 : index
    %c111_131 = arith.constant 111 : index
    %258 = vector.load %arg9[%c8_130, %c111_131] : memref<12x768xf32, #tpu.memory_space<vmem>>, vector<4x512xf32>
    %c1_i32_132 = arith.constant 1 : i32
    %259 = vector.broadcast %c1_i32_132 : i32 to vector<1x512xi32>
    %260 = arith.cmpi sge, %0, %259 : vector<1x512xi32>
    %c16_i32_133 = arith.constant 16 : i32
    %261 = vector.broadcast %c16_i32_133 : i32 to vector<1x512xi32>
    %262 = arith.cmpi sge, %1, %261 : vector<1x512xi32>
    %263 = arith.andi %260, %262 : vector<1x512xi1>
    %264 = vector.shape_cast %263 : vector<1x512xi1> to vector<1x512xi1>
    %265 = vector.broadcast %264 : vector<1x512xi1> to vector<4x512xi1>
    %266 = arith.select %265, %258, %257 : vector<4x512xi1>, vector<4x512xf32>
    %267 = arith.maximumf %257, %266 : vector<4x512xf32>
    %c8_134 = arith.constant 8 : index
    %c112_135 = arith.constant 112 : index
    %268 = vector.load %arg9[%c8_134, %c112_135] : memref<12x768xf32, #tpu.memory_space<vmem>>, vector<4x512xf32>
    %c16_i32_136 = arith.constant 16 : i32
    %269 = vector.broadcast %c16_i32_136 : i32 to vector<1x512xi32>
    %270 = arith.cmpi sge, %1, %269 : vector<1x512xi32>
    %271 = vector.shape_cast %270 : vector<1x512xi1> to vector<1x512xi1>
    %272 = vector.broadcast %271 : vector<1x512xi1> to vector<4x512xi1>
    %273 = arith.select %272, %268, %257 : vector<4x512xi1>, vector<4x512xf32>
    %274 = arith.maximumf %267, %273 : vector<4x512xf32>
    %c8_137 = arith.constant 8 : index
    %c113_138 = arith.constant 113 : index
    %275 = vector.load %arg9[%c8_137, %c113_138] : memref<12x768xf32, #tpu.memory_space<vmem>>, vector<4x512xf32>
    %c15_i32_139 = arith.constant 15 : i32
    %276 = vector.broadcast %c15_i32_139 : i32 to vector<1x512xi32>
    %277 = arith.cmpi slt, %0, %276 : vector<1x512xi32>
    %c16_i32_140 = arith.constant 16 : i32
    %278 = vector.broadcast %c16_i32_140 : i32 to vector<1x512xi32>
    %279 = arith.cmpi sge, %1, %278 : vector<1x512xi32>
    %280 = arith.andi %277, %279 : vector<1x512xi1>
    %281 = vector.shape_cast %280 : vector<1x512xi1> to vector<1x512xi1>
    %282 = vector.broadcast %281 : vector<1x512xi1> to vector<4x512xi1>
    %283 = arith.select %282, %275, %257 : vector<4x512xi1>, vector<4x512xf32>
    %284 = arith.maximumf %274, %283 : vector<4x512xf32>
    %c8_141 = arith.constant 8 : index
    %c127_142 = arith.constant 127 : index
    %285 = vector.load %arg9[%c8_141, %c127_142] : memref<12x768xf32, #tpu.memory_space<vmem>>, vector<4x512xf32>
    %c1_i32_143 = arith.constant 1 : i32
    %286 = vector.broadcast %c1_i32_143 : i32 to vector<1x512xi32>
    %287 = arith.cmpi sge, %0, %286 : vector<1x512xi32>
    %288 = vector.shape_cast %287 : vector<1x512xi1> to vector<1x512xi1>
    %289 = vector.broadcast %288 : vector<1x512xi1> to vector<4x512xi1>
    %290 = arith.select %289, %285, %257 : vector<4x512xi1>, vector<4x512xf32>
    %291 = arith.maximumf %284, %290 : vector<4x512xf32>
    %c8_144 = arith.constant 8 : index
    %c129_145 = arith.constant 129 : index
    %292 = vector.load %arg9[%c8_144, %c129_145] : memref<12x768xf32, #tpu.memory_space<vmem>>, vector<4x512xf32>
    %c15_i32_146 = arith.constant 15 : i32
    %293 = vector.broadcast %c15_i32_146 : i32 to vector<1x512xi32>
    %294 = arith.cmpi slt, %0, %293 : vector<1x512xi32>
    %295 = vector.shape_cast %294 : vector<1x512xi1> to vector<1x512xi1>
    %296 = vector.broadcast %295 : vector<1x512xi1> to vector<4x512xi1>
    %297 = arith.select %296, %292, %257 : vector<4x512xi1>, vector<4x512xf32>
    %298 = arith.maximumf %291, %297 : vector<4x512xf32>
    %c8_147 = arith.constant 8 : index
    %c143_148 = arith.constant 143 : index
    %299 = vector.load %arg9[%c8_147, %c143_148] : memref<12x768xf32, #tpu.memory_space<vmem>>, vector<4x512xf32>
    %c1_i32_149 = arith.constant 1 : i32
    %300 = vector.broadcast %c1_i32_149 : i32 to vector<1x512xi32>
    %301 = arith.cmpi sge, %0, %300 : vector<1x512xi32>
    %c240_i32_150 = arith.constant 240 : i32
    %302 = vector.broadcast %c240_i32_150 : i32 to vector<1x512xi32>
    %303 = arith.cmpi slt, %1, %302 : vector<1x512xi32>
    %304 = arith.andi %301, %303 : vector<1x512xi1>
    %305 = vector.shape_cast %304 : vector<1x512xi1> to vector<1x512xi1>
    %306 = vector.broadcast %305 : vector<1x512xi1> to vector<4x512xi1>
    %307 = arith.select %306, %299, %257 : vector<4x512xi1>, vector<4x512xf32>
    %308 = arith.maximumf %298, %307 : vector<4x512xf32>
    %c8_151 = arith.constant 8 : index
    %c144_152 = arith.constant 144 : index
    %309 = vector.load %arg9[%c8_151, %c144_152] : memref<12x768xf32, #tpu.memory_space<vmem>>, vector<4x512xf32>
    %c240_i32_153 = arith.constant 240 : i32
    %310 = vector.broadcast %c240_i32_153 : i32 to vector<1x512xi32>
    %311 = arith.cmpi slt, %1, %310 : vector<1x512xi32>
    %312 = vector.shape_cast %311 : vector<1x512xi1> to vector<1x512xi1>
    %313 = vector.broadcast %312 : vector<1x512xi1> to vector<4x512xi1>
    %314 = arith.select %313, %309, %257 : vector<4x512xi1>, vector<4x512xf32>
    %315 = arith.maximumf %308, %314 : vector<4x512xf32>
    %c8_154 = arith.constant 8 : index
    %c145_155 = arith.constant 145 : index
    %316 = vector.load %arg9[%c8_154, %c145_155] : memref<12x768xf32, #tpu.memory_space<vmem>>, vector<4x512xf32>
    %c15_i32_156 = arith.constant 15 : i32
    %317 = vector.broadcast %c15_i32_156 : i32 to vector<1x512xi32>
    %318 = arith.cmpi slt, %0, %317 : vector<1x512xi32>
    %c240_i32_157 = arith.constant 240 : i32
    %319 = vector.broadcast %c240_i32_157 : i32 to vector<1x512xi32>
    %320 = arith.cmpi slt, %1, %319 : vector<1x512xi32>
    %321 = arith.andi %318, %320 : vector<1x512xi1>
    %322 = vector.shape_cast %321 : vector<1x512xi1> to vector<1x512xi1>
    %323 = vector.broadcast %322 : vector<1x512xi1> to vector<4x512xi1>
    %324 = arith.select %323, %316, %257 : vector<4x512xi1>, vector<4x512xf32>
    %325 = arith.maximumf %315, %324 : vector<4x512xf32>
    %c200 = arith.constant 200 : index
    %c0_158 = arith.constant 0 : index
    %326 = vector.load %arg10[%c200, %c0_158] : memref<204x512xf32, #tpu.memory_space<vmem>>, vector<4x512xf32>
    tpu.vector_store %arg10[%c200, %c0_158], %325 {strides = array<i32>} : memref<204x512xf32, #tpu.memory_space<vmem>>, vector<4x512xf32>,
    %c0_159 = arith.constant 0 : index
    %c0_160 = arith.constant 0 : index
    %327 = vector.load %arg6[%c0_159, %c0_160] : memref<24x204xf32, #tpu.memory_space<vmem>>, vector<24x204xf32>
    %c0_161 = arith.constant 0 : index
    %c0_162 = arith.constant 0 : index
    %328 = vector.load %arg10[%c0_161, %c0_162] : memref<204x512xf32, #tpu.memory_space<vmem>>, vector<204x512xf32>
    %cst_163 = arith.constant dense<0.000000e+00> : vector<24x512xf32>
    %329 = tpu.matmul %327, %328, %cst_163 {dimension_numbers = #tpu.dot_dimension_numbers<[1], [0], [0], [1], [0, 0, 1, 1], [], []>} : vector<24x204xf32>, vector<204x512xf32>, vector<24x512xf32> -> vector<24x512xf32>
    %c0_164 = arith.constant 0 : index
    %c0_165 = arith.constant 0 : index
    %330 = vector.load %arg7[%c0_164, %c0_165] : memref<24x1xf32, #tpu.memory_space<vmem>>, vector<24x1xf32>
    %331 = vector.broadcast %330 : vector<24x1xf32> to vector<24x512xf32>
    %332 = arith.addf %329, %331 : vector<24x512xf32>
    %cst_166 = arith.constant 0.000000e+00 : f32
    %333 = vector.broadcast %cst_166 : f32 to vector<24x512xf32>
    %334 = arith.maximumf %332, %333 : vector<24x512xf32>
    %c8_167 = arith.constant 8 : index
    %c0_168 = arith.constant 0 : index
    %335 = vector.load %arg8[%c8_167, %c0_168] : memref<32x512xf32, #tpu.memory_space<vmem>>, vector<24x512xf32>
    tpu.vector_store %arg8[%c8_167, %c0_168], %334 {strides = array<i32>} : memref<32x512xf32, #tpu.memory_space<vmem>>, vector<24x512xf32>,
    return
  }
  func.func @transform_0(%arg0: i32) -> (i32, i32) {
    %c0_i32 = arith.constant 0 : i32
    %c0_i32_0 = arith.constant 0 : i32
    %c0_i32_1 = arith.constant 0 : i32
    return %c0_i32, %c0_i32_0 : i32, i32
  }
  func.func @transform_1(%arg0: i32) -> (i32, i32) {
    %c0_i32 = arith.constant 0 : i32
    %c0_i32_0 = arith.constant 0 : i32
    %c0_i32_1 = arith.constant 0 : i32
    return %c0_i32, %c0_i32_0 : i32, i32
  }
  func.func @transform_2(%arg0: i32) -> (i32, i32) {
    %c0_i32 = arith.constant 0 : i32
    %c0_i32_0 = arith.constant 0 : i32
    return %c0_i32, %arg0 : i32, i32
  }
  func.func @transform_3(%arg0: i32) -> (i32, i32) {
    %c0_i32 = arith.constant 0 : i32
    %c0_i32_0 = arith.constant 0 : i32
    %c0_i32_1 = arith.constant 0 : i32
    return %c0_i32, %c0_i32_0 : i32, i32
  }
  func.func @transform_4(%arg0: i32) -> (i32, i32) {
    %c0_i32 = arith.constant 0 : i32
    %c0_i32_0 = arith.constant 0 : i32
    %c0_i32_1 = arith.constant 0 : i32
    return %c0_i32, %c0_i32_0 : i32, i32
  }
  func.func @transform_5(%arg0: i32) -> (i32, i32) {
    %c0_i32 = arith.constant 0 : i32
    %c0_i32_0 = arith.constant 0 : i32
    %c0_i32_1 = arith.constant 0 : i32
    return %c0_i32, %c0_i32_0 : i32, i32
  }
  func.func @transform_6(%arg0: i32) -> (i32, i32) {
    %c0_i32 = arith.constant 0 : i32
    %c0_i32_0 = arith.constant 0 : i32
    %c0_i32_1 = arith.constant 0 : i32
    return %c0_i32, %c0_i32_0 : i32, i32
  }
  func.func @transform_7(%arg0: i32) -> (i32, i32) {
    %c0_i32 = arith.constant 0 : i32
    %c0_i32_0 = arith.constant 0 : i32
    return %c0_i32, %arg0 : i32, i32
  }
}

</mosaic_0001>

<llo_original>
// kernel: tpu_custom_call.1
$region0: #{tpu_custom_call.1}
  #allocation0 [shape = 'u32[]', space=smem, size = 0x4, offset = 0x4, fixed_abs, tag = 'smem constant byte address 0x4 - core index']
  #allocation1 [shape = 'u32[144,128]{1,0:T(1,128)}', space=vmem, size = 0x12000, scoped, tag = 'internal scratch']
  #allocation2 [shape = 'f32[12,768]{1,0:T(8,128)}', space=vmem, size = 0xc000, scoped, tag = 'scratch operand']
  #allocation3 [shape = 'f32[204,512]{1,0:T(8,128)}', space=vmem, size = 0x68000, scoped, tag = 'scratch operand']
  %s0 = inlined_call_operand.hbm [shape: s32[1,512], index: 0, kind: input, shape index: {}]
  %s1 = inlined_call_operand.hbm [shape: s32[1,512], index: 1, kind: input, shape index: {}]
  %s2 = inlined_call_operand.vmem [shape: f32[4,1024], index: 2, kind: input, shape index: {}]
  %s3 = inlined_call_operand.vmem [shape: f32[16,4], index: 3, kind: input, shape index: {}]
  %s4 = inlined_call_operand.vmem [shape: f32[16,1], index: 4, kind: input, shape index: {}]
  %s5 = inlined_call_operand.vmem [shape: f32[24,204], index: 5, kind: input, shape index: {}]
  %s6 = inlined_call_operand.vmem [shape: f32[24,1], index: 6, kind: input, shape index: {}]
  %s7 = inlined_call_operand.hbm [shape: f32[32,1024], index: 7, kind: output, shape index: {}]
  %s8 = sld [smem:[#allocation0]]
  $region69: #{tpu_custom_call.1} parent=0
    _
  %s10 = ssub.s32 1, %s8
  %s11 = scalar_select 0, %s10, %s8
  $region1: #{tpu_custom_call.1} parent=0
    #allocation4 [shape = 'u8[2048]{0}', space=vmem, size = 0x800, scoped, tag = 'input window, operand 0, single buffered']
    #allocation5 [shape = 's32[2]{0}', space=sflag, size = 0x8, scoped, tag = 'scoped memory for tpu_custom_call.1']
    #allocation6 [shape = 's32[2]{0}', space=sflag, size = 0x8, scoped, tag = 'scoped memory for tpu_custom_call.1']
    #allocation7 [shape = 'u8[2048]{0}', space=vmem, size = 0x800, scoped, tag = 'input window, operand 1, single buffered']
    #allocation8 [shape = 's32[1]{0}', space=sflag, size = 0x4, scoped, tag = 'scoped memory for tpu_custom_call.1']
    #allocation9 [shape = 'u8[131072]{0}', space=vmem, size = 0x20000, scoped, tag = 'output window, operand 0']
    %12 = vsyncpa [#allocation5], 0
    %13 = vsyncpa [#allocation8], 0
    %14 = vsyncpa [#allocation6], 0
    %s15 = scalar_lea.sflag [#allocation6], 1
    %16 = vsyncpa %s15, 0
    loop: start=0, step=1, limit=4
    $region2: #{tpu_custom_call.1} parent=1 // loop_pre_header
      _
    $region3: #{tpu_custom_call.1} parent=1 // loop_header
      %s18 = sphi 0, %s22
      %p19 = scmp.ge.s32.totalorder %s18, 4
      %s26 = sphi 0, %s26
      %s28 = sphi 0, %s26
      %s29 = sphi 0, %s28
      %s43 = sphi 0, %s29
      %s47 = sphi 0, %s47
      %s49 = sphi 0, %s47
      %s50 = sphi 0, %s49
      %s64 = sphi 0, %s50
      %s70 = sphi 0, %s72
      %s73 = sphi 0, %s70
      %s74 = sphi 0, %s73
      %s90 = sphi 0, %s74
      %s94 = sphi 0, %s94
      %s96 = sphi 0, %s94
      %s97 = sphi 0, %s96
      %s111 = sphi 0, %s97
      %s115 = sphi 0, %s115
      %s117 = sphi 0, %s115
      %s118 = sphi 0, %s117
      %s132 = sphi 0, %s118
      %s136 = sphi 0, %s136
      %s138 = sphi 0, %s136
      %s139 = sphi 0, %s138
      %s153 = sphi 0, %s139
      %s157 = sphi 0, %s157
      %s159 = sphi 0, %s157
      %s160 = sphi 0, %s159
      %s174 = sphi 0, %s160
      %s180 = sphi 0, %s182
      %s183 = sphi 0, %s180
      %s184 = sphi 0, %s183
      %s200 = sphi 0, %s184
    $region4: #{tpu_custom_call.1} parent=1 // loop_header_branch
      %21 = sbr.rel (%p19) target = $region8
    $region5: #{tpu_custom_call.1} parent=1 // loop_body
      %s23 = ssub.s32 %s18, 1
      %s24 = ssub.s32 %s18, 2
      %s25 = sadd.s32 %s18, 1
      %s27 = sadd.s32 %s26, 1
      %p30 = scmp.eq.s32.totalorder %s18, 1
      %p31 = scmp.ne.s32.totalorder %s26, %s28
      %p32 = scmp.eq.s32.totalorder %s18, 0
      %p33 = por %p31, %p32
      %p34 = scmp.ne.s32.totalorder %s26, %s28
      %p35 = scmp.eq.s32.totalorder %s23, 1
      %p36 = por %p34, %p35
      %p37 = scmp.ne.s32.totalorder %s28, %s29
      %p38 = scmp.eq.s32.totalorder %s23, 0
      %p39 = por %p37, %p38
      %p40 = scmp.ne.s32.totalorder %s28, %s29
      %p41 = scmp.eq.s32.totalorder %s24, 1
      %p42 = por %p40, %p41
      %p44 = scmp.ne.s32.totalorder %s29, %s43
      %p45 = scmp.eq.s32.totalorder %s24, 0
      %p46 = por %p44, %p45
      %s48 = sadd.s32 %s47, 1
      %p51 = scmp.eq.s32.totalorder %s18, 1
      %p52 = scmp.ne.s32.totalorder %s47, %s49
      %p53 = scmp.eq.s32.totalorder %s18, 0
      %p54 = por %p52, %p53
      %p55 = scmp.ne.s32.totalorder %s47, %s49
      %p56 = scmp.eq.s32.totalorder %s23, 1
      %p57 = por %p55, %p56
      %p58 = scmp.ne.s32.totalorder %s49, %s50
      %p59 = scmp.eq.s32.totalorder %s23, 0
      %p60 = por %p58, %p59
      %p61 = scmp.ne.s32.totalorder %s49, %s50
      %p62 = scmp.eq.s32.totalorder %s24, 1
      %p63 = por %p61, %p62
      %p65 = scmp.ne.s32.totalorder %s50, %s64
      %p66 = scmp.eq.s32.totalorder %s24, 0
      %p67 = por %p65, %p66
      %s68 = ssub.s32 %s18, %s25
      %p69 = scmp.eq.s32.totalorder %s68, 0
      %s71 = sadd.s32 %s70, 1
      %s72 = scalar_select %p69, %s70, %s71
      %p75 = pneg %p69
      %p76 = scmp.eq.s32.totalorder %s18, 1
      %p77 = por %p75, %p76
      %p78 = scmp.ne.s32.totalorder %s70, %s73
      %p79 = scmp.eq.s32.totalorder %s18, 0
      %p80 = por %p78, %p79
      %p81 = scmp.ne.s32.totalorder %s70, %s73
      %p82 = scmp.eq.s32.totalorder %s23, 1
      %p83 = por %p81, %p82
      %p84 = scmp.ne.s32.totalorder %s73, %s74
      %p85 = scmp.eq.s32.totalorder %s23, 0
      %p86 = por %p84, %p85
      %p87 = scmp.ne.s32.totalorder %s73, %s74
      %p88 = scmp.eq.s32.totalorder %s24, 1
      %p89 = por %p87, %p88
      %p91 = scmp.ne.s32.totalorder %s74, %s90
      %p92 = scmp.eq.s32.totalorder %s24, 0
      %p93 = por %p91, %p92
      %s95 = sadd.s32 %s94, 1
      %p98 = scmp.eq.s32.totalorder %s18, 1
      %p99 = scmp.ne.s32.totalorder %s94, %s96
      %p100 = scmp.eq.s32.totalorder %s18, 0
      %p101 = por %p99, %p100
      %p102 = scmp.ne.s32.totalorder %s94, %s96
      %p103 = scmp.eq.s32.totalorder %s23, 1
      %p104 = por %p102, %p103
      %p105 = scmp.ne.s32.totalorder %s96, %s97
      %p106 = scmp.eq.s32.totalorder %s23, 0
      %p107 = por %p105, %p106
      %p108 = scmp.ne.s32.totalorder %s96, %s97
      %p109 = scmp.eq.s32.totalorder %s24, 1
      %p110 = por %p108, %p109
      %p112 = scmp.ne.s32.totalorder %s97, %s111
      %p113 = scmp.eq.s32.totalorder %s24, 0
      %p114 = por %p112, %p113
      %s116 = sadd.s32 %s115, 1
      %p119 = scmp.eq.s32.totalorder %s18, 1
      %p120 = scmp.ne.s32.totalorder %s115, %s117
      %p121 = scmp.eq.s32.totalorder %s18, 0
      %p122 = por %p120, %p121
      %p123 = scmp.ne.s32.totalorder %s115, %s117
      %p124 = scmp.eq.s32.totalorder %s23, 1
      %p125 = por %p123, %p124
      %p126 = scmp.ne.s32.totalorder %s117, %s118
      %p127 = scmp.eq.s32.totalorder %s23, 0
      %p128 = por %p126, %p127
      %p129 = scmp.ne.s32.totalorder %s117, %s118
      %p130 = scmp.eq.s32.totalorder %s24, 1
      %p131 = por %p129, %p130
      %p133 = scmp.ne.s32.totalorder %s118, %s132
      %p134 = scmp.eq.s32.totalorder %s24, 0
      %p135 = por %p133, %p134
      %s137 = sadd.s32 %s136, 1
      %p140 = scmp.eq.s32.totalorder %s18, 1
      %p141 = scmp.ne.s32.totalorder %s136, %s138
      %p142 = scmp.eq.s32.totalorder %s18, 0
      %p143 = por %p141, %p142
      %p144 = scmp.ne.s32.totalorder %s136, %s138
      %p145 = scmp.eq.s32.totalorder %s23, 1
      %p146 = por %p144, %p145
      %p147 = scmp.ne.s32.totalorder %s138, %s139
      %p148 = scmp.eq.s32.totalorder %s23, 0
      %p149 = por %p147, %p148
      %p150 = scmp.ne.s32.totalorder %s138, %s139
      %p151 = scmp.eq.s32.totalorder %s24, 1
      %p152 = por %p150, %p151
      %p154 = scmp.ne.s32.totalorder %s139, %s153
      %p155 = scmp.eq.s32.totalorder %s24, 0
      %p156 = por %p154, %p155
      %s158 = sadd.s32 %s157, 1
      %p161 = scmp.eq.s32.totalorder %s18, 1
      %p162 = scmp.ne.s32.totalorder %s157, %s159
      %p163 = scmp.eq.s32.totalorder %s18, 0
      %p164 = por %p162, %p163
      %p165 = scmp.ne.s32.totalorder %s157, %s159
      %p166 = scmp.eq.s32.totalorder %s23, 1
      %p167 = por %p165, %p166
      %p168 = scmp.ne.s32.totalorder %s159, %s160
      %p169 = scmp.eq.s32.totalorder %s23, 0
      %p170 = por %p168, %p169
      %p171 = scmp.ne.s32.totalorder %s159, %s160
      %p172 = scmp.eq.s32.totalorder %s24, 1
      %p173 = por %p171, %p172
      %p175 = scmp.ne.s32.totalorder %s160, %s174
      %p176 = scmp.eq.s32.totalorder %s24, 0
      %p177 = por %p175, %p176
      %s178 = ssub.s32 %s18, %s25
      %p179 = scmp.eq.s32.totalorder %s178, 0
      %s181 = sadd.s32 %s180, 1
      %s182 = scalar_select %p179, %s180, %s181
      %p185 = pneg %p179
      %p186 = scmp.eq.s32.totalorder %s18, 1
      %p187 = por %p185, %p186
      %p188 = scmp.ne.s32.totalorder %s180, %s183
      %p189 = scmp.eq.s32.totalorder %s18, 0
      %p190 = por %p188, %p189
      %p191 = scmp.ne.s32.totalorder %s180, %s183
      %p192 = scmp.eq.s32.totalorder %s23, 1
      %p193 = por %p191, %p192
      %p194 = scmp.ne.s32.totalorder %s183, %s184
      %p195 = scmp.eq.s32.totalorder %s23, 0
      %p196 = por %p194, %p195
      %p197 = scmp.ne.s32.totalorder %s183, %s184
      %p198 = scmp.eq.s32.totalorder %s24, 1
      %p199 = por %p197, %p198
      %p201 = scmp.ne.s32.totalorder %s184, %s200
      %p202 = scmp.eq.s32.totalorder %s24, 0
      %p203 = por %p201, %p202
      %p204 = scmp.le.s32.totalorder 1, %s18
      %p205 = scmp.lt.s32.totalorder %s18, 3
      %p206 = pnand %p204, %p205
      %p207 = pneg %p206
      // Predicated region
      $region9: #{tpu_custom_call.1} parent=5 // pred_check
        _
      $region10: #{tpu_custom_call.1} parent=5 // pred_check_branch
        %209 = sbr.rel (%p206) target = $region12
      $region11: #{tpu_custom_call.1} parent=5 // pred_region
        %s210 = ssub.s32 %s18, 1
        // Predicated region
        $region13: #{tpu_custom_call.1} parent=11 // pred_check
          %p211 = pneg %p39
        $region14: #{tpu_custom_call.1} parent=11 // pred_check_branch
          %213 = sbr.rel (%p211) target = $region16
        $region15: #{tpu_custom_call.1} parent=11 // pred_region
          %s215 = ssub.s32 64, 64
          %216 = vsyncadd [#allocation5], %s215
          %s218 = sshll.u32 [#allocation4], 4
          %s219 = int_to_ptr.vmem [resolvable:$true] %s218
          %221 = dma.hbm_to_vmem [thread:$0]  %s0, 64, %s219, [#allocation5]
        $region16: #{tpu_custom_call.1} parent=11 // pred_fallthru
          _
        // Predicated region
        $region17: #{tpu_custom_call.1} parent=11 // pred_check
          %p222 = pneg %p60
        $region18: #{tpu_custom_call.1} parent=11 // pred_check_branch
          %224 = sbr.rel (%p222) target = $region20
        $region19: #{tpu_custom_call.1} parent=11 // pred_region
          %s226 = ssub.s32 64, 64
          %227 = vsyncadd [#allocation8], %s226
          %s229 = sshll.u32 [#allocation7], 4
          %s230 = int_to_ptr.vmem [resolvable:$true] %s229
          %232 = dma.hbm_to_vmem [thread:$0]  %s1, 64, %s230, [#allocation8]
        $region20: #{tpu_custom_call.1} parent=11 // pred_fallthru
          _
        // Predicated region
        $region21: #{tpu_custom_call.1} parent=11 // pred_check
          %p233 = pneg %p107
        $region22: #{tpu_custom_call.1} parent=11 // pred_check_branch
          %235 = sbr.rel (%p233) target = $region24
        $region23: #{tpu_custom_call.1} parent=11 // pred_region
          _
        $region24: #{tpu_custom_call.1} parent=11 // pred_fallthru
          _
        // Predicated region
        $region25: #{tpu_custom_call.1} parent=11 // pred_check
          %p236 = pneg %p128
        $region26: #{tpu_custom_call.1} parent=11 // pred_check_branch
          %238 = sbr.rel (%p236) target = $region28
        $region27: #{tpu_custom_call.1} parent=11 // pred_region
          _
        $region28: #{tpu_custom_call.1} parent=11 // pred_fallthru
          _
        // Predicated region
        $region29: #{tpu_custom_call.1} parent=11 // pred_check
          %p239 = pneg %p149
        $region30: #{tpu_custom_call.1} parent=11 // pred_check_branch
          %241 = sbr.rel (%p239) target = $region32
        $region31: #{tpu_custom_call.1} parent=11 // pred_region
          _
        $region32: #{tpu_custom_call.1} parent=11 // pred_fallthru
          _
        // Predicated region
        $region33: #{tpu_custom_call.1} parent=11 // pred_check
          %p242 = pneg %p170
        $region34: #{tpu_custom_call.1} parent=11 // pred_check_branch
          %244 = sbr.rel (%p242) target = $region36
        $region35: #{tpu_custom_call.1} parent=11 // pred_region
          _
        $region36: #{tpu_custom_call.1} parent=11 // pred_fallthru
          _
      $region12: #{tpu_custom_call.1} parent=5 // pred_fallthru
        _
      %p245 = scmp.lt.s32.totalorder %s18, 2
      // Predicated region
      $region37: #{tpu_custom_call.1} parent=5 // pred_check
        %p246 = pneg %p245
      $region38: #{tpu_custom_call.1} parent=5 // pred_check_branch
        %248 = sbr.rel (%p246) target = $region40
      $region39: #{tpu_custom_call.1} parent=5 // pred_region
        // Predicated region
        $region41: #{tpu_custom_call.1} parent=39 // pred_check
          %p249 = pneg %p80
        $region42: #{tpu_custom_call.1} parent=39 // pred_check_branch
          %251 = sbr.rel (%p249) target = $region44
        $region43: #{tpu_custom_call.1} parent=39 // pred_region
          %s252 = smul.u32 4, %s18
          %p253 = scmp.lt.s32.totalorder %s252, 7
          %s254 = scalar_select %p253, %s252, 7
          %s255 = smul.addr %s254, 4
          %s256 = scalar_lea.vmem %s2, %s255
          %s257 = smul.u32 4, %s18
        $region44: #{tpu_custom_call.1} parent=39 // pred_fallthru
          _
      $region40: #{tpu_custom_call.1} parent=5 // pred_fallthru
        _
      %p258 = scmp.le.s32.totalorder 1, %s18
      %p259 = scmp.lt.s32.totalorder %s18, 3
      %p260 = pnand %p258, %p259
      %p261 = pneg %p260
      // Predicated region
      $region45: #{tpu_custom_call.1} parent=5 // pred_check
        _
      $region46: #{tpu_custom_call.1} parent=5 // pred_check_branch
        %263 = sbr.rel (%p260) target = $region48
      $region47: #{tpu_custom_call.1} parent=5 // pred_region
        %s264 = ssub.s32 %s18, 1
        // Predicated region
        $region49: #{tpu_custom_call.1} parent=47 // pred_check
          %p265 = pneg %p39
        $region50: #{tpu_custom_call.1} parent=47 // pred_check_branch
          %267 = sbr.rel (%p265) target = $region52
        $region51: #{tpu_custom_call.1} parent=47 // pred_region
          %268 = dma.done [#allocation5], 64
        $region52: #{tpu_custom_call.1} parent=47 // pred_fallthru
          _
        // Predicated region
        $region53: #{tpu_custom_call.1} parent=47 // pred_check
          %p269 = pneg %p60
        $region54: #{tpu_custom_call.1} parent=47 // pred_check_branch
          %271 = sbr.rel (%p269) target = $region56
        $region55: #{tpu_custom_call.1} parent=47 // pred_region
          %272 = dma.done [#allocation8], 64
        $region56: #{tpu_custom_call.1} parent=47 // pred_fallthru
          _
        %p273 = pneg %p39
        %p274 = pneg %p36
        %p275 = pneg %p60
        %p276 = pneg %p57
        %s277 = smul.u32 4, %s23
        %p278 = scmp.lt.s32.totalorder %s277, 7
        %s279 = scalar_select %p278, %s277, 7
        %s280 = smul.addr %s279, 4
        %s281 = scalar_lea.vmem %s2, %s280
        %p282 = pneg %p86
        %p283 = pneg %p83
        %p284 = pneg %p107
        %p285 = pneg %p104
        %p286 = pneg %p128
        %p287 = pneg %p125
        %p288 = pneg %p149
        %p289 = pneg %p146
        %p290 = pneg %p170
        %p291 = pneg %p167
        %p292 = pneg %p196
        %p293 = pneg %p193
        %s294 = sand.u32 %s183, 1
        %s295 = scalar_lea.sflag [#allocation6], %s294
        %s296 = sand.u32 %s183, 1
        %s297 = smul.addr %s296, 128
        %s298 = scalar_lea.vmem [#allocation9], %s297
        %s299 = smul.u32 4, %s23
        %p300 = scmp.lt.s32.totalorder %s299, 7
        %s301 = scalar_select %p300, %s299, 7
        %s302 = smul.addr %s301, 4
        %s303 = scalar_lea.vmem %s2, %s302
        %s304 = smul.u32 4, %s23
        %s305 = smul.u32 4, %s23
        %v306 = vld [vmem:[#allocation4] sm:$0xf]
        %v307 = vld [vmem:[#allocation7] sm:$0xf]
        %v308 = vld [vmem:[%s303] sm:$0xff]
        %v309 = vld [vmem:[%s303 + $0x8] sm:$0xff]
        %v310 = vld [vmem:[%s3] sm:$0xff]
        %v311 = vld [vmem:[%s3 + $0x8] sm:$0xff]
        %v312 = vld [vmem:[%s4] sm:$0xff]
        %v313 = vld [vmem:[%s4 + $0x8] sm:$0xff]
        %315 = vset.pattern.permute.xlu0 0
        %316 = vperm.xlu0 %315, %v312
        %v317 = vpop.permute.xlu0 %316
        %320 = vset.pattern.permute.xlu0 0
        %321 = vperm.xlu0 %320, %v313
        %v322 = vpop.permute.xlu0 %321
        %v326 = vcombine.high %v308, %v308
        %v327 = vcombine.high %v309, %v309
        %vm328 = vcmask 31744
        %v330 = vsel %vm328, %v310, 0
        %v333 = vsel %vm328, %v311, 0
        %vm335 = vcmask 1043456
        %v336 = vsel %vm335, %v308, 0
        %v338 = vsel %vm335, %v326, 0
        %v340 = vsel %vm335, %v309, 0
        %v342 = vsel %vm335, %v327, 0
        %344 = vmatprep.subr.mxu0 %v338
        %345 = vmatpush1.msra.mxu0 %v336
        %346 = vmatprep.subr.mxu0 0.0
        %347 = vmatpush1.msra.mxu0 0.0
        %348 = vmatprep.subr.mxu0 0.0
        %349 = vmatpush1.msra.mxu0 0.0
        %350 = vmatprep.subr.mxu0 0.0
        %351 = vmatpush1.msra.mxu0 0.0
        %352 = vmatprep.subr.mxu0 0.0
        %353 = vmatpush1.msra.mxu0 0.0
        %354 = vmatprep.subr.mxu0 0.0
        %355 = vmatpush1.msra.mxu0 0.0
        %356 = vmatprep.subr.mxu0 0.0
        %357 = vmatpush1.msra.mxu0 0.0
        %358 = vmatprep.subr.mxu0 0.0
        %359 = vmatpush1.msra.mxu0 0.0
        %360 = vmatprep.subr.mxu0 0.0
        %361 = vmatpush1.msra.mxu0 0.0
        %362 = vmatprep.subr.mxu0 0.0
        %363 = vmatpush1.msra.mxu0 0.0
        %364 = vmatprep.subr.mxu0 0.0
        %365 = vmatpush1.msra.mxu0 0.0
        %366 = vmatprep.subr.mxu0 0.0
        %367 = vmatpush1.msra.mxu0 0.0
        %368 = vmatprep.subr.mxu0 0.0
        %369 = vmatpush1.msra.mxu0 0.0
        %370 = vmatprep.subr.mxu0 0.0
        %371 = vmatpush1.msra.mxu0 0.0
        %372 = vmatprep.subr.mxu0 0.0
        %373 = vmatpush1.msra.mxu0 0.0
        %374 = vmatprep.subr.mxu0 0.0
        %375 = vmatpush1.msra.mxu0 0.0
        %376 = vmatprep.subr.mxu0 0.0
        %377 = vmatpush1.msra.mxu0 0.0
        %378 = vmatprep.subr.mxu0 0.0
        %379 = vmatpush1.msra.mxu0 0.0
        %380 = vmatprep.subr.mxu0 0.0
        %381 = vmatpush1.msra.mxu0 0.0
        %382 = vmatprep.subr.mxu0 0.0
        %383 = vmatpush1.msra.mxu0 0.0
        %384 = vmatprep.subr.mxu0 0.0
        %385 = vmatpush1.msra.mxu0 0.0
        %386 = vmatprep.subr.mxu0 0.0
        %387 = vmatpush1.msra.mxu0 0.0
        %388 = vmatprep.subr.mxu0 0.0
        %389 = vmatpush1.msra.mxu0 0.0
        %390 = vmatprep.subr.mxu0 0.0
        %391 = vmatpush1.msra.mxu0 0.0
        %392 = vmatprep.subr.mxu0 0.0
        %393 = vmatpush1.msra.mxu0 0.0
        %394 = vmatprep.subr.mxu0 0.0
        %395 = vmatpush1.msra.mxu0 0.0
        %396 = vmatprep.subr.mxu0 0.0
        %397 = vmatpush1.msra.mxu0 0.0
        %398 = vmatprep.subr.mxu0 0.0
        %399 = vmatpush1.msra.mxu0 0.0
        %400 = vmatprep.subr.mxu0 0.0
        %401 = vmatpush1.msra.mxu0 0.0
        %402 = vmatprep.subr.mxu0 0.0
        %403 = vmatpush1.msra.mxu0 0.0
        %404 = vmatprep.subr.mxu0 0.0
        %405 = vmatpush1.msra.mxu0 0.0
        %406 = vmatprep.subr.mxu0 0.0
        %407 = vmatpush1.msra.mxu0 0.0
        %408 = vmatprep.mubr.f32.mxu0 0.0
        %409 = vmatmul.mubr.f32.gmra.mrb[0].mxu0 %v330
        %v410 = vpop.f32.mrb[0].mxu0
        %v411 = vadd.f32 %v317, %v410
        %v412 = vpop.f32.mrb[0].mxu0
        %v413 = vadd.f32 %v317, %v412
        %414 = vmatprep.mubr.f32.mxu0 0.0
        %415 = vmatmul.mubr.f32.gmra.mrb[0].mxu0 %v333
        %v416 = vpop.f32.mrb[0].mxu0
        %v417 = vadd.f32 %v322, %v416
        %v418 = vpop.f32.mrb[0].mxu0
        %v419 = vadd.f32 %v322, %v418
        %420 = vdwg.mxu0
        %421 = vmatprep.subr.mxu0 %v342
        %422 = vmatpush1.msra.mxu0 %v340
        %423 = vmatprep.subr.mxu0 0.0
        %424 = vmatpush1.msra.mxu0 0.0
        %425 = vmatprep.subr.mxu0 0.0
        %426 = vmatpush1.msra.mxu0 0.0
        %427 = vmatprep.subr.mxu0 0.0
        %428 = vmatpush1.msra.mxu0 0.0
        %429 = vmatprep.subr.mxu0 0.0
        %430 = vmatpush1.msra.mxu0 0.0
        %431 = vmatprep.subr.mxu0 0.0
        %432 = vmatpush1.msra.mxu0 0.0
        %433 = vmatprep.subr.mxu0 0.0
        %434 = vmatpush1.msra.mxu0 0.0
        %435 = vmatprep.subr.mxu0 0.0
        %436 = vmatpush1.msra.mxu0 0.0
        %437 = vmatprep.subr.mxu0 0.0
        %438 = vmatpush1.msra.mxu0 0.0
        %439 = vmatprep.subr.mxu0 0.0
        %440 = vmatpush1.msra.mxu0 0.0
        %441 = vmatprep.subr.mxu0 0.0
        %442 = vmatpush1.msra.mxu0 0.0
        %443 = vmatprep.subr.mxu0 0.0
        %444 = vmatpush1.msra.mxu0 0.0
        %445 = vmatprep.subr.mxu0 0.0
        %446 = vmatpush1.msra.mxu0 0.0
        %447 = vmatprep.subr.mxu0 0.0
        %448 = vmatpush1.msra.mxu0 0.0
        %449 = vmatprep.subr.mxu0 0.0
        %450 = vmatpush1.msra.mxu0 0.0
        %451 = vmatprep.subr.mxu0 0.0
        %452 = vmatpush1.msra.mxu0 0.0
        %453 = vmatprep.subr.mxu0 0.0
        %454 = vmatpush1.msra.mxu0 0.0
        %455 = vmatprep.subr.mxu0 0.0
        %456 = vmatpush1.msra.mxu0 0.0
        %457 = vmatprep.subr.mxu0 0.0
        %458 = vmatpush1.msra.mxu0 0.0
        %459 = vmatprep.subr.mxu0 0.0
        %460 = vmatpush1.msra.mxu0 0.0
        %461 = vmatprep.subr.mxu0 0.0
        %462 = vmatpush1.msra.mxu0 0.0
        %463 = vmatprep.subr.mxu0 0.0
        %464 = vmatpush1.msra.mxu0 0.0
        %465 = vmatprep.subr.mxu0 0.0
        %466 = vmatpush1.msra.mxu0 0.0
        %467 = vmatprep.subr.mxu0 0.0
        %468 = vmatpush1.msra.mxu0 0.0
        %469 = vmatprep.subr.mxu0 0.0
        %470 = vmatpush1.msra.mxu0 0.0
        %471 = vmatprep.subr.mxu0 0.0
        %472 = vmatpush1.msra.mxu0 0.0
        %473 = vmatprep.subr.mxu0 0.0
        %474 = vmatpush1.msra.mxu0 0.0
        %475 = vmatprep.subr.mxu0 0.0
        %476 = vmatpush1.msra.mxu0 0.0
        %477 = vmatprep.subr.mxu0 0.0
        %478 = vmatpush1.msra.mxu0 0.0
        %479 = vmatprep.subr.mxu0 0.0
        %480 = vmatpush1.msra.mxu0 0.0
        %481 = vmatprep.subr.mxu0 0.0
        %482 = vmatpush1.msra.mxu0 0.0
        %483 = vmatprep.subr.mxu0 0.0
        %484 = vmatpush1.msra.mxu0 0.0
        %485 = vmatprep.mubr.f32.mxu0 0.0
        %486 = vmatmul.mubr.f32.gmra.mrb[0].mxu0 %v330
        %v487 = vpop.f32.mrb[0].mxu0
        %v488 = vadd.f32 %v317, %v487
        %v489 = vpop.f32.mrb[0].mxu0
        %v490 = vadd.f32 %v317, %v489
        %491 = vmatprep.mubr.f32.mxu0 0.0
        %492 = vmatmul.mubr.f32.gmra.mrb[0].mxu0 %v333
        %v493 = vpop.f32.mrb[0].mxu0
        %v494 = vadd.f32 %v322, %v493
        %v495 = vpop.f32.mrb[0].mxu0
        %v496 = vadd.f32 %v322, %v495
        %497 = vdwg.mxu0
        %v498 = vmax.f32 %v411, 0.0
        %v499 = vmax.f32 %v413, 0.0
        %v500 = vmax.f32 %v488, 0.0
        %v501 = vmax.f32 %v490, 0.0
        %v502 = vmax.f32 %v417, 0.0
        %v503 = vmax.f32 %v419, 0.0
        %v504 = vmax.f32 %v494, 0.0
        %v505 = vmax.f32 %v496, 0.0
        %506 = vst [vmem:[%s298] sm:$0xff] %v498
        %507 = vst [vmem:[%s298 + $0x8] sm:$0xff] %v499
        %508 = vst [vmem:[%s298 + $0x10] sm:$0xff] %v500
        %509 = vst [vmem:[%s298 + $0x18] sm:$0xff] %v501
        %510 = vst [vmem:[#allocation2 + $0x8] sm:$0xff] %v502
        %511 = vst [vmem:[#allocation2 + $0x10] sm:$0xff] %v503
        %512 = vst [vmem:[#allocation2 + $0x18] sm:$0xff] %v504
        %513 = vst [vmem:[#allocation2 + $0x20] sm:$0xff] %v505
        %516 = vst [vmem:[#allocation2 + $0x38] sm:$0xf] %v308
        %517 = vst [vmem:[#allocation2 + $0x40] sm:$0xf] %v326
        %518 = vst [vmem:[#allocation2 + $0x48] sm:$0xf] %v309
        %519 = vst [vmem:[#allocation2 + $0x50] sm:$0xf] %v327
        %v520 = vld [vmem:[#allocation2] sm:$0xff]
        %v521 = vld [vmem:[#allocation2 + $0x8] sm:$0xff]
        %v522 = vld [vmem:[#allocation2 + $0x10] sm:$0xff]
        %v523 = vld [vmem:[#allocation2 + $0x18] sm:$0xff]
        %v524 = vld [vmem:[#allocation2 + $0x20] sm:$0xff]
        %vm525 = vcmp.ge.s32.totalorder %v306, 1
        %vm526 = vcmp.ge.s32.totalorder %v307, 16
        %vm527 = vmand %vm525, %vm526
        %v528 = vsel %vm527, 1, 0
        %v529 = vlaneseq
        %v530 = vshrl.u32 %v529, 7
        %v531 = vsub.s32 0, %v530
        %v532 = vrot.slane %v528, %v531
        %v533 = vlaneseq
        %v534 = vshrl.u32 %v533, 7
        %v535 = vsub.s32 1, %v534
        %v536 = vrot.slane %v528, %v535
        %v537 = vlaneseq
        %v538 = vshrl.u32 %v537, 7
        %v539 = vsub.s32 2, %v538
        %v540 = vrot.slane %v528, %v539
        %v541 = vlaneseq
        %v542 = vshrl.u32 %v541, 7
        %v543 = vsub.s32 3, %v542
        %v544 = vrot.slane %v528, %v543
        %vm545 = vcmp.eq.s32.totalorder %v532, 1
        %vm546 = vcmp.eq.s32.totalorder %v536, 1
        %vm547 = vcmp.eq.s32.totalorder %v540, 1
        %vm548 = vcmp.eq.s32.totalorder %v544, 1
        %554 = vrot.lane.b32.xlu0 %v520, 17
        %v555 = vpop.permute.xlu0 %554
        %556 = vrot.lane.b32.xlu0 %v521, 17
        %v557 = vpop.permute.xlu0 %556
        %558 = vrot.lane.b32.xlu0 %v522, 17
        %v559 = vpop.permute.xlu0 %558
        %560 = vrot.lane.b32.xlu0 %v523, 17
        %v561 = vpop.permute.xlu0 %560
        %562 = vrot.lane.b32.xlu0 %v524, 17
        %v563 = vpop.permute.xlu0 %562
        %vm564 = vcmask 138240
        %v565 = vsel %vm564, %v555, %v557
        %v566 = vsel %vm564, %v557, %v559
        %v567 = vsel %vm564, %v559, %v561
        %v568 = vsel %vm564, %v561, %v563
        %v573 = vsel %vm545, %v565, 0.0
        %v574 = vsel %vm546, %v566, 0.0
        %v575 = vsel %vm547, %v567, 0.0
        %v576 = vsel %vm548, %v568, 0.0
        %577 = vst [vmem:[#allocation3] sm:$0xff] %v573
        %578 = vst [vmem:[#allocation3 + $0x8] sm:$0xff] %v574
        %579 = vst [vmem:[#allocation3 + $0x10] sm:$0xff] %v575
        %580 = vst [vmem:[#allocation3 + $0x18] sm:$0xff] %v576
        %v581 = vld [vmem:[#allocation2] sm:$0xff]
        %v582 = vld [vmem:[#allocation2 + $0x8] sm:$0xff]
        %v583 = vld [vmem:[#allocation2 + $0x10] sm:$0xff]
        %v584 = vld [vmem:[#allocation2 + $0x18] sm:$0xff]
        %v585 = vld [vmem:[#allocation2 + $0x20] sm:$0xff]
        %v586 = vsel %vm526, 1, 0
        %v587 = vlaneseq
        %v588 = vshrl.u32 %v587, 7
        %v589 = vsub.s32 0, %v588
        %v590 = vrot.slane %v586, %v589
        %v591 = vlaneseq
        %v592 = vshrl.u32 %v591, 7
        %v593 = vsub.s32 1, %v592
        %v594 = vrot.slane %v586, %v593
        %v595 = vlaneseq
        %v596 = vshrl.u32 %v595, 7
        %v597 = vsub.s32 2, %v596
        %v598 = vrot.slane %v586, %v597
        %v599 = vlaneseq
        %v600 = vshrl.u32 %v599, 7
        %v601 = vsub.s32 3, %v600
        %v602 = vrot.slane %v586, %v601
        %vm603 = vcmp.eq.s32.totalorder %v590, 1
        %vm604 = vcmp.eq.s32.totalorder %v594, 1
        %vm605 = vcmp.eq.s32.totalorder %v598, 1
        %vm606 = vcmp.eq.s32.totalorder %v602, 1
        %612 = vrot.lane.b32.xlu0 %v581, 16
        %v613 = vpop.permute.xlu0 %612
        %614 = vrot.lane.b32.xlu0 %v582, 16
        %v615 = vpop.permute.xlu0 %614
        %616 = vrot.lane.b32.xlu0 %v583, 16
        %v617 = vpop.permute.xlu0 %616
        %618 = vrot.lane.b32.xlu0 %v584, 16
        %v619 = vpop.permute.xlu0 %618
        %620 = vrot.lane.b32.xlu0 %v585, 16
        %v621 = vpop.permute.xlu0 %620
        %vm622 = vcmask 130048
        %v623 = vsel %vm622, %v613, %v615
        %v624 = vsel %vm622, %v615, %v617
        %v625 = vsel %vm622, %v617, %v619
        %v626 = vsel %vm622, %v619, %v621
        %v631 = vsel %vm603, %v623, 0.0
        %v632 = vsel %vm604, %v624, 0.0
        %v633 = vsel %vm605, %v625, 0.0
        %v634 = vsel %vm606, %v626, 0.0
        %635 = vst [vmem:[#allocation3 + $0x20] sm:$0xff] %v631
        %636 = vst [vmem:[#allocation3 + $0x28] sm:$0xff] %v632
        %637 = vst [vmem:[#allocation3 + $0x30] sm:$0xff] %v633
        %638 = vst [vmem:[#allocation3 + $0x38] sm:$0xff] %v634
        %v639 = vld [vmem:[#allocation2] sm:$0xff]
        %v640 = vld [vmem:[#allocation2 + $0x8] sm:$0xff]
        %v641 = vld [vmem:[#allocation2 + $0x10] sm:$0xff]
        %v642 = vld [vmem:[#allocation2 + $0x18] sm:$0xff]
        %v643 = vld [vmem:[#allocation2 + $0x20] sm:$0xff]
        %vm644 = vcmp.lt.s32.totalorder %v306, 15
        %vm645 = vmand %vm644, %vm526
        %v646 = vsel %vm645, 1, 0
        %v647 = vlaneseq
        %v648 = vshrl.u32 %v647, 7
        %v649 = vsub.s32 0, %v648
        %v650 = vrot.slane %v646, %v649
        %v651 = vlaneseq
        %v652 = vshrl.u32 %v651, 7
        %v653 = vsub.s32 1, %v652
        %v654 = vrot.slane %v646, %v653
        %v655 = vlaneseq
        %v656 = vshrl.u32 %v655, 7
        %v657 = vsub.s32 2, %v656
        %v658 = vrot.slane %v646, %v657
        %v659 = vlaneseq
        %v660 = vshrl.u32 %v659, 7
        %v661 = vsub.s32 3, %v660
        %v662 = vrot.slane %v646, %v661
        %vm663 = vcmp.eq.s32.totalorder %v650, 1
        %vm664 = vcmp.eq.s32.totalorder %v654, 1
        %vm665 = vcmp.eq.s32.totalorder %v658, 1
        %vm666 = vcmp.eq.s32.totalorder %v662, 1
        %672 = vrot.lane.b32.xlu0 %v639, 15
        %v673 = vpop.permute.xlu0 %672
        %674 = vrot.lane.b32.xlu0 %v640, 15
        %v675 = vpop.permute.xlu0 %674
        %676 = vrot.lane.b32.xlu0 %v641, 15
        %v677 = vpop.permute.xlu0 %676
        %678 = vrot.lane.b32.xlu0 %v642, 15
        %v679 = vpop.permute.xlu0 %678
        %680 = vrot.lane.b32.xlu0 %v643, 15
        %v681 = vpop.permute.xlu0 %680
        %vm682 = vcmask 121856
        %v683 = vsel %vm682, %v673, %v675
        %v684 = vsel %vm682, %v675, %v677
        %v685 = vsel %vm682, %v677, %v679
        %v686 = vsel %vm682, %v679, %v681
        %v691 = vsel %vm663, %v683, 0.0
        %v692 = vsel %vm664, %v684, 0.0
        %v693 = vsel %vm665, %v685, 0.0
        %v694 = vsel %vm666, %v686, 0.0
        %695 = vst [vmem:[#allocation3 + $0x40] sm:$0xff] %v691
        %696 = vst [vmem:[#allocation3 + $0x48] sm:$0xff] %v692
        %697 = vst [vmem:[#allocation3 + $0x50] sm:$0xff] %v693
        %698 = vst [vmem:[#allocation3 + $0x58] sm:$0xff] %v694
        %v699 = vld [vmem:[#allocation2] sm:$0xff]
        %v700 = vld [vmem:[#allocation2 + $0x8] sm:$0xff]
        %v701 = vld [vmem:[#allocation2 + $0x10] sm:$0xff]
        %v702 = vld [vmem:[#allocation2 + $0x18] sm:$0xff]
        %v703 = vld [vmem:[#allocation2 + $0x20] sm:$0xff]
        %v704 = vsel %vm525, 1, 0
        %v705 = vlaneseq
        %v706 = vshrl.u32 %v705, 7
        %v707 = vsub.s32 0, %v706
        %v708 = vrot.slane %v704, %v707
        %v709 = vlaneseq
        %v710 = vshrl.u32 %v709, 7
        %v711 = vsub.s32 1, %v710
        %v712 = vrot.slane %v704, %v711
        %v713 = vlaneseq
        %v714 = vshrl.u32 %v713, 7
        %v715 = vsub.s32 2, %v714
        %v716 = vrot.slane %v704, %v715
        %v717 = vlaneseq
        %v718 = vshrl.u32 %v717, 7
        %v719 = vsub.s32 3, %v718
        %v720 = vrot.slane %v704, %v719
        %vm721 = vcmp.eq.s32.totalorder %v708, 1
        %vm722 = vcmp.eq.s32.totalorder %v712, 1
        %vm723 = vcmp.eq.s32.totalorder %v716, 1
        %vm724 = vcmp.eq.s32.totalorder %v720, 1
        %730 = vrot.lane.b32.xlu0 %v699, 1
        %v731 = vpop.permute.xlu0 %730
        %732 = vrot.lane.b32.xlu0 %v700, 1
        %v733 = vpop.permute.xlu0 %732
        %734 = vrot.lane.b32.xlu0 %v701, 1
        %v735 = vpop.permute.xlu0 %734
        %736 = vrot.lane.b32.xlu0 %v702, 1
        %v737 = vpop.permute.xlu0 %736
        %738 = vrot.lane.b32.xlu0 %v703, 1
        %v739 = vpop.permute.xlu0 %738
        %vm740 = vcmask 7168
        %v741 = vsel %vm740, %v731, %v733
        %v742 = vsel %vm740, %v733, %v735
        %v743 = vsel %vm740, %v735, %v737
        %v744 = vsel %vm740, %v737, %v739
        %v749 = vsel %vm721, %v741, 0.0
        %v750 = vsel %vm722, %v742, 0.0
        %v751 = vsel %vm723, %v743, 0.0
        %v752 = vsel %vm724, %v744, 0.0
        %753 = vst [vmem:[#allocation3 + $0x60] sm:$0xff] %v749
        %754 = vst [vmem:[#allocation3 + $0x68] sm:$0xff] %v750
        %755 = vst [vmem:[#allocation3 + $0x70] sm:$0xff] %v751
        %756 = vst [vmem:[#allocation3 + $0x78] sm:$0xff] %v752
        %v757 = vld [vmem:[#allocation2 + $0x8] sm:$0xff]
        %v758 = vld [vmem:[#allocation2 + $0x10] sm:$0xff]
        %v759 = vld [vmem:[#allocation2 + $0x18] sm:$0xff]
        %v760 = vld [vmem:[#allocation2 + $0x20] sm:$0xff]
        %761 = vst [vmem:[#allocation3 + $0x80] sm:$0xff] %v757
        %762 = vst [vmem:[#allocation3 + $0x88] sm:$0xff] %v758
        %763 = vst [vmem:[#allocation3 + $0x90] sm:$0xff] %v759
        %764 = vst [vmem:[#allocation3 + $0x98] sm:$0xff] %v760
        %v765 = vld [vmem:[#allocation2 + $0x8] sm:$0xff]
        %v766 = vld [vmem:[#allocation2 + $0x10] sm:$0xff]
        %v767 = vld [vmem:[#allocation2 + $0x18] sm:$0xff]
        %v768 = vld [vmem:[#allocation2 + $0x20] sm:$0xff]
        %v769 = vld [vmem:[#allocation2 + $0x28] sm:$0xff]
        %v770 = vsel %vm644, 1, 0
        %v771 = vlaneseq
        %v772 = vshrl.u32 %v771, 7
        %v773 = vsub.s32 0, %v772
        %v774 = vrot.slane %v770, %v773
        %v775 = vlaneseq
        %v776 = vshrl.u32 %v775, 7
        %v777 = vsub.s32 1, %v776
        %v778 = vrot.slane %v770, %v777
        %v779 = vlaneseq
        %v780 = vshrl.u32 %v779, 7
        %v781 = vsub.s32 2, %v780
        %v782 = vrot.slane %v770, %v781
        %v783 = vlaneseq
        %v784 = vshrl.u32 %v783, 7
        %v785 = vsub.s32 3, %v784
        %v786 = vrot.slane %v770, %v785
        %vm787 = vcmp.eq.s32.totalorder %v774, 1
        %vm788 = vcmp.eq.s32.totalorder %v778, 1
        %vm789 = vcmp.eq.s32.totalorder %v782, 1
        %vm790 = vcmp.eq.s32.totalorder %v786, 1
        %796 = vrot.lane.b32.xlu0 %v765, 127
        %v797 = vpop.permute.xlu0 %796
        %798 = vrot.lane.b32.xlu0 %v766, 127
        %v799 = vpop.permute.xlu0 %798
        %800 = vrot.lane.b32.xlu0 %v767, 127
        %v801 = vpop.permute.xlu0 %800
        %802 = vrot.lane.b32.xlu0 %v768, 127
        %v803 = vpop.permute.xlu0 %802
        %804 = vrot.lane.b32.xlu0 %v769, 127
        %v805 = vpop.permute.xlu0 %804
        %vm806 = vcmask 1039360
        %v807 = vsel %vm806, %v797, %v799
        %v808 = vsel %vm806, %v799, %v801
        %v809 = vsel %vm806, %v801, %v803
        %v810 = vsel %vm806, %v803, %v805
        %v815 = vsel %vm787, %v807, 0.0
        %v816 = vsel %vm788, %v808, 0.0
        %v817 = vsel %vm789, %v809, 0.0
        %v818 = vsel %vm790, %v810, 0.0
        %819 = vst [vmem:[#allocation3 + $0xa0] sm:$0xff] %v815
        %820 = vst [vmem:[#allocation3 + $0xa8] sm:$0xff] %v816
        %821 = vst [vmem:[#allocation3 + $0xb0] sm:$0xff] %v817
        %822 = vst [vmem:[#allocation3 + $0xb8] sm:$0xff] %v818
        %v823 = vld [vmem:[#allocation2 + $0x8] sm:$0xff]
        %v824 = vld [vmem:[#allocation2 + $0x10] sm:$0xff]
        %v825 = vld [vmem:[#allocation2 + $0x18] sm:$0xff]
        %v826 = vld [vmem:[#allocation2 + $0x20] sm:$0xff]
        %v827 = vld [vmem:[#allocation2 + $0x28] sm:$0xff]
        %vm828 = vcmp.lt.s32.totalorder %v307, 240
        %vm829 = vmand %vm525, %vm828
        %v830 = vsel %vm829, 1, 0
        %v831 = vlaneseq
        %v832 = vshrl.u32 %v831, 7
        %v833 = vsub.s32 0, %v832
        %v834 = vrot.slane %v830, %v833
        %v835 = vlaneseq
        %v836 = vshrl.u32 %v835, 7
        %v837 = vsub.s32 1, %v836
        %v838 = vrot.slane %v830, %v837
        %v839 = vlaneseq
        %v840 = vshrl.u32 %v839, 7
        %v841 = vsub.s32 2, %v840
        %v842 = vrot.slane %v830, %v841
        %v843 = vlaneseq
        %v844 = vshrl.u32 %v843, 7
        %v845 = vsub.s32 3, %v844
        %v846 = vrot.slane %v830, %v845
        %vm847 = vcmp.eq.s32.totalorder %v834, 1
        %vm848 = vcmp.eq.s32.totalorder %v838, 1
        %vm849 = vcmp.eq.s32.totalorder %v842, 1
        %vm850 = vcmp.eq.s32.totalorder %v846, 1
        %856 = vrot.lane.b32.xlu0 %v823, 113
        %v857 = vpop.permute.xlu0 %856
        %858 = vrot.lane.b32.xlu0 %v824, 113
        %v859 = vpop.permute.xlu0 %858
        %860 = vrot.lane.b32.xlu0 %v825, 113
        %v861 = vpop.permute.xlu0 %860
        %862 = vrot.lane.b32.xlu0 %v826, 113
        %v863 = vpop.permute.xlu0 %862
        %864 = vrot.lane.b32.xlu0 %v827, 113
        %v865 = vpop.permute.xlu0 %864
        %vm866 = vcmask 924672
        %v867 = vsel %vm866, %v857, %v859
        %v868 = vsel %vm866, %v859, %v861
        %v869 = vsel %vm866, %v861, %v863
        %v870 = vsel %vm866, %v863, %v865
        %v875 = vsel %vm847, %v867, 0.0
        %v876 = vsel %vm848, %v868, 0.0
        %v877 = vsel %vm849, %v869, 0.0
        %v878 = vsel %vm850, %v870, 0.0
        %879 = vst [vmem:[#allocation3 + $0xc0] sm:$0xff] %v875
        %880 = vst [vmem:[#allocation3 + $0xc8] sm:$0xff] %v876
        %881 = vst [vmem:[#allocation3 + $0xd0] sm:$0xff] %v877
        %882 = vst [vmem:[#allocation3 + $0xd8] sm:$0xff] %v878
        %v883 = vld [vmem:[#allocation2 + $0x8] sm:$0xff]
        %v884 = vld [vmem:[#allocation2 + $0x10] sm:$0xff]
        %v885 = vld [vmem:[#allocation2 + $0x18] sm:$0xff]
        %v886 = vld [vmem:[#allocation2 + $0x20] sm:$0xff]
        %v887 = vld [vmem:[#allocation2 + $0x28] sm:$0xff]
        %v888 = vsel %vm828, 1, 0
        %v889 = vlaneseq
        %v890 = vshrl.u32 %v889, 7
        %v891 = vsub.s32 0, %v890
        %v892 = vrot.slane %v888, %v891
        %v893 = vlaneseq
        %v894 = vshrl.u32 %v893, 7
        %v895 = vsub.s32 1, %v894
        %v896 = vrot.slane %v888, %v895
        %v897 = vlaneseq
        %v898 = vshrl.u32 %v897, 7
        %v899 = vsub.s32 2, %v898
        %v900 = vrot.slane %v888, %v899
        %v901 = vlaneseq
        %v902 = vshrl.u32 %v901, 7
        %v903 = vsub.s32 3, %v902
        %v904 = vrot.slane %v888, %v903
        %vm905 = vcmp.eq.s32.totalorder %v892, 1
        %vm906 = vcmp.eq.s32.totalorder %v896, 1
        %vm907 = vcmp.eq.s32.totalorder %v900, 1
        %vm908 = vcmp.eq.s32.totalorder %v904, 1
        %914 = vrot.lane.b32.xlu0 %v883, 112
        %v915 = vpop.permute.xlu0 %914
        %916 = vrot.lane.b32.xlu0 %v884, 112
        %v917 = vpop.permute.xlu0 %916
        %918 = vrot.lane.b32.xlu0 %v885, 112
        %v919 = vpop.permute.xlu0 %918
        %920 = vrot.lane.b32.xlu0 %v886, 112
        %v921 = vpop.permute.xlu0 %920
        %922 = vrot.lane.b32.xlu0 %v887, 112
        %v923 = vpop.permute.xlu0 %922
        %vm924 = vcmask 916480
        %v925 = vsel %vm924, %v915, %v917
        %v926 = vsel %vm924, %v917, %v919
        %v927 = vsel %vm924, %v919, %v921
        %v928 = vsel %vm924, %v921, %v923
        %v933 = vsel %vm905, %v925, 0.0
        %v934 = vsel %vm906, %v926, 0.0
        %v935 = vsel %vm907, %v927, 0.0
        %v936 = vsel %vm908, %v928, 0.0
        %937 = vst [vmem:[#allocation3 + $0xe0] sm:$0xff] %v933
        %938 = vst [vmem:[#allocation3 + $0xe8] sm:$0xff] %v934
        %939 = vst [vmem:[#allocation3 + $0xf0] sm:$0xff] %v935
        %940 = vst [vmem:[#allocation3 + $0xf8] sm:$0xff] %v936
        %v941 = vld [vmem:[#allocation2 + $0x8] sm:$0xff]
        %v942 = vld [vmem:[#allocation2 + $0x10] sm:$0xff]
        %v943 = vld [vmem:[#allocation2 + $0x18] sm:$0xff]
        %v944 = vld [vmem:[#allocation2 + $0x20] sm:$0xff]
        %v945 = vld [vmem:[#allocation2 + $0x28] sm:$0xff]
        %vm946 = vmand %vm644, %vm828
        %v947 = vsel %vm946, 1, 0
        %v948 = vlaneseq
        %v949 = vshrl.u32 %v948, 7
        %v950 = vsub.s32 0, %v949
        %v951 = vrot.slane %v947, %v950
        %v952 = vlaneseq
        %v953 = vshrl.u32 %v952, 7
        %v954 = vsub.s32 1, %v953
        %v955 = vrot.slane %v947, %v954
        %v956 = vlaneseq
        %v957 = vshrl.u32 %v956, 7
        %v958 = vsub.s32 2, %v957
        %v959 = vrot.slane %v947, %v958
        %v960 = vlaneseq
        %v961 = vshrl.u32 %v960, 7
        %v962 = vsub.s32 3, %v961
        %v963 = vrot.slane %v947, %v962
        %vm964 = vcmp.eq.s32.totalorder %v951, 1
        %vm965 = vcmp.eq.s32.totalorder %v955, 1
        %vm966 = vcmp.eq.s32.totalorder %v959, 1
        %vm967 = vcmp.eq.s32.totalorder %v963, 1
        %973 = vrot.lane.b32.xlu0 %v941, 111
        %v974 = vpop.permute.xlu0 %973
        %975 = vrot.lane.b32.xlu0 %v942, 111
        %v976 = vpop.permute.xlu0 %975
        %977 = vrot.lane.b32.xlu0 %v943, 111
        %v978 = vpop.permute.xlu0 %977
        %979 = vrot.lane.b32.xlu0 %v944, 111
        %v980 = vpop.permute.xlu0 %979
        %981 = vrot.lane.b32.xlu0 %v945, 111
        %v982 = vpop.permute.xlu0 %981
        %vm983 = vcmask 908288
        %v984 = vsel %vm983, %v974, %v976
        %v985 = vsel %vm983, %v976, %v978
        %v986 = vsel %vm983, %v978, %v980
        %v987 = vsel %vm983, %v980, %v982
        %v992 = vsel %vm964, %v984, 0.0
        %v993 = vsel %vm965, %v985, 0.0
        %v994 = vsel %vm966, %v986, 0.0
        %v995 = vsel %vm967, %v987, 0.0
        %996 = vst [vmem:[#allocation3 + $0x100] sm:$0xff] %v992
        %997 = vst [vmem:[#allocation3 + $0x108] sm:$0xff] %v993
        %998 = vst [vmem:[#allocation3 + $0x110] sm:$0xff] %v994
        %999 = vst [vmem:[#allocation3 + $0x118] sm:$0xff] %v995
        %v1000 = vld [vmem:[#allocation2] sm:$0xff]
        %v1001 = vld [vmem:[#allocation2 + $0x8] sm:$0xff]
        %v1002 = vld [vmem:[#allocation2 + $0x10] sm:$0xff]
        %v1003 = vld [vmem:[#allocation2 + $0x18] sm:$0xff]
        %v1004 = vld [vmem:[#allocation2 + $0x20] sm:$0xff]
        %vm1005 = vcmp.ge.s32.totalorder %v306, 2
        %vm1006 = vcmp.ge.s32.totalorder %v307, 32
        %vm1007 = vmand %vm1005, %vm1006
        %v1008 = vsel %vm1007, 1, 0
        %v1009 = vlaneseq
        %v1010 = vshrl.u32 %v1009, 7
        %v1011 = vsub.s32 0, %v1010
        %v1012 = vrot.slane %v1008, %v1011
        %v1013 = vlaneseq
        %v1014 = vshrl.u32 %v1013, 7
        %v1015 = vsub.s32 1, %v1014
        %v1016 = vrot.slane %v1008, %v1015
        %v1017 = vlaneseq
        %v1018 = vshrl.u32 %v1017, 7
        %v1019 = vsub.s32 2, %v1018
        %v1020 = vrot.slane %v1008, %v1019
        %v1021 = vlaneseq
        %v1022 = vshrl.u32 %v1021, 7
        %v1023 = vsub.s32 3, %v1022
        %v1024 = vrot.slane %v1008, %v1023
        %vm1025 = vcmp.eq.s32.totalorder %v1012, 1
        %vm1026 = vcmp.eq.s32.totalorder %v1016, 1
        %vm1027 = vcmp.eq.s32.totalorder %v1020, 1
        %vm1028 = vcmp.eq.s32.totalorder %v1024, 1
        %1034 = vrot.lane.b32.xlu0 %v1000, 34
        %v1035 = vpop.permute.xlu0 %1034
        %1036 = vrot.lane.b32.xlu0 %v1001, 34
        %v1037 = vpop.permute.xlu0 %1036
        %1038 = vrot.lane.b32.xlu0 %v1002, 34
        %v1039 = vpop.permute.xlu0 %1038
        %1040 = vrot.lane.b32.xlu0 %v1003, 34
        %v1041 = vpop.permute.xlu0 %1040
        %1042 = vrot.lane.b32.xlu0 %v1004, 34
        %v1043 = vpop.permute.xlu0 %1042
        %vm1044 = vcmask 277504
        %v1045 = vsel %vm1044, %v1035, %v1037
        %v1046 = vsel %vm1044, %v1037, %v1039
        %v1047 = vsel %vm1044, %v1039, %v1041
        %v1048 = vsel %vm1044, %v1041, %v1043
        %v1053 = vsel %vm1025, %v1045, 0.0
        %v1054 = vsel %vm1026, %v1046, 0.0
        %v1055 = vsel %vm1027, %v1047, 0.0
        %v1056 = vsel %vm1028, %v1048, 0.0
        %1057 = vst [vmem:[#allocation3 + $0x120] sm:$0xff] %v1053
        %1058 = vst [vmem:[#allocation3 + $0x128] sm:$0xff] %v1054
        %1059 = vst [vmem:[#allocation3 + $0x130] sm:$0xff] %v1055
        %1060 = vst [vmem:[#allocation3 + $0x138] sm:$0xff] %v1056
        %v1061 = vld [vmem:[#allocation2] sm:$0xff]
        %v1062 = vld [vmem:[#allocation2 + $0x8] sm:$0xff]
        %v1063 = vld [vmem:[#allocation2 + $0x10] sm:$0xff]
        %v1064 = vld [vmem:[#allocation2 + $0x18] sm:$0xff]
        %v1065 = vld [vmem:[#allocation2 + $0x20] sm:$0xff]
        %vm1066 = vmand %vm525, %vm1006
        %v1067 = vsel %vm1066, 1, 0
        %v1068 = vlaneseq
        %v1069 = vshrl.u32 %v1068, 7
        %v1070 = vsub.s32 0, %v1069
        %v1071 = vrot.slane %v1067, %v1070
        %v1072 = vlaneseq
        %v1073 = vshrl.u32 %v1072, 7
        %v1074 = vsub.s32 1, %v1073
        %v1075 = vrot.slane %v1067, %v1074
        %v1076 = vlaneseq
        %v1077 = vshrl.u32 %v1076, 7
        %v1078 = vsub.s32 2, %v1077
        %v1079 = vrot.slane %v1067, %v1078
        %v1080 = vlaneseq
        %v1081 = vshrl.u32 %v1080, 7
        %v1082 = vsub.s32 3, %v1081
        %v1083 = vrot.slane %v1067, %v1082
        %vm1084 = vcmp.eq.s32.totalorder %v1071, 1
        %vm1085 = vcmp.eq.s32.totalorder %v1075, 1
        %vm1086 = vcmp.eq.s32.totalorder %v1079, 1
        %vm1087 = vcmp.eq.s32.totalorder %v1083, 1
        %1093 = vrot.lane.b32.xlu0 %v1061, 33
        %v1094 = vpop.permute.xlu0 %1093
        %1095 = vrot.lane.b32.xlu0 %v1062, 33
        %v1096 = vpop.permute.xlu0 %1095
        %1097 = vrot.lane.b32.xlu0 %v1063, 33
        %v1098 = vpop.permute.xlu0 %1097
        %1099 = vrot.lane.b32.xlu0 %v1064, 33
        %v1100 = vpop.permute.xlu0 %1099
        %1101 = vrot.lane.b32.xlu0 %v1065, 33
        %v1102 = vpop.permute.xlu0 %1101
        %vm1103 = vcmask 269312
        %v1104 = vsel %vm1103, %v1094, %v1096
        %v1105 = vsel %vm1103, %v1096, %v1098
        %v1106 = vsel %vm1103, %v1098, %v1100
        %v1107 = vsel %vm1103, %v1100, %v1102
        %v1112 = vsel %vm1084, %v1104, 0.0
        %v1113 = vsel %vm1085, %v1105, 0.0
        %v1114 = vsel %vm1086, %v1106, 0.0
        %v1115 = vsel %vm1087, %v1107, 0.0
        %1116 = vst [vmem:[#allocation3 + $0x140] sm:$0xff] %v1112
        %1117 = vst [vmem:[#allocation3 + $0x148] sm:$0xff] %v1113
        %1118 = vst [vmem:[#allocation3 + $0x150] sm:$0xff] %v1114
        %1119 = vst [vmem:[#allocation3 + $0x158] sm:$0xff] %v1115
        %v1120 = vld [vmem:[#allocation2] sm:$0xff]
        %v1121 = vld [vmem:[#allocation2 + $0x8] sm:$0xff]
        %v1122 = vld [vmem:[#allocation2 + $0x10] sm:$0xff]
        %v1123 = vld [vmem:[#allocation2 + $0x18] sm:$0xff]
        %v1124 = vld [vmem:[#allocation2 + $0x20] sm:$0xff]
        %v1125 = vsel %vm1006, 1, 0
        %v1126 = vlaneseq
        %v1127 = vshrl.u32 %v1126, 7
        %v1128 = vsub.s32 0, %v1127
        %v1129 = vrot.slane %v1125, %v1128
        %v1130 = vlaneseq
        %v1131 = vshrl.u32 %v1130, 7
        %v1132 = vsub.s32 1, %v1131
        %v1133 = vrot.slane %v1125, %v1132
        %v1134 = vlaneseq
        %v1135 = vshrl.u32 %v1134, 7
        %v1136 = vsub.s32 2, %v1135
        %v1137 = vrot.slane %v1125, %v1136
        %v1138 = vlaneseq
        %v1139 = vshrl.u32 %v1138, 7
        %v1140 = vsub.s32 3, %v1139
        %v1141 = vrot.slane %v1125, %v1140
        %vm1142 = vcmp.eq.s32.totalorder %v1129, 1
        %vm1143 = vcmp.eq.s32.totalorder %v1133, 1
        %vm1144 = vcmp.eq.s32.totalorder %v1137, 1
        %vm1145 = vcmp.eq.s32.totalorder %v1141, 1
        %1151 = vrot.lane.b32.xlu0 %v1120, 32
        %v1152 = vpop.permute.xlu0 %1151
        %1153 = vrot.lane.b32.xlu0 %v1121, 32
        %v1154 = vpop.permute.xlu0 %1153
        %1155 = vrot.lane.b32.xlu0 %v1122, 32
        %v1156 = vpop.permute.xlu0 %1155
        %1157 = vrot.lane.b32.xlu0 %v1123, 32
        %v1158 = vpop.permute.xlu0 %1157
        %1159 = vrot.lane.b32.xlu0 %v1124, 32
        %v1160 = vpop.permute.xlu0 %1159
        %vm1161 = vcmask 261120
        %v1162 = vsel %vm1161, %v1152, %v1154
        %v1163 = vsel %vm1161, %v1154, %v1156
        %v1164 = vsel %vm1161, %v1156, %v1158
        %v1165 = vsel %vm1161, %v1158, %v1160
        %v1170 = vsel %vm1142, %v1162, 0.0
        %v1171 = vsel %vm1143, %v1163, 0.0
        %v1172 = vsel %vm1144, %v1164, 0.0
        %v1173 = vsel %vm1145, %v1165, 0.0
        %1174 = vst [vmem:[#allocation3 + $0x160] sm:$0xff] %v1170
        %1175 = vst [vmem:[#allocation3 + $0x168] sm:$0xff] %v1171
        %1176 = vst [vmem:[#allocation3 + $0x170] sm:$0xff] %v1172
        %1177 = vst [vmem:[#allocation3 + $0x178] sm:$0xff] %v1173
        %v1178 = vld [vmem:[#allocation2] sm:$0xff]
        %v1179 = vld [vmem:[#allocation2 + $0x8] sm:$0xff]
        %v1180 = vld [vmem:[#allocation2 + $0x10] sm:$0xff]
        %v1181 = vld [vmem:[#allocation2 + $0x18] sm:$0xff]
        %v1182 = vld [vmem:[#allocation2 + $0x20] sm:$0xff]
        %vm1183 = vmand %vm644, %vm1006
        %v1184 = vsel %vm1183, 1, 0
        %v1185 = vlaneseq
        %v1186 = vshrl.u32 %v1185, 7
        %v1187 = vsub.s32 0, %v1186
        %v1188 = vrot.slane %v1184, %v1187
        %v1189 = vlaneseq
        %v1190 = vshrl.u32 %v1189, 7
        %v1191 = vsub.s32 1, %v1190
        %v1192 = vrot.slane %v1184, %v1191
        %v1193 = vlaneseq
        %v1194 = vshrl.u32 %v1193, 7
        %v1195 = vsub.s32 2, %v1194
        %v1196 = vrot.slane %v1184, %v1195
        %v1197 = vlaneseq
        %v1198 = vshrl.u32 %v1197, 7
        %v1199 = vsub.s32 3, %v1198
        %v1200 = vrot.slane %v1184, %v1199
        %vm1201 = vcmp.eq.s32.totalorder %v1188, 1
        %vm1202 = vcmp.eq.s32.totalorder %v1192, 1
        %vm1203 = vcmp.eq.s32.totalorder %v1196, 1
        %vm1204 = vcmp.eq.s32.totalorder %v1200, 1
        %1210 = vrot.lane.b32.xlu0 %v1178, 31
        %v1211 = vpop.permute.xlu0 %1210
        %1212 = vrot.lane.b32.xlu0 %v1179, 31
        %v1213 = vpop.permute.xlu0 %1212
        %1214 = vrot.lane.b32.xlu0 %v1180, 31
        %v1215 = vpop.permute.xlu0 %1214
        %1216 = vrot.lane.b32.xlu0 %v1181, 31
        %v1217 = vpop.permute.xlu0 %1216
        %1218 = vrot.lane.b32.xlu0 %v1182, 31
        %v1219 = vpop.permute.xlu0 %1218
        %vm1220 = vcmask 252928
        %v1221 = vsel %vm1220, %v1211, %v1213
        %v1222 = vsel %vm1220, %v1213, %v1215
        %v1223 = vsel %vm1220, %v1215, %v1217
        %v1224 = vsel %vm1220, %v1217, %v1219
        %v1229 = vsel %vm1201, %v1221, 0.0
        %v1230 = vsel %vm1202, %v1222, 0.0
        %v1231 = vsel %vm1203, %v1223, 0.0
        %v1232 = vsel %vm1204, %v1224, 0.0
        %1233 = vst [vmem:[#allocation3 + $0x180] sm:$0xff] %v1229
        %1234 = vst [vmem:[#allocation3 + $0x188] sm:$0xff] %v1230
        %1235 = vst [vmem:[#allocation3 + $0x190] sm:$0xff] %v1231
        %1236 = vst [vmem:[#allocation3 + $0x198] sm:$0xff] %v1232
        %v1237 = vld [vmem:[#allocation2] sm:$0xff]
        %v1238 = vld [vmem:[#allocation2 + $0x8] sm:$0xff]
        %v1239 = vld [vmem:[#allocation2 + $0x10] sm:$0xff]
        %v1240 = vld [vmem:[#allocation2 + $0x18] sm:$0xff]
        %v1241 = vld [vmem:[#allocation2 + $0x20] sm:$0xff]
        %vm1242 = vcmp.lt.s32.totalorder %v306, 14
        %vm1243 = vmand %vm1242, %vm1006
        %v1244 = vsel %vm1243, 1, 0
        %v1245 = vlaneseq
        %v1246 = vshrl.u32 %v1245, 7
        %v1247 = vsub.s32 0, %v1246
        %v1248 = vrot.slane %v1244, %v1247
        %v1249 = vlaneseq
        %v1250 = vshrl.u32 %v1249, 7
        %v1251 = vsub.s32 1, %v1250
        %v1252 = vrot.slane %v1244, %v1251
        %v1253 = vlaneseq
        %v1254 = vshrl.u32 %v1253, 7
        %v1255 = vsub.s32 2, %v1254
        %v1256 = vrot.slane %v1244, %v1255
        %v1257 = vlaneseq
        %v1258 = vshrl.u32 %v1257, 7
        %v1259 = vsub.s32 3, %v1258
        %v1260 = vrot.slane %v1244, %v1259
        %vm1261 = vcmp.eq.s32.totalorder %v1248, 1
        %vm1262 = vcmp.eq.s32.totalorder %v1252, 1
        %vm1263 = vcmp.eq.s32.totalorder %v1256, 1
        %vm1264 = vcmp.eq.s32.totalorder %v1260, 1
        %1270 = vrot.lane.b32.xlu0 %v1237, 30
        %v1271 = vpop.permute.xlu0 %1270
        %1272 = vrot.lane.b32.xlu0 %v1238, 30
        %v1273 = vpop.permute.xlu0 %1272
        %1274 = vrot.lane.b32.xlu0 %v1239, 30
        %v1275 = vpop.permute.xlu0 %1274
        %1276 = vrot.lane.b32.xlu0 %v1240, 30
        %v1277 = vpop.permute.xlu0 %1276
        %1278 = vrot.lane.b32.xlu0 %v1241, 30
        %v1279 = vpop.permute.xlu0 %1278
        %vm1280 = vcmask 244736
        %v1281 = vsel %vm1280, %v1271, %v1273
        %v1282 = vsel %vm1280, %v1273, %v1275
        %v1283 = vsel %vm1280, %v1275, %v1277
        %v1284 = vsel %vm1280, %v1277, %v1279
        %v1289 = vsel %vm1261, %v1281, 0.0
        %v1290 = vsel %vm1262, %v1282, 0.0
        %v1291 = vsel %vm1263, %v1283, 0.0
        %v1292 = vsel %vm1264, %v1284, 0.0
        %1293 = vst [vmem:[#allocation3 + $0x1a0] sm:$0xff] %v1289
        %1294 = vst [vmem:[#allocation3 + $0x1a8] sm:$0xff] %v1290
        %1295 = vst [vmem:[#allocation3 + $0x1b0] sm:$0xff] %v1291
        %1296 = vst [vmem:[#allocation3 + $0x1b8] sm:$0xff] %v1292
        %v1297 = vld [vmem:[#allocation2] sm:$0xff]
        %v1298 = vld [vmem:[#allocation2 + $0x8] sm:$0xff]
        %v1299 = vld [vmem:[#allocation2 + $0x10] sm:$0xff]
        %v1300 = vld [vmem:[#allocation2 + $0x18] sm:$0xff]
        %v1301 = vld [vmem:[#allocation2 + $0x20] sm:$0xff]
        %vm1302 = vmand %vm1005, %vm526
        %v1303 = vsel %vm1302, 1, 0
        %v1304 = vlaneseq
        %v1305 = vshrl.u32 %v1304, 7
        %v1306 = vsub.s32 0, %v1305
        %v1307 = vrot.slane %v1303, %v1306
        %v1308 = vlaneseq
        %v1309 = vshrl.u32 %v1308, 7
        %v1310 = vsub.s32 1, %v1309
        %v1311 = vrot.slane %v1303, %v1310
        %v1312 = vlaneseq
        %v1313 = vshrl.u32 %v1312, 7
        %v1314 = vsub.s32 2, %v1313
        %v1315 = vrot.slane %v1303, %v1314
        %v1316 = vlaneseq
        %v1317 = vshrl.u32 %v1316, 7
        %v1318 = vsub.s32 3, %v1317
        %v1319 = vrot.slane %v1303, %v1318
        %vm1320 = vcmp.eq.s32.totalorder %v1307, 1
        %vm1321 = vcmp.eq.s32.totalorder %v1311, 1
        %vm1322 = vcmp.eq.s32.totalorder %v1315, 1
        %vm1323 = vcmp.eq.s32.totalorder %v1319, 1
        %1329 = vrot.lane.b32.xlu0 %v1297, 18
        %v1330 = vpop.permute.xlu0 %1329
        %1331 = vrot.lane.b32.xlu0 %v1298, 18
        %v1332 = vpop.permute.xlu0 %1331
        %1333 = vrot.lane.b32.xlu0 %v1299, 18
        %v1334 = vpop.permute.xlu0 %1333
        %1335 = vrot.lane.b32.xlu0 %v1300, 18
        %v1336 = vpop.permute.xlu0 %1335
        %1337 = vrot.lane.b32.xlu0 %v1301, 18
        %v1338 = vpop.permute.xlu0 %1337
        %vm1339 = vcmask 146432
        %v1340 = vsel %vm1339, %v1330, %v1332
        %v1341 = vsel %vm1339, %v1332, %v1334
        %v1342 = vsel %vm1339, %v1334, %v1336
        %v1343 = vsel %vm1339, %v1336, %v1338
        %v1348 = vsel %vm1320, %v1340, 0.0
        %v1349 = vsel %vm1321, %v1341, 0.0
        %v1350 = vsel %vm1322, %v1342, 0.0
        %v1351 = vsel %vm1323, %v1343, 0.0
        %1352 = vst [vmem:[#allocation3 + $0x1c0] sm:$0xff] %v1348
        %1353 = vst [vmem:[#allocation3 + $0x1c8] sm:$0xff] %v1349
        %1354 = vst [vmem:[#allocation3 + $0x1d0] sm:$0xff] %v1350
        %1355 = vst [vmem:[#allocation3 + $0x1d8] sm:$0xff] %v1351
        %v1356 = vld [vmem:[#allocation2] sm:$0xff]
        %v1357 = vld [vmem:[#allocation2 + $0x8] sm:$0xff]
        %v1358 = vld [vmem:[#allocation2 + $0x10] sm:$0xff]
        %v1359 = vld [vmem:[#allocation2 + $0x18] sm:$0xff]
        %v1360 = vld [vmem:[#allocation2 + $0x20] sm:$0xff]
        %vm1361 = vmand %vm1242, %vm526
        %v1362 = vsel %vm1361, 1, 0
        %v1363 = vlaneseq
        %v1364 = vshrl.u32 %v1363, 7
        %v1365 = vsub.s32 0, %v1364
        %v1366 = vrot.slane %v1362, %v1365
        %v1367 = vlaneseq
        %v1368 = vshrl.u32 %v1367, 7
        %v1369 = vsub.s32 1, %v1368
        %v1370 = vrot.slane %v1362, %v1369
        %v1371 = vlaneseq
        %v1372 = vshrl.u32 %v1371, 7
        %v1373 = vsub.s32 2, %v1372
        %v1374 = vrot.slane %v1362, %v1373
        %v1375 = vlaneseq
        %v1376 = vshrl.u32 %v1375, 7
        %v1377 = vsub.s32 3, %v1376
        %v1378 = vrot.slane %v1362, %v1377
        %vm1379 = vcmp.eq.s32.totalorder %v1366, 1
        %vm1380 = vcmp.eq.s32.totalorder %v1370, 1
        %vm1381 = vcmp.eq.s32.totalorder %v1374, 1
        %vm1382 = vcmp.eq.s32.totalorder %v1378, 1
        %1388 = vrot.lane.b32.xlu0 %v1356, 14
        %v1389 = vpop.permute.xlu0 %1388
        %1390 = vrot.lane.b32.xlu0 %v1357, 14
        %v1391 = vpop.permute.xlu0 %1390
        %1392 = vrot.lane.b32.xlu0 %v1358, 14
        %v1393 = vpop.permute.xlu0 %1392
        %1394 = vrot.lane.b32.xlu0 %v1359, 14
        %v1395 = vpop.permute.xlu0 %1394
        %1396 = vrot.lane.b32.xlu0 %v1360, 14
        %v1397 = vpop.permute.xlu0 %1396
        %vm1398 = vcmask 113664
        %v1399 = vsel %vm1398, %v1389, %v1391
        %v1400 = vsel %vm1398, %v1391, %v1393
        %v1401 = vsel %vm1398, %v1393, %v1395
        %v1402 = vsel %vm1398, %v1395, %v1397
        %v1407 = vsel %vm1379, %v1399, 0.0
        %v1408 = vsel %vm1380, %v1400, 0.0
        %v1409 = vsel %vm1381, %v1401, 0.0
        %v1410 = vsel %vm1382, %v1402, 0.0
        %1411 = vst [vmem:[#allocation3 + $0x1e0] sm:$0xff] %v1407
        %1412 = vst [vmem:[#allocation3 + $0x1e8] sm:$0xff] %v1408
        %1413 = vst [vmem:[#allocation3 + $0x1f0] sm:$0xff] %v1409
        %1414 = vst [vmem:[#allocation3 + $0x1f8] sm:$0xff] %v1410
        %v1415 = vld [vmem:[#allocation2] sm:$0xff]
        %v1416 = vld [vmem:[#allocation2 + $0x8] sm:$0xff]
        %v1417 = vld [vmem:[#allocation2 + $0x10] sm:$0xff]
        %v1418 = vld [vmem:[#allocation2 + $0x18] sm:$0xff]
        %v1419 = vld [vmem:[#allocation2 + $0x20] sm:$0xff]
        %v1420 = vsel %vm1005, 1, 0
        %v1421 = vlaneseq
        %v1422 = vshrl.u32 %v1421, 7
        %v1423 = vsub.s32 0, %v1422
        %v1424 = vrot.slane %v1420, %v1423
        %v1425 = vlaneseq
        %v1426 = vshrl.u32 %v1425, 7
        %v1427 = vsub.s32 1, %v1426
        %v1428 = vrot.slane %v1420, %v1427
        %v1429 = vlaneseq
        %v1430 = vshrl.u32 %v1429, 7
        %v1431 = vsub.s32 2, %v1430
        %v1432 = vrot.slane %v1420, %v1431
        %v1433 = vlaneseq
        %v1434 = vshrl.u32 %v1433, 7
        %v1435 = vsub.s32 3, %v1434
        %v1436 = vrot.slane %v1420, %v1435
        %vm1437 = vcmp.eq.s32.totalorder %v1424, 1
        %vm1438 = vcmp.eq.s32.totalorder %v1428, 1
        %vm1439 = vcmp.eq.s32.totalorder %v1432, 1
        %vm1440 = vcmp.eq.s32.totalorder %v1436, 1
        %1446 = vrot.lane.b32.xlu0 %v1415, 2
        %v1447 = vpop.permute.xlu0 %1446
        %1448 = vrot.lane.b32.xlu0 %v1416, 2
        %v1449 = vpop.permute.xlu0 %1448
        %1450 = vrot.lane.b32.xlu0 %v1417, 2
        %v1451 = vpop.permute.xlu0 %1450
        %1452 = vrot.lane.b32.xlu0 %v1418, 2
        %v1453 = vpop.permute.xlu0 %1452
        %1454 = vrot.lane.b32.xlu0 %v1419, 2
        %v1455 = vpop.permute.xlu0 %1454
        %vm1456 = vcmask 15360
        %v1457 = vsel %vm1456, %v1447, %v1449
        %v1458 = vsel %vm1456, %v1449, %v1451
        %v1459 = vsel %vm1456, %v1451, %v1453
        %v1460 = vsel %vm1456, %v1453, %v1455
        %v1465 = vsel %vm1437, %v1457, 0.0
        %v1466 = vsel %vm1438, %v1458, 0.0
        %v1467 = vsel %vm1439, %v1459, 0.0
        %v1468 = vsel %vm1440, %v1460, 0.0
        %1469 = vst [vmem:[#allocation3 + $0x200] sm:$0xff] %v1465
        %1470 = vst [vmem:[#allocation3 + $0x208] sm:$0xff] %v1466
        %1471 = vst [vmem:[#allocation3 + $0x210] sm:$0xff] %v1467
        %1472 = vst [vmem:[#allocation3 + $0x218] sm:$0xff] %v1468
        %v1473 = vld [vmem:[#allocation2 + $0x8] sm:$0xff]
        %v1474 = vld [vmem:[#allocation2 + $0x10] sm:$0xff]
        %v1475 = vld [vmem:[#allocation2 + $0x18] sm:$0xff]
        %v1476 = vld [vmem:[#allocation2 + $0x20] sm:$0xff]
        %v1477 = vld [vmem:[#allocation2 + $0x28] sm:$0xff]
        %v1478 = vsel %vm1242, 1, 0
        %v1479 = vlaneseq
        %v1480 = vshrl.u32 %v1479, 7
        %v1481 = vsub.s32 0, %v1480
        %v1482 = vrot.slane %v1478, %v1481
        %v1483 = vlaneseq
        %v1484 = vshrl.u32 %v1483, 7
        %v1485 = vsub.s32 1, %v1484
        %v1486 = vrot.slane %v1478, %v1485
        %v1487 = vlaneseq
        %v1488 = vshrl.u32 %v1487, 7
        %v1489 = vsub.s32 2, %v1488
        %v1490 = vrot.slane %v1478, %v1489
        %v1491 = vlaneseq
        %v1492 = vshrl.u32 %v1491, 7
        %v1493 = vsub.s32 3, %v1492
        %v1494 = vrot.slane %v1478, %v1493
        %vm1495 = vcmp.eq.s32.totalorder %v1482, 1
        %vm1496 = vcmp.eq.s32.totalorder %v1486, 1
        %vm1497 = vcmp.eq.s32.totalorder %v1490, 1
        %vm1498 = vcmp.eq.s32.totalorder %v1494, 1
        %1504 = vrot.lane.b32.xlu0 %v1473, 126
        %v1505 = vpop.permute.xlu0 %1504
        %1506 = vrot.lane.b32.xlu0 %v1474, 126
        %v1507 = vpop.permute.xlu0 %1506
        %1508 = vrot.lane.b32.xlu0 %v1475, 126
        %v1509 = vpop.permute.xlu0 %1508
        %1510 = vrot.lane.b32.xlu0 %v1476, 126
        %v1511 = vpop.permute.xlu0 %1510
        %1512 = vrot.lane.b32.xlu0 %v1477, 126
        %v1513 = vpop.permute.xlu0 %1512
        %vm1514 = vcmask 1031168
        %v1515 = vsel %vm1514, %v1505, %v1507
        %v1516 = vsel %vm1514, %v1507, %v1509
        %v1517 = vsel %vm1514, %v1509, %v1511
        %v1518 = vsel %vm1514, %v1511, %v1513
        %v1523 = vsel %vm1495, %v1515, 0.0
        %v1524 = vsel %vm1496, %v1516, 0.0
        %v1525 = vsel %vm1497, %v1517, 0.0
        %v1526 = vsel %vm1498, %v1518, 0.0
        %1527 = vst [vmem:[#allocation3 + $0x220] sm:$0xff] %v1523
        %1528 = vst [vmem:[#allocation3 + $0x228] sm:$0xff] %v1524
        %1529 = vst [vmem:[#allocation3 + $0x230] sm:$0xff] %v1525
        %1530 = vst [vmem:[#allocation3 + $0x238] sm:$0xff] %v1526
        %v1531 = vld [vmem:[#allocation2 + $0x8] sm:$0xff]
        %v1532 = vld [vmem:[#allocation2 + $0x10] sm:$0xff]
        %v1533 = vld [vmem:[#allocation2 + $0x18] sm:$0xff]
        %v1534 = vld [vmem:[#allocation2 + $0x20] sm:$0xff]
        %v1535 = vld [vmem:[#allocation2 + $0x28] sm:$0xff]
        %vm1536 = vmand %vm1005, %vm828
        %v1537 = vsel %vm1536, 1, 0
        %v1538 = vlaneseq
        %v1539 = vshrl.u32 %v1538, 7
        %v1540 = vsub.s32 0, %v1539
        %v1541 = vrot.slane %v1537, %v1540
        %v1542 = vlaneseq
        %v1543 = vshrl.u32 %v1542, 7
        %v1544 = vsub.s32 1, %v1543
        %v1545 = vrot.slane %v1537, %v1544
        %v1546 = vlaneseq
        %v1547 = vshrl.u32 %v1546, 7
        %v1548 = vsub.s32 2, %v1547
        %v1549 = vrot.slane %v1537, %v1548
        %v1550 = vlaneseq
        %v1551 = vshrl.u32 %v1550, 7
        %v1552 = vsub.s32 3, %v1551
        %v1553 = vrot.slane %v1537, %v1552
        %vm1554 = vcmp.eq.s32.totalorder %v1541, 1
        %vm1555 = vcmp.eq.s32.totalorder %v1545, 1
        %vm1556 = vcmp.eq.s32.totalorder %v1549, 1
        %vm1557 = vcmp.eq.s32.totalorder %v1553, 1
        %1563 = vrot.lane.b32.xlu0 %v1531, 114
        %v1564 = vpop.permute.xlu0 %1563
        %1565 = vrot.lane.b32.xlu0 %v1532, 114
        %v1566 = vpop.permute.xlu0 %1565
        %1567 = vrot.lane.b32.xlu0 %v1533, 114
        %v1568 = vpop.permute.xlu0 %1567
        %1569 = vrot.lane.b32.xlu0 %v1534, 114
        %v1570 = vpop.permute.xlu0 %1569
        %1571 = vrot.lane.b32.xlu0 %v1535, 114
        %v1572 = vpop.permute.xlu0 %1571
        %vm1573 = vcmask 932864
        %v1574 = vsel %vm1573, %v1564, %v1566
        %v1575 = vsel %vm1573, %v1566, %v1568
        %v1576 = vsel %vm1573, %v1568, %v1570
        %v1577 = vsel %vm1573, %v1570, %v1572
        %v1582 = vsel %vm1554, %v1574, 0.0
        %v1583 = vsel %vm1555, %v1575, 0.0
        %v1584 = vsel %vm1556, %v1576, 0.0
        %v1585 = vsel %vm1557, %v1577, 0.0
        %1586 = vst [vmem:[#allocation3 + $0x240] sm:$0xff] %v1582
        %1587 = vst [vmem:[#allocation3 + $0x248] sm:$0xff] %v1583
        %1588 = vst [vmem:[#allocation3 + $0x250] sm:$0xff] %v1584
        %1589 = vst [vmem:[#allocation3 + $0x258] sm:$0xff] %v1585
        %v1590 = vld [vmem:[#allocation2 + $0x8] sm:$0xff]
        %v1591 = vld [vmem:[#allocation2 + $0x10] sm:$0xff]
        %v1592 = vld [vmem:[#allocation2 + $0x18] sm:$0xff]
        %v1593 = vld [vmem:[#allocation2 + $0x20] sm:$0xff]
        %v1594 = vld [vmem:[#allocation2 + $0x28] sm:$0xff]
        %vm1595 = vmand %vm1242, %vm828
        %v1596 = vsel %vm1595, 1, 0
        %v1597 = vlaneseq
        %v1598 = vshrl.u32 %v1597, 7
        %v1599 = vsub.s32 0, %v1598
        %v1600 = vrot.slane %v1596, %v1599
        %v1601 = vlaneseq
        %v1602 = vshrl.u32 %v1601, 7
        %v1603 = vsub.s32 1, %v1602
        %v1604 = vrot.slane %v1596, %v1603
        %v1605 = vlaneseq
        %v1606 = vshrl.u32 %v1605, 7
        %v1607 = vsub.s32 2, %v1606
        %v1608 = vrot.slane %v1596, %v1607
        %v1609 = vlaneseq
        %v1610 = vshrl.u32 %v1609, 7
        %v1611 = vsub.s32 3, %v1610
        %v1612 = vrot.slane %v1596, %v1611
        %vm1613 = vcmp.eq.s32.totalorder %v1600, 1
        %vm1614 = vcmp.eq.s32.totalorder %v1604, 1
        %vm1615 = vcmp.eq.s32.totalorder %v1608, 1
        %vm1616 = vcmp.eq.s32.totalorder %v1612, 1
        %1622 = vrot.lane.b32.xlu0 %v1590, 110
        %v1623 = vpop.permute.xlu0 %1622
        %1624 = vrot.lane.b32.xlu0 %v1591, 110
        %v1625 = vpop.permute.xlu0 %1624
        %1626 = vrot.lane.b32.xlu0 %v1592, 110
        %v1627 = vpop.permute.xlu0 %1626
        %1628 = vrot.lane.b32.xlu0 %v1593, 110
        %v1629 = vpop.permute.xlu0 %1628
        %1630 = vrot.lane.b32.xlu0 %v1594, 110
        %v1631 = vpop.permute.xlu0 %1630
        %vm1632 = vcmask 900096
        %v1633 = vsel %vm1632, %v1623, %v1625
        %v1634 = vsel %vm1632, %v1625, %v1627
        %v1635 = vsel %vm1632, %v1627, %v1629
        %v1636 = vsel %vm1632, %v1629, %v1631
        %v1641 = vsel %vm1613, %v1633, 0.0
        %v1642 = vsel %vm1614, %v1634, 0.0
        %v1643 = vsel %vm1615, %v1635, 0.0
        %v1644 = vsel %vm1616, %v1636, 0.0
        %1645 = vst [vmem:[#allocation3 + $0x260] sm:$0xff] %v1641
        %1646 = vst [vmem:[#allocation3 + $0x268] sm:$0xff] %v1642
        %1647 = vst [vmem:[#allocation3 + $0x270] sm:$0xff] %v1643
        %1648 = vst [vmem:[#allocation3 + $0x278] sm:$0xff] %v1644
        %v1649 = vld [vmem:[#allocation2 + $0x8] sm:$0xff]
        %v1650 = vld [vmem:[#allocation2 + $0x10] sm:$0xff]
        %v1651 = vld [vmem:[#allocation2 + $0x18] sm:$0xff]
        %v1652 = vld [vmem:[#allocation2 + $0x20] sm:$0xff]
        %v1653 = vld [vmem:[#allocation2 + $0x28] sm:$0xff]
        %vm1654 = vcmp.lt.s32.totalorder %v307, 224
        %vm1655 = vmand %vm1005, %vm1654
        %v1656 = vsel %vm1655, 1, 0
        %v1657 = vlaneseq
        %v1658 = vshrl.u32 %v1657, 7
        %v1659 = vsub.s32 0, %v1658
        %v1660 = vrot.slane %v1656, %v1659
        %v1661 = vlaneseq
        %v1662 = vshrl.u32 %v1661, 7
        %v1663 = vsub.s32 1, %v1662
        %v1664 = vrot.slane %v1656, %v1663
        %v1665 = vlaneseq
        %v1666 = vshrl.u32 %v1665, 7
        %v1667 = vsub.s32 2, %v1666
        %v1668 = vrot.slane %v1656, %v1667
        %v1669 = vlaneseq
        %v1670 = vshrl.u32 %v1669, 7
        %v1671 = vsub.s32 3, %v1670
        %v1672 = vrot.slane %v1656, %v1671
        %vm1673 = vcmp.eq.s32.totalorder %v1660, 1
        %vm1674 = vcmp.eq.s32.totalorder %v1664, 1
        %vm1675 = vcmp.eq.s32.totalorder %v1668, 1
        %vm1676 = vcmp.eq.s32.totalorder %v1672, 1
        %1682 = vrot.lane.b32.xlu0 %v1649, 98
        %v1683 = vpop.permute.xlu0 %1682
        %1684 = vrot.lane.b32.xlu0 %v1650, 98
        %v1685 = vpop.permute.xlu0 %1684
        %1686 = vrot.lane.b32.xlu0 %v1651, 98
        %v1687 = vpop.permute.xlu0 %1686
        %1688 = vrot.lane.b32.xlu0 %v1652, 98
        %v1689 = vpop.permute.xlu0 %1688
        %1690 = vrot.lane.b32.xlu0 %v1653, 98
        %v1691 = vpop.permute.xlu0 %1690
        %vm1692 = vcmask 801792
        %v1693 = vsel %vm1692, %v1683, %v1685
        %v1694 = vsel %vm1692, %v1685, %v1687
        %v1695 = vsel %vm1692, %v1687, %v1689
        %v1696 = vsel %vm1692, %v1689, %v1691
        %v1701 = vsel %vm1673, %v1693, 0.0
        %v1702 = vsel %vm1674, %v1694, 0.0
        %v1703 = vsel %vm1675, %v1695, 0.0
        %v1704 = vsel %vm1676, %v1696, 0.0
        %1705 = vst [vmem:[#allocation3 + $0x280] sm:$0xff] %v1701
        %1706 = vst [vmem:[#allocation3 + $0x288] sm:$0xff] %v1702
        %1707 = vst [vmem:[#allocation3 + $0x290] sm:$0xff] %v1703
        %1708 = vst [vmem:[#allocation3 + $0x298] sm:$0xff] %v1704
        %v1709 = vld [vmem:[#allocation2 + $0x8] sm:$0xff]
        %v1710 = vld [vmem:[#allocation2 + $0x10] sm:$0xff]
        %v1711 = vld [vmem:[#allocation2 + $0x18] sm:$0xff]
        %v1712 = vld [vmem:[#allocation2 + $0x20] sm:$0xff]
        %v1713 = vld [vmem:[#allocation2 + $0x28] sm:$0xff]
        %vm1714 = vmand %vm525, %vm1654
        %v1715 = vsel %vm1714, 1, 0
        %v1716 = vlaneseq
        %v1717 = vshrl.u32 %v1716, 7
        %v1718 = vsub.s32 0, %v1717
        %v1719 = vrot.slane %v1715, %v1718
        %v1720 = vlaneseq
        %v1721 = vshrl.u32 %v1720, 7
        %v1722 = vsub.s32 1, %v1721
        %v1723 = vrot.slane %v1715, %v1722
        %v1724 = vlaneseq
        %v1725 = vshrl.u32 %v1724, 7
        %v1726 = vsub.s32 2, %v1725
        %v1727 = vrot.slane %v1715, %v1726
        %v1728 = vlaneseq
        %v1729 = vshrl.u32 %v1728, 7
        %v1730 = vsub.s32 3, %v1729
        %v1731 = vrot.slane %v1715, %v1730
        %vm1732 = vcmp.eq.s32.totalorder %v1719, 1
        %vm1733 = vcmp.eq.s32.totalorder %v1723, 1
        %vm1734 = vcmp.eq.s32.totalorder %v1727, 1
        %vm1735 = vcmp.eq.s32.totalorder %v1731, 1
        %1741 = vrot.lane.b32.xlu0 %v1709, 97
        %v1742 = vpop.permute.xlu0 %1741
        %1743 = vrot.lane.b32.xlu0 %v1710, 97
        %v1744 = vpop.permute.xlu0 %1743
        %1745 = vrot.lane.b32.xlu0 %v1711, 97
        %v1746 = vpop.permute.xlu0 %1745
        %1747 = vrot.lane.b32.xlu0 %v1712, 97
        %v1748 = vpop.permute.xlu0 %1747
        %1749 = vrot.lane.b32.xlu0 %v1713, 97
        %v1750 = vpop.permute.xlu0 %1749
        %vm1751 = vcmask 793600
        %v1752 = vsel %vm1751, %v1742, %v1744
        %v1753 = vsel %vm1751, %v1744, %v1746
        %v1754 = vsel %vm1751, %v1746, %v1748
        %v1755 = vsel %vm1751, %v1748, %v1750
        %v1760 = vsel %vm1732, %v1752, 0.0
        %v1761 = vsel %vm1733, %v1753, 0.0
        %v1762 = vsel %vm1734, %v1754, 0.0
        %v1763 = vsel %vm1735, %v1755, 0.0
        %1764 = vst [vmem:[#allocation3 + $0x2a0] sm:$0xff] %v1760
        %1765 = vst [vmem:[#allocation3 + $0x2a8] sm:$0xff] %v1761
        %1766 = vst [vmem:[#allocation3 + $0x2b0] sm:$0xff] %v1762
        %1767 = vst [vmem:[#allocation3 + $0x2b8] sm:$0xff] %v1763
        %v1768 = vld [vmem:[#allocation2 + $0x8] sm:$0xff]
        %v1769 = vld [vmem:[#allocation2 + $0x10] sm:$0xff]
        %v1770 = vld [vmem:[#allocation2 + $0x18] sm:$0xff]
        %v1771 = vld [vmem:[#allocation2 + $0x20] sm:$0xff]
        %v1772 = vld [vmem:[#allocation2 + $0x28] sm:$0xff]
        %v1773 = vsel %vm1654, 1, 0
        %v1774 = vlaneseq
        %v1775 = vshrl.u32 %v1774, 7
        %v1776 = vsub.s32 0, %v1775
        %v1777 = vrot.slane %v1773, %v1776
        %v1778 = vlaneseq
        %v1779 = vshrl.u32 %v1778, 7
        %v1780 = vsub.s32 1, %v1779
        %v1781 = vrot.slane %v1773, %v1780
        %v1782 = vlaneseq
        %v1783 = vshrl.u32 %v1782, 7
        %v1784 = vsub.s32 2, %v1783
        %v1785 = vrot.slane %v1773, %v1784
        %v1786 = vlaneseq
        %v1787 = vshrl.u32 %v1786, 7
        %v1788 = vsub.s32 3, %v1787
        %v1789 = vrot.slane %v1773, %v1788
        %vm1790 = vcmp.eq.s32.totalorder %v1777, 1
        %vm1791 = vcmp.eq.s32.totalorder %v1781, 1
        %vm1792 = vcmp.eq.s32.totalorder %v1785, 1
        %vm1793 = vcmp.eq.s32.totalorder %v1789, 1
        %1799 = vrot.lane.b32.xlu0 %v1768, 96
        %v1800 = vpop.permute.xlu0 %1799
        %1801 = vrot.lane.b32.xlu0 %v1769, 96
        %v1802 = vpop.permute.xlu0 %1801
        %1803 = vrot.lane.b32.xlu0 %v1770, 96
        %v1804 = vpop.permute.xlu0 %1803
        %1805 = vrot.lane.b32.xlu0 %v1771, 96
        %v1806 = vpop.permute.xlu0 %1805
        %1807 = vrot.lane.b32.xlu0 %v1772, 96
        %v1808 = vpop.permute.xlu0 %1807
        %vm1809 = vcmask 785408
        %v1810 = vsel %vm1809, %v1800, %v1802
        %v1811 = vsel %vm1809, %v1802, %v1804
        %v1812 = vsel %vm1809, %v1804, %v1806
        %v1813 = vsel %vm1809, %v1806, %v1808
        %v1818 = vsel %vm1790, %v1810, 0.0
        %v1819 = vsel %vm1791, %v1811, 0.0
        %v1820 = vsel %vm1792, %v1812, 0.0
        %v1821 = vsel %vm1793, %v1813, 0.0
        %1822 = vst [vmem:[#allocation3 + $0x2c0] sm:$0xff] %v1818
        %1823 = vst [vmem:[#allocation3 + $0x2c8] sm:$0xff] %v1819
        %1824 = vst [vmem:[#allocation3 + $0x2d0] sm:$0xff] %v1820
        %1825 = vst [vmem:[#allocation3 + $0x2d8] sm:$0xff] %v1821
        %v1826 = vld [vmem:[#allocation2 + $0x8] sm:$0xff]
        %v1827 = vld [vmem:[#allocation2 + $0x10] sm:$0xff]
        %v1828 = vld [vmem:[#allocation2 + $0x18] sm:$0xff]
        %v1829 = vld [vmem:[#allocation2 + $0x20] sm:$0xff]
        %v1830 = vld [vmem:[#allocation2 + $0x28] sm:$0xff]
        %vm1831 = vmand %vm644, %vm1654
        %v1832 = vsel %vm1831, 1, 0
        %v1833 = vlaneseq
        %v1834 = vshrl.u32 %v1833, 7
        %v1835 = vsub.s32 0, %v1834
        %v1836 = vrot.slane %v1832, %v1835
        %v1837 = vlaneseq
        %v1838 = vshrl.u32 %v1837, 7
        %v1839 = vsub.s32 1, %v1838
        %v1840 = vrot.slane %v1832, %v1839
        %v1841 = vlaneseq
        %v1842 = vshrl.u32 %v1841, 7
        %v1843 = vsub.s32 2, %v1842
        %v1844 = vrot.slane %v1832, %v1843
        %v1845 = vlaneseq
        %v1846 = vshrl.u32 %v1845, 7
        %v1847 = vsub.s32 3, %v1846
        %v1848 = vrot.slane %v1832, %v1847
        %vm1849 = vcmp.eq.s32.totalorder %v1836, 1
        %vm1850 = vcmp.eq.s32.totalorder %v1840, 1
        %vm1851 = vcmp.eq.s32.totalorder %v1844, 1
        %vm1852 = vcmp.eq.s32.totalorder %v1848, 1
        %1858 = vrot.lane.b32.xlu0 %v1826, 95
        %v1859 = vpop.permute.xlu0 %1858
        %1860 = vrot.lane.b32.xlu0 %v1827, 95
        %v1861 = vpop.permute.xlu0 %1860
        %1862 = vrot.lane.b32.xlu0 %v1828, 95
        %v1863 = vpop.permute.xlu0 %1862
        %1864 = vrot.lane.b32.xlu0 %v1829, 95
        %v1865 = vpop.permute.xlu0 %1864
        %1866 = vrot.lane.b32.xlu0 %v1830, 95
        %v1867 = vpop.permute.xlu0 %1866
        %vm1868 = vcmask 777216
        %v1869 = vsel %vm1868, %v1859, %v1861
        %v1870 = vsel %vm1868, %v1861, %v1863
        %v1871 = vsel %vm1868, %v1863, %v1865
        %v1872 = vsel %vm1868, %v1865, %v1867
        %v1877 = vsel %vm1849, %v1869, 0.0
        %v1878 = vsel %vm1850, %v1870, 0.0
        %v1879 = vsel %vm1851, %v1871, 0.0
        %v1880 = vsel %vm1852, %v1872, 0.0
        %1881 = vst [vmem:[#allocation3 + $0x2e0] sm:$0xff] %v1877
        %1882 = vst [vmem:[#allocation3 + $0x2e8] sm:$0xff] %v1878
        %1883 = vst [vmem:[#allocation3 + $0x2f0] sm:$0xff] %v1879
        %1884 = vst [vmem:[#allocation3 + $0x2f8] sm:$0xff] %v1880
        %v1885 = vld [vmem:[#allocation2 + $0x8] sm:$0xff]
        %v1886 = vld [vmem:[#allocation2 + $0x10] sm:$0xff]
        %v1887 = vld [vmem:[#allocation2 + $0x18] sm:$0xff]
        %v1888 = vld [vmem:[#allocation2 + $0x20] sm:$0xff]
        %v1889 = vld [vmem:[#allocation2 + $0x28] sm:$0xff]
        %vm1890 = vmand %vm1242, %vm1654
        %v1891 = vsel %vm1890, 1, 0
        %v1892 = vlaneseq
        %v1893 = vshrl.u32 %v1892, 7
        %v1894 = vsub.s32 0, %v1893
        %v1895 = vrot.slane %v1891, %v1894
        %v1896 = vlaneseq
        %v1897 = vshrl.u32 %v1896, 7
        %v1898 = vsub.s32 1, %v1897
        %v1899 = vrot.slane %v1891, %v1898
        %v1900 = vlaneseq
        %v1901 = vshrl.u32 %v1900, 7
        %v1902 = vsub.s32 2, %v1901
        %v1903 = vrot.slane %v1891, %v1902
        %v1904 = vlaneseq
        %v1905 = vshrl.u32 %v1904, 7
        %v1906 = vsub.s32 3, %v1905
        %v1907 = vrot.slane %v1891, %v1906
        %vm1908 = vcmp.eq.s32.totalorder %v1895, 1
        %vm1909 = vcmp.eq.s32.totalorder %v1899, 1
        %vm1910 = vcmp.eq.s32.totalorder %v1903, 1
        %vm1911 = vcmp.eq.s32.totalorder %v1907, 1
        %1917 = vrot.lane.b32.xlu0 %v1885, 94
        %v1918 = vpop.permute.xlu0 %1917
        %1919 = vrot.lane.b32.xlu0 %v1886, 94
        %v1920 = vpop.permute.xlu0 %1919
        %1921 = vrot.lane.b32.xlu0 %v1887, 94
        %v1922 = vpop.permute.xlu0 %1921
        %1923 = vrot.lane.b32.xlu0 %v1888, 94
        %v1924 = vpop.permute.xlu0 %1923
        %1925 = vrot.lane.b32.xlu0 %v1889, 94
        %v1926 = vpop.permute.xlu0 %1925
        %vm1927 = vcmask 769024
        %v1928 = vsel %vm1927, %v1918, %v1920
        %v1929 = vsel %vm1927, %v1920, %v1922
        %v1930 = vsel %vm1927, %v1922, %v1924
        %v1931 = vsel %vm1927, %v1924, %v1926
        %v1936 = vsel %vm1908, %v1928, 0.0
        %v1937 = vsel %vm1909, %v1929, 0.0
        %v1938 = vsel %vm1910, %v1930, 0.0
        %v1939 = vsel %vm1911, %v1931, 0.0
        %1940 = vst [vmem:[#allocation3 + $0x300] sm:$0xff] %v1936
        %1941 = vst [vmem:[#allocation3 + $0x308] sm:$0xff] %v1937
        %1942 = vst [vmem:[#allocation3 + $0x310] sm:$0xff] %v1938
        %1943 = vst [vmem:[#allocation3 + $0x318] sm:$0xff] %v1939
        %v1944 = vld [vmem:[#allocation2 + $0x38] sm:$0xf]
        %v1945 = vld [vmem:[#allocation2 + $0x40] sm:$0xf]
        %v1946 = vld [vmem:[#allocation2 + $0x48] sm:$0xf]
        %v1947 = vld [vmem:[#allocation2 + $0x50] sm:$0xf]
        %v1948 = vld [vmem:[#allocation2 + $0x30] sm:$0xf]
        %1954 = vrot.lane.b32.xlu0 %v1948, 17
        %v1955 = vpop.permute.xlu0 %1954
        %1956 = vrot.lane.b32.xlu0 %v1944, 17
        %v1957 = vpop.permute.xlu0 %1956
        %1958 = vrot.lane.b32.xlu0 %v1945, 17
        %v1959 = vpop.permute.xlu0 %1958
        %1960 = vrot.lane.b32.xlu0 %v1946, 17
        %v1961 = vpop.permute.xlu0 %1960
        %1962 = vrot.lane.b32.xlu0 %v1947, 17
        %v1963 = vpop.permute.xlu0 %1962
        %v1964 = vsel %vm564, %v1955, %v1957
        %v1965 = vsel %vm564, %v1957, %v1959
        %v1966 = vsel %vm564, %v1959, %v1961
        %v1967 = vsel %vm564, %v1961, %v1963
        %v1972 = vsel %vm545, %v1964, %v1944
        %v1973 = vsel %vm546, %v1965, %v1945
        %v1974 = vsel %vm547, %v1966, %v1946
        %v1975 = vsel %vm548, %v1967, %v1947
        %v1976 = vmax.f32 %v1944, %v1972
        %v1977 = vmax.f32 %v1945, %v1973
        %v1978 = vmax.f32 %v1946, %v1974
        %v1979 = vmax.f32 %v1947, %v1975
        %1980 = vrot.lane.b32.xlu0 %v1948, 16
        %v1981 = vpop.permute.xlu0 %1980
        %1982 = vrot.lane.b32.xlu0 %v1944, 16
        %v1983 = vpop.permute.xlu0 %1982
        %1984 = vrot.lane.b32.xlu0 %v1945, 16
        %v1985 = vpop.permute.xlu0 %1984
        %1986 = vrot.lane.b32.xlu0 %v1946, 16
        %v1987 = vpop.permute.xlu0 %1986
        %1988 = vrot.lane.b32.xlu0 %v1947, 16
        %v1989 = vpop.permute.xlu0 %1988
        %v1990 = vsel %vm622, %v1981, %v1983
        %v1991 = vsel %vm622, %v1983, %v1985
        %v1992 = vsel %vm622, %v1985, %v1987
        %v1993 = vsel %vm622, %v1987, %v1989
        %v1998 = vsel %vm603, %v1990, %v1944
        %v1999 = vsel %vm604, %v1991, %v1945
        %v2000 = vsel %vm605, %v1992, %v1946
        %v2001 = vsel %vm606, %v1993, %v1947
        %v2002 = vmax.f32 %v1976, %v1998
        %v2003 = vmax.f32 %v1977, %v1999
        %v2004 = vmax.f32 %v1978, %v2000
        %v2005 = vmax.f32 %v1979, %v2001
        %2006 = vrot.lane.b32.xlu0 %v1948, 15
        %v2007 = vpop.permute.xlu0 %2006
        %2008 = vrot.lane.b32.xlu0 %v1944, 15
        %v2009 = vpop.permute.xlu0 %2008
        %2010 = vrot.lane.b32.xlu0 %v1945, 15
        %v2011 = vpop.permute.xlu0 %2010
        %2012 = vrot.lane.b32.xlu0 %v1946, 15
        %v2013 = vpop.permute.xlu0 %2012
        %2014 = vrot.lane.b32.xlu0 %v1947, 15
        %v2015 = vpop.permute.xlu0 %2014
        %v2016 = vsel %vm682, %v2007, %v2009
        %v2017 = vsel %vm682, %v2009, %v2011
        %v2018 = vsel %vm682, %v2011, %v2013
        %v2019 = vsel %vm682, %v2013, %v2015
        %v2024 = vsel %vm663, %v2016, %v1944
        %v2025 = vsel %vm664, %v2017, %v1945
        %v2026 = vsel %vm665, %v2018, %v1946
        %v2027 = vsel %vm666, %v2019, %v1947
        %v2028 = vmax.f32 %v2002, %v2024
        %v2029 = vmax.f32 %v2003, %v2025
        %v2030 = vmax.f32 %v2004, %v2026
        %v2031 = vmax.f32 %v2005, %v2027
        %2032 = vrot.lane.b32.xlu0 %v1948, 1
        %v2033 = vpop.permute.xlu0 %2032
        %2034 = vrot.lane.b32.xlu0 %v1944, 1
        %v2035 = vpop.permute.xlu0 %2034
        %2036 = vrot.lane.b32.xlu0 %v1945, 1
        %v2037 = vpop.permute.xlu0 %2036
        %2038 = vrot.lane.b32.xlu0 %v1946, 1
        %v2039 = vpop.permute.xlu0 %2038
        %2040 = vrot.lane.b32.xlu0 %v1947, 1
        %v2041 = vpop.permute.xlu0 %2040
        %v2042 = vsel %vm740, %v2033, %v2035
        %v2043 = vsel %vm740, %v2035, %v2037
        %v2044 = vsel %vm740, %v2037, %v2039
        %v2045 = vsel %vm740, %v2039, %v2041
        %v2050 = vsel %vm721, %v2042, %v1944
        %v2051 = vsel %vm722, %v2043, %v1945
        %v2052 = vsel %vm723, %v2044, %v1946
        %v2053 = vsel %vm724, %v2045, %v1947
        %v2054 = vmax.f32 %v2028, %v2050
        %v2055 = vmax.f32 %v2029, %v2051
        %v2056 = vmax.f32 %v2030, %v2052
        %v2057 = vmax.f32 %v2031, %v2053
        %v2058 = vld [vmem:[#allocation2 + $0x58] sm:$0xf]
        %2060 = vrot.lane.b32.xlu0 %v1944, 127
        %v2061 = vpop.permute.xlu0 %2060
        %2062 = vrot.lane.b32.xlu0 %v1945, 127
        %v2063 = vpop.permute.xlu0 %2062
        %2064 = vrot.lane.b32.xlu0 %v1946, 127
        %v2065 = vpop.permute.xlu0 %2064
        %2066 = vrot.lane.b32.xlu0 %v1947, 127
        %v2067 = vpop.permute.xlu0 %2066
        %2068 = vrot.lane.b32.xlu0 %v2058, 127
        %v2069 = vpop.permute.xlu0 %2068
        %v2070 = vsel %vm806, %v2061, %v2063
        %v2071 = vsel %vm806, %v2063, %v2065
        %v2072 = vsel %vm806, %v2065, %v2067
        %v2073 = vsel %vm806, %v2067, %v2069
        %v2078 = vsel %vm787, %v2070, %v1944
        %v2079 = vsel %vm788, %v2071, %v1945
        %v2080 = vsel %vm789, %v2072, %v1946
        %v2081 = vsel %vm790, %v2073, %v1947
        %v2082 = vmax.f32 %v2054, %v2078
        %v2083 = vmax.f32 %v2055, %v2079
        %v2084 = vmax.f32 %v2056, %v2080
        %v2085 = vmax.f32 %v2057, %v2081
        %2086 = vrot.lane.b32.xlu0 %v1944, 113
        %v2087 = vpop.permute.xlu0 %2086
        %2088 = vrot.lane.b32.xlu0 %v1945, 113
        %v2089 = vpop.permute.xlu0 %2088
        %2090 = vrot.lane.b32.xlu0 %v1946, 113
        %v2091 = vpop.permute.xlu0 %2090
        %2092 = vrot.lane.b32.xlu0 %v1947, 113
        %v2093 = vpop.permute.xlu0 %2092
        %2094 = vrot.lane.b32.xlu0 %v2058, 113
        %v2095 = vpop.permute.xlu0 %2094
        %v2096 = vsel %vm866, %v2087, %v2089
        %v2097 = vsel %vm866, %v2089, %v2091
        %v2098 = vsel %vm866, %v2091, %v2093
        %v2099 = vsel %vm866, %v2093, %v2095
        %v2104 = vsel %vm847, %v2096, %v1944
        %v2105 = vsel %vm848, %v2097, %v1945
        %v2106 = vsel %vm849, %v2098, %v1946
        %v2107 = vsel %vm850, %v2099, %v1947
        %v2108 = vmax.f32 %v2082, %v2104
        %v2109 = vmax.f32 %v2083, %v2105
        %v2110 = vmax.f32 %v2084, %v2106
        %v2111 = vmax.f32 %v2085, %v2107
        %2112 = vrot.lane.b32.xlu0 %v1944, 112
        %v2113 = vpop.permute.xlu0 %2112
        %2114 = vrot.lane.b32.xlu0 %v1945, 112
        %v2115 = vpop.permute.xlu0 %2114
        %2116 = vrot.lane.b32.xlu0 %v1946, 112
        %v2117 = vpop.permute.xlu0 %2116
        %2118 = vrot.lane.b32.xlu0 %v1947, 112
        %v2119 = vpop.permute.xlu0 %2118
        %2120 = vrot.lane.b32.xlu0 %v2058, 112
        %v2121 = vpop.permute.xlu0 %2120
        %v2122 = vsel %vm924, %v2113, %v2115
        %v2123 = vsel %vm924, %v2115, %v2117
        %v2124 = vsel %vm924, %v2117, %v2119
        %v2125 = vsel %vm924, %v2119, %v2121
        %v2130 = vsel %vm905, %v2122, %v1944
        %v2131 = vsel %vm906, %v2123, %v1945
        %v2132 = vsel %vm907, %v2124, %v1946
        %v2133 = vsel %vm908, %v2125, %v1947
        %v2134 = vmax.f32 %v2108, %v2130
        %v2135 = vmax.f32 %v2109, %v2131
        %v2136 = vmax.f32 %v2110, %v2132
        %v2137 = vmax.f32 %v2111, %v2133
        %2138 = vrot.lane.b32.xlu0 %v1944, 111
        %v2139 = vpop.permute.xlu0 %2138
        %2140 = vrot.lane.b32.xlu0 %v1945, 111
        %v2141 = vpop.permute.xlu0 %2140
        %2142 = vrot.lane.b32.xlu0 %v1946, 111
        %v2143 = vpop.permute.xlu0 %2142
        %2144 = vrot.lane.b32.xlu0 %v1947, 111
        %v2145 = vpop.permute.xlu0 %2144
        %2146 = vrot.lane.b32.xlu0 %v2058, 111
        %v2147 = vpop.permute.xlu0 %2146
        %v2148 = vsel %vm983, %v2139, %v2141
        %v2149 = vsel %vm983, %v2141, %v2143
        %v2150 = vsel %vm983, %v2143, %v2145
        %v2151 = vsel %vm983, %v2145, %v2147
        %v2156 = vsel %vm964, %v2148, %v1944
        %v2157 = vsel %vm965, %v2149, %v1945
        %v2158 = vsel %vm966, %v2150, %v1946
        %v2159 = vsel %vm967, %v2151, %v1947
        %v2160 = vmax.f32 %v2134, %v2156
        %v2161 = vmax.f32 %v2135, %v2157
        %v2162 = vmax.f32 %v2136, %v2158
        %v2163 = vmax.f32 %v2137, %v2159
        %2164 = vst [vmem:[#allocation3 + $0x320] sm:$0xf] %v2160
        %2165 = vst [vmem:[#allocation3 + $0x328] sm:$0xf] %v2161
        %2166 = vst [vmem:[#allocation3 + $0x330] sm:$0xf] %v2162
        %2167 = vst [vmem:[#allocation3 + $0x338] sm:$0xf] %v2163
        %v2168 = vld [vmem:[%s5] sm:$0xff]
        %v2169 = vld [vmem:[%s5 + $0x8] sm:$0xff]
        %v2170 = vld [vmem:[%s5 + $0x10] sm:$0xff]
        %v2171 = vld [vmem:[%s5 + $0x18] sm:$0xff]
        %v2172 = vld [vmem:[%s5 + $0x20] sm:$0xff]
        %v2173 = vld [vmem:[%s5 + $0x28] sm:$0xff]
        %v2174 = vld [vmem:[#allocation3] sm:$0xff]
        %v2175 = vld [vmem:[#allocation3 + $0x8] sm:$0xff]
        %v2176 = vld [vmem:[#allocation3 + $0x10] sm:$0xff]
        %v2177 = vld [vmem:[#allocation3 + $0x18] sm:$0xff]
        %v2178 = vld [vmem:[#allocation3 + $0x20] sm:$0xff]
        %v2179 = vld [vmem:[#allocation3 + $0x28] sm:$0xff]
        %v2180 = vld [vmem:[#allocation3 + $0x30] sm:$0xff]
        %v2181 = vld [vmem:[#allocation3 + $0x38] sm:$0xff]
        %v2182 = vld [vmem:[#allocation3 + $0x40] sm:$0xff]
        %v2183 = vld [vmem:[#allocation3 + $0x48] sm:$0xff]
        %v2184 = vld [vmem:[#allocation3 + $0x50] sm:$0xff]
        %v2185 = vld [vmem:[#allocation3 + $0x58] sm:$0xff]
        %v2186 = vld [vmem:[#allocation3 + $0x60] sm:$0xff]
        %v2187 = vld [vmem:[#allocation3 + $0x68] sm:$0xff]
        %v2188 = vld [vmem:[#allocation3 + $0x70] sm:$0xff]
        %v2189 = vld [vmem:[#allocation3 + $0x78] sm:$0xff]
        %v2190 = vld [vmem:[#allocation3 + $0x80] sm:$0xff]
        %v2191 = vld [vmem:[#allocation3 + $0x88] sm:$0xff]
        %v2192 = vld [vmem:[#allocation3 + $0x90] sm:$0xff]
        %v2193 = vld [vmem:[#allocation3 + $0x98] sm:$0xff]
        %v2194 = vld [vmem:[#allocation3 + $0xa0] sm:$0xff]
        %v2195 = vld [vmem:[#allocation3 + $0xa8] sm:$0xff]
        %v2196 = vld [vmem:[#allocation3 + $0xb0] sm:$0xff]
        %v2197 = vld [vmem:[#allocation3 + $0xb8] sm:$0xff]
        %v2198 = vld [vmem:[#allocation3 + $0xc0] sm:$0xff]
        %v2199 = vld [vmem:[#allocation3 + $0xc8] sm:$0xff]
        %v2200 = vld [vmem:[#allocation3 + $0xd0] sm:$0xff]
        %v2201 = vld [vmem:[#allocation3 + $0xd8] sm:$0xff]
        %v2202 = vld [vmem:[#allocation3 + $0xe0] sm:$0xff]
        %v2203 = vld [vmem:[#allocation3 + $0xe8] sm:$0xff]
        %v2204 = vld [vmem:[#allocation3 + $0xf0] sm:$0xff]
        %v2205 = vld [vmem:[#allocation3 + $0xf8] sm:$0xff]
        %v2206 = vld [vmem:[#allocation3 + $0x100] sm:$0xff]
        %v2207 = vld [vmem:[#allocation3 + $0x108] sm:$0xff]
        %v2208 = vld [vmem:[#allocation3 + $0x110] sm:$0xff]
        %v2209 = vld [vmem:[#allocation3 + $0x118] sm:$0xff]
        %v2210 = vld [vmem:[#allocation3 + $0x120] sm:$0xff]
        %v2211 = vld [vmem:[#allocation3 + $0x128] sm:$0xff]
        %v2212 = vld [vmem:[#allocation3 + $0x130] sm:$0xff]
        %v2213 = vld [vmem:[#allocation3 + $0x138] sm:$0xff]
        %v2214 = vld [vmem:[#allocation3 + $0x140] sm:$0xff]
        %v2215 = vld [vmem:[#allocation3 + $0x148] sm:$0xff]
        %v2216 = vld [vmem:[#allocation3 + $0x150] sm:$0xff]
        %v2217 = vld [vmem:[#allocation3 + $0x158] sm:$0xff]
        %v2218 = vld [vmem:[#allocation3 + $0x160] sm:$0xff]
        %v2219 = vld [vmem:[#allocation3 + $0x168] sm:$0xff]
        %v2220 = vld [vmem:[#allocation3 + $0x170] sm:$0xff]
        %v2221 = vld [vmem:[#allocation3 + $0x178] sm:$0xff]
        %v2222 = vld [vmem:[#allocation3 + $0x180] sm:$0xff]
        %v2223 = vld [vmem:[#allocation3 + $0x188] sm:$0xff]
        %v2224 = vld [vmem:[#allocation3 + $0x190] sm:$0xff]
        %v2225 = vld [vmem:[#allocation3 + $0x198] sm:$0xff]
        %v2226 = vld [vmem:[#allocation3 + $0x1a0] sm:$0xff]
        %v2227 = vld [vmem:[#allocation3 + $0x1a8] sm:$0xff]
        %v2228 = vld [vmem:[#allocation3 + $0x1b0] sm:$0xff]
        %v2229 = vld [vmem:[#allocation3 + $0x1b8] sm:$0xff]
        %v2230 = vld [vmem:[#allocation3 + $0x1c0] sm:$0xff]
        %v2231 = vld [vmem:[#allocation3 + $0x1c8] sm:$0xff]
        %v2232 = vld [vmem:[#allocation3 + $0x1d0] sm:$0xff]
        %v2233 = vld [vmem:[#allocation3 + $0x1d8] sm:$0xff]
        %v2234 = vld [vmem:[#allocation3 + $0x1e0] sm:$0xff]
        %v2235 = vld [vmem:[#allocation3 + $0x1e8] sm:$0xff]
        %v2236 = vld [vmem:[#allocation3 + $0x1f0] sm:$0xff]
        %v2237 = vld [vmem:[#allocation3 + $0x1f8] sm:$0xff]
        %v2238 = vld [vmem:[#allocation3 + $0x200] sm:$0xff]
        %v2239 = vld [vmem:[#allocation3 + $0x208] sm:$0xff]
        %v2240 = vld [vmem:[#allocation3 + $0x210] sm:$0xff]
        %v2241 = vld [vmem:[#allocation3 + $0x218] sm:$0xff]
        %v2242 = vld [vmem:[#allocation3 + $0x220] sm:$0xff]
        %v2243 = vld [vmem:[#allocation3 + $0x228] sm:$0xff]
        %v2244 = vld [vmem:[#allocation3 + $0x230] sm:$0xff]
        %v2245 = vld [vmem:[#allocation3 + $0x238] sm:$0xff]
        %v2246 = vld [vmem:[#allocation3 + $0x240] sm:$0xff]
        %v2247 = vld [vmem:[#allocation3 + $0x248] sm:$0xff]
        %v2248 = vld [vmem:[#allocation3 + $0x250] sm:$0xff]
        %v2249 = vld [vmem:[#allocation3 + $0x258] sm:$0xff]
        %v2250 = vld [vmem:[#allocation3 + $0x260] sm:$0xff]
        %v2251 = vld [vmem:[#allocation3 + $0x268] sm:$0xff]
        %v2252 = vld [vmem:[#allocation3 + $0x270] sm:$0xff]
        %v2253 = vld [vmem:[#allocation3 + $0x278] sm:$0xff]
        %v2254 = vld [vmem:[#allocation3 + $0x280] sm:$0xff]
        %v2255 = vld [vmem:[#allocation3 + $0x288] sm:$0xff]
        %v2256 = vld [vmem:[#allocation3 + $0x290] sm:$0xff]
        %v2257 = vld [vmem:[#allocation3 + $0x298] sm:$0xff]
        %v2258 = vld [vmem:[#allocation3 + $0x2a0] sm:$0xff]
        %v2259 = vld [vmem:[#allocation3 + $0x2a8] sm:$0xff]
        %v2260 = vld [vmem:[#allocation3 + $0x2b0] sm:$0xff]
        %v2261 = vld [vmem:[#allocation3 + $0x2b8] sm:$0xff]
        %v2262 = vld [vmem:[#allocation3 + $0x2c0] sm:$0xff]
        %v2263 = vld [vmem:[#allocation3 + $0x2c8] sm:$0xff]
        %v2264 = vld [vmem:[#allocation3 + $0x2d0] sm:$0xff]
        %v2265 = vld [vmem:[#allocation3 + $0x2d8] sm:$0xff]
        %v2266 = vld [vmem:[#allocation3 + $0x2e0] sm:$0xff]
        %v2267 = vld [vmem:[#allocation3 + $0x2e8] sm:$0xff]
        %v2268 = vld [vmem:[#allocation3 + $0x2f0] sm:$0xff]
        %v2269 = vld [vmem:[#allocation3 + $0x2f8] sm:$0xff]
        %v2270 = vld [vmem:[#allocation3 + $0x300] sm:$0xff]
        %v2271 = vld [vmem:[#allocation3 + $0x308] sm:$0xff]
        %v2272 = vld [vmem:[#allocation3 + $0x310] sm:$0xff]
        %v2273 = vld [vmem:[#allocation3 + $0x318] sm:$0xff]
        %v2274 = vld [vmem:[#allocation3 + $0x320] sm:$0xf]
        %v2275 = vld [vmem:[#allocation3 + $0x328] sm:$0xf]
        %v2276 = vld [vmem:[#allocation3 + $0x330] sm:$0xf]
        %v2277 = vld [vmem:[#allocation3 + $0x338] sm:$0xf]
        %v2278 = vld [vmem:[%s6] sm:$0xff]
        %v2279 = vld [vmem:[%s6 + $0x8] sm:$0xff]
        %v2280 = vld [vmem:[%s6 + $0x10] sm:$0xff]
        %2282 = vset.pattern.permute.xlu0 0
        %2283 = vperm.xlu0 %2282, %v2278
        %v2284 = vpop.permute.xlu0 %2283
        %2287 = vset.pattern.permute.xlu0 0
        %2288 = vperm.xlu0 %2287, %v2279
        %v2289 = vpop.permute.xlu0 %2288
        %2292 = vset.pattern.permute.xlu0 0
        %2293 = vperm.xlu0 %2292, %v2280
        %v2294 = vpop.permute.xlu0 %2293
        %vm2296 = vcmask 621568
        %v2298 = vsel %vm2296, %v2169, 0
        %v2301 = vsel %vm2296, %v2171, 0
        %v2304 = vsel %vm2296, %v2173, 0
        %v2307 = vsel %vm335, %v2274, 0
        %v2310 = vsel %vm335, %v2275, 0
        %v2313 = vsel %vm335, %v2276, 0
        %v2316 = vsel %vm335, %v2277, 0
        %2318 = vmatprep.subr.mxu0 %v2175
        %2319 = vmatpush1.msra.mxu0 %v2174
        %2320 = vmatprep.subr.mxu0 %v2179
        %2321 = vmatpush1.msra.mxu0 %v2178
        %2322 = vmatprep.subr.mxu0 %v2183
        %2323 = vmatpush1.msra.mxu0 %v2182
        %2324 = vmatprep.subr.mxu0 %v2187
        %2325 = vmatpush1.msra.mxu0 %v2186
        %2326 = vmatprep.subr.mxu0 %v2191
        %2327 = vmatpush1.msra.mxu0 %v2190
        %2328 = vmatprep.subr.mxu0 %v2195
        %2329 = vmatpush1.msra.mxu0 %v2194
        %2330 = vmatprep.subr.mxu0 %v2199
        %2331 = vmatpush1.msra.mxu0 %v2198
        %2332 = vmatprep.subr.mxu0 %v2203
        %2333 = vmatpush1.msra.mxu0 %v2202
        %2334 = vmatprep.subr.mxu0 %v2207
        %2335 = vmatpush1.msra.mxu0 %v2206
        %2336 = vmatprep.subr.mxu0 %v2211
        %2337 = vmatpush1.msra.mxu0 %v2210
        %2338 = vmatprep.subr.mxu0 %v2215
        %2339 = vmatpush1.msra.mxu0 %v2214
        %2340 = vmatprep.subr.mxu0 %v2219
        %2341 = vmatpush1.msra.mxu0 %v2218
        %2342 = vmatprep.subr.mxu0 %v2223
        %2343 = vmatpush1.msra.mxu0 %v2222
        %2344 = vmatprep.subr.mxu0 %v2227
        %2345 = vmatpush1.msra.mxu0 %v2226
        %2346 = vmatprep.subr.mxu0 %v2231
        %2347 = vmatpush1.msra.mxu0 %v2230
        %2348 = vmatprep.subr.mxu0 %v2235
        %2349 = vmatpush1.msra.mxu0 %v2234
        %2350 = vmatprep.subr.mxu0 %v2239
        %2351 = vmatpush1.msra.mxu0 %v2238
        %2352 = vmatprep.subr.mxu0 %v2243
        %2353 = vmatpush1.msra.mxu0 %v2242
        %2354 = vmatprep.subr.mxu0 %v2247
        %2355 = vmatpush1.msra.mxu0 %v2246
        %2356 = vmatprep.subr.mxu0 %v2251
        %2357 = vmatpush1.msra.mxu0 %v2250
        %2358 = vmatprep.subr.mxu0 %v2255
        %2359 = vmatpush1.msra.mxu0 %v2254
        %2360 = vmatprep.subr.mxu0 %v2259
        %2361 = vmatpush1.msra.mxu0 %v2258
        %2362 = vmatprep.subr.mxu0 %v2263
        %2363 = vmatpush1.msra.mxu0 %v2262
        %2364 = vmatprep.subr.mxu0 %v2267
        %2365 = vmatpush1.msra.mxu0 %v2266
        %2366 = vmatprep.subr.mxu0 %v2271
        %2367 = vmatpush1.msra.mxu0 %v2270
        %2368 = vmatprep.subr.mxu0 %v2310
        %2369 = vmatpush1.msra.mxu0 %v2307
        %2370 = vmatprep.subr.mxu0 0.0
        %2371 = vmatpush1.msra.mxu0 0.0
        %2372 = vmatprep.subr.mxu0 0.0
        %2373 = vmatpush1.msra.mxu0 0.0
        %2374 = vmatprep.subr.mxu0 0.0
        %2375 = vmatpush1.msra.mxu0 0.0
        %2376 = vmatprep.subr.mxu0 0.0
        %2377 = vmatpush1.msra.mxu0 0.0
        %2378 = vmatprep.subr.mxu0 0.0
        %2379 = vmatpush1.msra.mxu0 0.0
        %2380 = vmatprep.subr.mxu0 0.0
        %2381 = vmatpush1.msra.mxu0 0.0
        %2382 = vmatprep.mubr.f32.mxu0 %v2298
        %2383 = vmatmul.mubr.f32.gmra.mrb[0].mxu0 %v2168
        %v2384 = vpop.f32.mrb[0].mxu0
        %v2385 = vadd.f32 %v2284, %v2384
        %v2386 = vpop.f32.mrb[0].mxu0
        %v2387 = vadd.f32 %v2284, %v2386
        %2388 = vmatprep.mubr.f32.mxu0 %v2301
        %2389 = vmatmul.mubr.f32.gmra.mrb[0].mxu0 %v2170
        %v2390 = vpop.f32.mrb[0].mxu0
        %v2391 = vadd.f32 %v2289, %v2390
        %v2392 = vpop.f32.mrb[0].mxu0
        %v2393 = vadd.f32 %v2289, %v2392
        %2394 = vmatprep.mubr.f32.mxu0 %v2304
        %2395 = vmatmul.mubr.f32.gmra.mrb[0].mxu0 %v2172
        %v2396 = vpop.f32.mrb[0].mxu0
        %v2397 = vadd.f32 %v2294, %v2396
        %v2398 = vpop.f32.mrb[0].mxu0
        %v2399 = vadd.f32 %v2294, %v2398
        %2400 = vdwg.mxu0
        %2401 = vmatprep.subr.mxu0 %v2177
        %2402 = vmatpush1.msra.mxu0 %v2176
        %2403 = vmatprep.subr.mxu0 %v2181
        %2404 = vmatpush1.msra.mxu0 %v2180
        %2405 = vmatprep.subr.mxu0 %v2185
        %2406 = vmatpush1.msra.mxu0 %v2184
        %2407 = vmatprep.subr.mxu0 %v2189
        %2408 = vmatpush1.msra.mxu0 %v2188
        %2409 = vmatprep.subr.mxu0 %v2193
        %2410 = vmatpush1.msra.mxu0 %v2192
        %2411 = vmatprep.subr.mxu0 %v2197
        %2412 = vmatpush1.msra.mxu0 %v2196
        %2413 = vmatprep.subr.mxu0 %v2201
        %2414 = vmatpush1.msra.mxu0 %v2200
        %2415 = vmatprep.subr.mxu0 %v2205
        %2416 = vmatpush1.msra.mxu0 %v2204
        %2417 = vmatprep.subr.mxu0 %v2209
        %2418 = vmatpush1.msra.mxu0 %v2208
        %2419 = vmatprep.subr.mxu0 %v2213
        %2420 = vmatpush1.msra.mxu0 %v2212
        %2421 = vmatprep.subr.mxu0 %v2217
        %2422 = vmatpush1.msra.mxu0 %v2216
        %2423 = vmatprep.subr.mxu0 %v2221
        %2424 = vmatpush1.msra.mxu0 %v2220
        %2425 = vmatprep.subr.mxu0 %v2225
        %2426 = vmatpush1.msra.mxu0 %v2224
        %2427 = vmatprep.subr.mxu0 %v2229
        %2428 = vmatpush1.msra.mxu0 %v2228
        %2429 = vmatprep.subr.mxu0 %v2233
        %2430 = vmatpush1.msra.mxu0 %v2232
        %2431 = vmatprep.subr.mxu0 %v2237
        %2432 = vmatpush1.msra.mxu0 %v2236
        %2433 = vmatprep.subr.mxu0 %v2241
        %2434 = vmatpush1.msra.mxu0 %v2240
        %2435 = vmatprep.subr.mxu0 %v2245
        %2436 = vmatpush1.msra.mxu0 %v2244
        %2437 = vmatprep.subr.mxu0 %v2249
        %2438 = vmatpush1.msra.mxu0 %v2248
        %2439 = vmatprep.subr.mxu0 %v2253
        %2440 = vmatpush1.msra.mxu0 %v2252
        %2441 = vmatprep.subr.mxu0 %v2257
        %2442 = vmatpush1.msra.mxu0 %v2256
        %2443 = vmatprep.subr.mxu0 %v2261
        %2444 = vmatpush1.msra.mxu0 %v2260
        %2445 = vmatprep.subr.mxu0 %v2265
        %2446 = vmatpush1.msra.mxu0 %v2264
        %2447 = vmatprep.subr.mxu0 %v2269
        %2448 = vmatpush1.msra.mxu0 %v2268
        %2449 = vmatprep.subr.mxu0 %v2273
        %2450 = vmatpush1.msra.mxu0 %v2272
        %2451 = vmatprep.subr.mxu0 %v2316
        %2452 = vmatpush1.msra.mxu0 %v2313
        %2453 = vmatprep.subr.mxu0 0.0
        %2454 = vmatpush1.msra.mxu0 0.0
        %2455 = vmatprep.subr.mxu0 0.0
        %2456 = vmatpush1.msra.mxu0 0.0
        %2457 = vmatprep.subr.mxu0 0.0
        %2458 = vmatpush1.msra.mxu0 0.0
        %2459 = vmatprep.subr.mxu0 0.0
        %2460 = vmatpush1.msra.mxu0 0.0
        %2461 = vmatprep.subr.mxu0 0.0
        %2462 = vmatpush1.msra.mxu0 0.0
        %2463 = vmatprep.subr.mxu0 0.0
        %2464 = vmatpush1.msra.mxu0 0.0
        %2465 = vmatprep.mubr.f32.mxu0 %v2298
        %2466 = vmatmul.mubr.f32.gmra.mrb[0].mxu0 %v2168
        %v2467 = vpop.f32.mrb[0].mxu0
        %v2468 = vadd.f32 %v2284, %v2467
        %v2469 = vpop.f32.mrb[0].mxu0
        %v2470 = vadd.f32 %v2284, %v2469
        %2471 = vmatprep.mubr.f32.mxu0 %v2301
        %2472 = vmatmul.mubr.f32.gmra.mrb[0].mxu0 %v2170
        %v2473 = vpop.f32.mrb[0].mxu0
        %v2474 = vadd.f32 %v2289, %v2473
        %v2475 = vpop.f32.mrb[0].mxu0
        %v2476 = vadd.f32 %v2289, %v2475
        %2477 = vmatprep.mubr.f32.mxu0 %v2304
        %2478 = vmatmul.mubr.f32.gmra.mrb[0].mxu0 %v2172
        %v2479 = vpop.f32.mrb[0].mxu0
        %v2480 = vadd.f32 %v2294, %v2479
        %v2481 = vpop.f32.mrb[0].mxu0
        %v2482 = vadd.f32 %v2294, %v2481
        %2483 = vdwg.mxu0
        %v2484 = vmax.f32 %v2385, 0.0
        %v2485 = vmax.f32 %v2387, 0.0
        %v2486 = vmax.f32 %v2468, 0.0
        %v2487 = vmax.f32 %v2470, 0.0
        %v2488 = vmax.f32 %v2391, 0.0
        %v2489 = vmax.f32 %v2393, 0.0
        %v2490 = vmax.f32 %v2474, 0.0
        %v2491 = vmax.f32 %v2476, 0.0
        %v2492 = vmax.f32 %v2397, 0.0
        %v2493 = vmax.f32 %v2399, 0.0
        %v2494 = vmax.f32 %v2480, 0.0
        %v2495 = vmax.f32 %v2482, 0.0
        %2496 = vst [vmem:[%s298 + $0x20] sm:$0xff] %v2484
        %2497 = vst [vmem:[%s298 + $0x28] sm:$0xff] %v2485
        %2498 = vst [vmem:[%s298 + $0x30] sm:$0xff] %v2486
        %2499 = vst [vmem:[%s298 + $0x38] sm:$0xff] %v2487
        %2500 = vst [vmem:[%s298 + $0x40] sm:$0xff] %v2488
        %2501 = vst [vmem:[%s298 + $0x48] sm:$0xff] %v2489
        %2502 = vst [vmem:[%s298 + $0x50] sm:$0xff] %v2490
        %2503 = vst [vmem:[%s298 + $0x58] sm:$0xff] %v2491
        %2504 = vst [vmem:[%s298 + $0x60] sm:$0xff] %v2492
        %2505 = vst [vmem:[%s298 + $0x68] sm:$0xff] %v2493
        %2506 = vst [vmem:[%s298 + $0x70] sm:$0xff] %v2494
        %2507 = vst [vmem:[%s298 + $0x78] sm:$0xff] %v2495
        %s2508 = sand.u32 %s183, 1
        %s2509 = scalar_lea.sflag [#allocation6], %s2508
        %s2510 = sand.u32 %s183, 1
        %s2511 = smul.addr %s2510, 128
        %s2512 = scalar_lea.vmem [#allocation9], %s2511
        // Predicated region
        $region57: #{tpu_custom_call.1} parent=47 // pred_check
          %p2513 = pneg %p193
        $region58: #{tpu_custom_call.1} parent=47 // pred_check_branch
          %2515 = sbr.rel (%p2513) target = $region60
        $region59: #{tpu_custom_call.1} parent=47 // pred_region
          %s2516 = smul.u32 4, %s23
          %s2518 = ssub.s32 2048, 2048
          %2519 = vsyncadd %s2509, %s2518
          %s2520 = smul.addr %s2516, 128
          %s2521 = scalar_lea.hbm %s7, %s2520
          %s2522 = sshll.u32 %s2512, 4
          %s2523 = int_to_ptr.vmem [resolvable:$true] %s2522
          %2528 = dma.vmem_to_hbm [thread:$0]  %s2523, 2048, %s2521, %s2509, 512, 1024, 32
        $region60: #{tpu_custom_call.1} parent=47 // pred_fallthru
          _
      $region48: #{tpu_custom_call.1} parent=5 // pred_fallthru
        _
      %p2529 = scmp.le.s32.totalorder 2, %s18
      // Predicated region
      $region61: #{tpu_custom_call.1} parent=5 // pred_check
        %p2530 = pneg %p2529
      $region62: #{tpu_custom_call.1} parent=5 // pred_check_branch
        %2532 = sbr.rel (%p2530) target = $region64
      $region63: #{tpu_custom_call.1} parent=5 // pred_region
        %s2533 = ssub.s32 %s18, 2
        // Predicated region
        $region65: #{tpu_custom_call.1} parent=63 // pred_check
          %p2534 = pneg %p199
        $region66: #{tpu_custom_call.1} parent=63 // pred_check_branch
          %2536 = sbr.rel (%p2534) target = $region68
        $region67: #{tpu_custom_call.1} parent=63 // pred_region
          %s2537 = sand.u32 %s184, 1
          %s2538 = scalar_lea.sflag [#allocation6], %s2537
          %s2539 = sand.u32 %s184, 1
          %s2540 = smul.addr %s2539, 128
          %s2541 = scalar_lea.vmem [#allocation9], %s2540
          %2542 = dma.done %s2538, 2048
        $region68: #{tpu_custom_call.1} parent=63 // pred_fallthru
          _
      $region64: #{tpu_custom_call.1} parent=5 // pred_fallthru
        _
    $region6: #{tpu_custom_call.1} parent=1 // loop_footer
      %s22 = sadd.s32 1, %s18
    $region7: #{tpu_custom_call.1} parent=1 // loop_footer_branch
      %17 = sbr.rel target = $region3
    $region8: #{tpu_custom_call.1} parent=1 // loop_exit
      _
    %2543 = vsyncpa [#allocation5], 1
    %s2544 = scalar_lea.sflag [#allocation5], 1
    %2545 = vsyncpa %s2544, 1
    %2546 = vsyncpa [#allocation8], 1
    %2547 = vsyncpa [#allocation6], 1
    %s2548 = scalar_lea.sflag [#allocation6], 1
    %2549 = vsyncpa %s2548, 1

</llo_original>
